<compile_context>
chip_gen: v7x
topology: tpu7x:2x2x1
jax: 0.10.0
libtpu: 0.0.40
codegen_flags: <defaults>
</compile_context>

<pallas_src>
import functools

import jax
import jax.numpy as jnp
from jax.experimental import pallas as pl
from jax.experimental.pallas import tpu as pltpu

EXPANSION = 4
BN_EPS = 1e-5


def _bottleneck_kernel(TR, W, planes, use_im2col, left,
                       x_ref, w1_ref, b1_ref, w2_ref, b2_ref,
                       w3_ref, wsc_ref, b3sc_ref, out_ref, h1pad_ref):
    """One row tile (TR output rows) of one image per grid step.

    x_ref:     ((H+2)*W, Cin) bf16  -- whole row-padded image, resident across row tiles
    out_ref:   (TR*W, Cout) f32     -- one row tile of the output
    h1pad_ref: (TR+2, left+W+1, planes) bf16 scratch; interior columns [left, left+W)
    """
    r = pl.program_id(1)
    n_r = pl.num_programs(1)
    P = TR * W

    # ---- conv1 (1x1, BN1 folded) + ReLU on TR+2 rows (1-row halo recompute) ----------
    off_ext = pl.multiple_of(r * (TR * W), TR * W)
    xext = x_ref[pl.ds(off_ext, (TR + 2) * W), :]                  # ((TR+2)*W, Cin) bf16
    h1 = jnp.dot(xext, w1_ref[...], preferred_element_type=jnp.float32)
    h1 = jnp.maximum(h1 + b1_ref[...], 0.0).astype(jnp.bfloat16)   # ((TR+2)*W, planes)

    # ---- write bf16 padded-h1 scratch; interior store is sublane-aligned at `left` ----
    zcol = jnp.zeros((TR + 2, 1, planes), jnp.bfloat16)
    h1pad_ref[:, left - 1:left, :] = zcol                          # left halo column
    h1pad_ref[:, left + W:left + W + 1, :] = zcol                  # right halo column
    h1pad_ref[:, left:left + W, :] = h1.reshape(TR + 2, W, planes)

    zrow = jnp.zeros((1, W, planes), jnp.bfloat16)

    @pl.when(r == 0)                       # above the image: 3x3 padding must be zero,
    def _():                               # not relu(bn1 shift) from the padded x row
        h1pad_ref[0:1, left:left + W, :] = zrow

    @pl.when(r == n_r - 1)                 # below the image
    def _():
        h1pad_ref[TR + 1:TR + 2, left:left + W, :] = zrow

    # ---- shared 3x3 conv (stride 1, pad 1, BN2 folded) + ReLU -------------------------
    def tap(ky, kx):
        c0 = left - 1 + kx
        return h1pad_ref[ky:ky + TR, c0:c0 + W, :].reshape(P, planes)   # bf16

    if use_im2col:
        # single big-K matmul (K = 9*planes): best MXU fill when planes is lane-dense
        taps = jnp.concatenate([tap(ky, kx) for ky in range(3) for kx in range(3)],
                               axis=-1)                            # (P, 9*planes) bf16
        h2 = jnp.dot(taps, w2_ref[...], preferred_element_type=jnp.float32)
    else:
        # 9 accumulating matmuls: no (P, 9*planes) temporary, no lane concatenation
        h2 = None
        for k in range(9):
            d = jnp.dot(tap(k // 3, k % 3), w2_ref[k],
                        preferred_element_type=jnp.float32)
            h2 = d if h2 is None else h2 + d
    h2 = jnp.maximum(h2 + b2_ref[...], 0.0).astype(jnp.bfloat16)   # (P, planes)

    # ---- conv3 (1x1, BN3) + shortcut (1x1, BNsc): two bf16 dots summed in f32 ---------
    off_in = pl.multiple_of((r * TR + 1) * W, W)
    xin = x_ref[pl.ds(off_in, P), :]                               # (P, Cin) bf16
    out = (jnp.dot(h2, w3_ref[...], preferred_element_type=jnp.float32)
           + jnp.dot(xin, wsc_ref[...], preferred_element_type=jnp.float32)
           + b3sc_ref[...])
    out_ref[...] = jnp.maximum(out, 0.0).astype(out_ref.dtype)


def _fold_bn(gamma, beta, mean, var, eps=BN_EPS):
    scale = gamma / jnp.sqrt(var + eps)
    shift = beta - mean * scale
    return scale, shift


def bottleneck_block_shared(x_nchw, params, planes, expansion=EXPANSION,
                            row_tile=None, use_im2col=None):
    """Forward pass. x_nchw: (N, Cin, H, W) float32. Returns NCHW float32."""
    N, Cin, H, W = x_nchw.shape
    Cout = expansion * planes

    if use_im2col is None:
        use_im2col = planes >= 128          # im2col only when the lane dim is dense
    if row_tile is None:
        row_tile = H
        for cand in (8, 7, 4, 2):           # ~8-row tiles that divide H, lane-store friendly
            if cand < H and H % cand == 0 and (cand * W) % 8 == 0:
                row_tile = cand
                break
    TR = row_tile
    assert H % TR == 0
    assert TR == H or (TR * W) % 8 == 0
    nR = H // TR

    # bf16 BEFORE the layout transpose (halves the relayout HBM traffic), then pad one
    # zero row top/bottom so every row tile slices a fixed (TR+2)-row window.
    x_nhwc = jnp.transpose(x_nchw.astype(jnp.bfloat16), (0, 2, 3, 1))   # (N,H,W,Cin)
    x_pad = jnp.pad(x_nhwc, ((0, 0), (1, 1), (0, 0), (0, 0)))           # (N,H+2,W,Cin)
    x_flat = x_pad.reshape(N, (H + 2) * W, Cin)

    s1, sh1 = _fold_bn(*params['bn1'])
    s2, sh2 = _fold_bn(*params['bn2'])
    s3, sh3 = _fold_bn(*params['bn3'])
    ssc, shsc = _fold_bn(*params['bn_sc'])

    # Fold BN scales into conv weights (per output channel); bf16 weights for the MXU.
    w1f = (params['w1'].T * s1[None, :]).astype(jnp.bfloat16)            # (Cin, planes)
    w2_k = jnp.transpose(params['w2'], (2, 3, 1, 0)) * s2[None, None, None, :]  # (3,3,in,out)
    if use_im2col:
        w2p = w2_k.reshape(9 * planes, planes).astype(jnp.bfloat16)      # (9*planes, planes)
    else:
        w2p = w2_k.reshape(9, planes, planes).astype(jnp.bfloat16)       # (9, planes, planes)
    w3f = (params['w3'].T * s3[None, :]).astype(jnp.bfloat16)            # (planes, Cout)
    wscf = (params['wsc'].T * ssc[None, :]).astype(jnp.bfloat16)         # (Cin, Cout)

    b1v = sh1.reshape(1, planes).astype(jnp.float32)
    b2v = sh2.reshape(1, planes).astype(jnp.float32)
    b3scv = (sh3 + shsc).reshape(1, Cout).astype(jnp.float32)

    LEFT = 16    # bf16 sublane alignment for the scratch's interior store
    kernel = functools.partial(_bottleneck_kernel, TR, W, planes, use_im2col, LEFT)

    def _const(shape):   # weights/biases: DMA'd once, VMEM-resident across all grid steps
        nd = len(shape)
        return pl.BlockSpec(shape, lambda b, r, _nd=nd: (0,) * _nd)

    flops = 2 * N * H * W * (Cin * planes + 9 * planes * planes
                             + planes * Cout + Cin * Cout)
    bytes_accessed = (x_flat.size * 2 + N * H * W * Cout * 4
                      + 2 * (w1f.size + w2p.size + w3f.size + wscf.size)
                      + 4 * (b1v.size + b2v.size + b3scv.size))
    cost = pl.CostEstimate(flops=flops, transcendentals=0,
                           bytes_accessed=bytes_accessed)

    try:   # generation-aware scoped-VMEM cap: ~48 MiB on v7x, ~96 MiB on v5e/v6e
        vmem_cap = pltpu.get_tpu_info().vmem_capacity_bytes
    except Exception:
        vmem_cap = 64 * 1024 * 1024
    vmem_limit = min(int(vmem_cap * 3 // 4), 112 * 1024 * 1024)

    out_flat = pl.pallas_call(
        kernel,
        out_shape=jax.ShapeDtypeStruct((N, H * W, Cout), jnp.float32),
        grid=(N, nR),
        in_specs=[
            # whole row-padded image: constant index over r -> fetched once per image,
            # stays VMEM-resident while its row tiles are processed.
            pl.BlockSpec((None, (H + 2) * W, Cin), lambda b, r: (b, 0, 0)),
            _const(w1f.shape), _const(b1v.shape),
            _const(w2p.shape), _const(b2v.shape),
            _const(w3f.shape), _const(wscf.shape), _const(b3scv.shape),
        ],
        out_specs=pl.BlockSpec((None, TR * W, Cout), lambda b, r: (b, r, 0)),
        scratch_shapes=[pltpu.VMEM((TR + 2, LEFT + W + 1, planes), jnp.bfloat16)],
        compiler_params=pltpu.CompilerParams(
            dimension_semantics=("parallel", "parallel"),
            vmem_limit_bytes=vmem_limit),
        cost_estimate=cost,
    )(x_flat, w1f, b1v, w2p, b2v, w3f, wscf, b3scv)

    out_nhwc = out_flat.reshape(N, H, W, Cout)
    return jnp.transpose(out_nhwc, (0, 3, 1, 2))


def init_params(key, in_planes, planes, expansion=EXPANSION):
    Cout = expansion * planes
    ks = jax.random.split(key, 8)

    def bn_params(k, c):
        k1, k2, k3, k4 = jax.random.split(k, 4)
        gamma = 1.0 + 0.1 * jax.random.normal(k1, (c,), jnp.float32)
        beta = 0.1 * jax.random.normal(k2, (c,), jnp.float32)
        mean = 0.1 * jax.random.normal(k3, (c,), jnp.float32)
        var = jax.random.uniform(k4, (c,), jnp.float32, minval=0.5, maxval=1.5)
        return (gamma, beta, mean, var)

    return {
        'w1': 0.2 * jax.random.normal(ks[0], (planes, in_planes), jnp.float32),
        'w2': 0.2 * jax.random.normal(ks[1], (planes, planes, 3, 3), jnp.float32),
        'w3': 0.2 * jax.random.normal(ks[2], (Cout, planes), jnp.float32),
        'wsc': 0.2 * jax.random.normal(ks[3], (Cout, in_planes), jnp.float32),
        'bn1': bn_params(ks[4], planes),
        'bn2': bn_params(ks[5], planes),
        'bn3': bn_params(ks[6], Cout),
        'bn_sc': bn_params(ks[7], Cout),
    }


def reference_forward(x, params, planes, expansion=EXPANSION):
    """Pure-JAX (XLA conv, f32) reference of the same forward pass, NCHW."""
    dn = ('NCHW', 'OIHW', 'NCHW')

    def bn(y, p):
        g, b, m, v = p
        scale = g / jnp.sqrt(v + BN_EPS)
        shift = b - m * scale
        return y * scale[None, :, None, None] + shift[None, :, None, None]

    def conv(y, w, pad):
        return jax.lax.conv_general_dilated(y, w, (1, 1), pad, dimension_numbers=dn)

    out = jax.nn.relu(bn(conv(x, params['w1'][:, :, None, None], 'VALID'), params['bn1']))
    out = jax.nn.relu(bn(conv(out, params['w2'], ((1, 1), (1, 1))), params['bn2']))
    out = bn(conv(out, params['w3'][:, :, None, None], 'VALID'), params['bn3'])
    sc = bn(conv(x, params['wsc'][:, :, None, None], 'VALID'), params['bn_sc'])
    return jax.nn.relu(out + sc)


if __name__ == "__main__":
    key = jax.random.PRNGKey(0)
    kx, kp = jax.random.split(key)

    # small shapes: batch=2, in_planes=8, planes=4 (-> out channels 16), 16x16 spatial
    N, in_planes, planes, H, W = 2, 8, 4, 16, 16
    x = jax.random.normal(kx, (N, in_planes, H, W), jnp.float32)
    params = init_params(kp, in_planes, planes)

    ref = reference_forward(x, params, planes)

    # Path A: auto config -> 9-accumulating-matmul 3x3, auto row tile (TR=8, 2 tiles).
    out_a = jax.block_until_ready(bottleneck_block_shared(x, params, planes))
    # Path B: forced im2col 3x3, smaller row tiles (TR=4, exercises interior tiles).
    out_b = jax.block_until_ready(
        bottleneck_block_shared(x, params, planes, row_tile=4, use_im2col=True))

    for out in (out_a, out_b):
        assert out.shape == ref.shape == (N, EXPANSION * planes, H, W)
        # bf16-matmul tolerance: atol + rtol check against the full-f32 reference.
        err = jnp.abs(out - ref)
        tol = 5e-2 + 5e-2 * jnp.abs(ref)
        if not bool(jnp.all(err <= tol)):
            max_err = float(jnp.max(err))
            raise AssertionError(f"kernel/reference mismatch: max abs err = {max_err}")

    print("KERNEL_OK")
</pallas_src>

<mosaic_0001>
module attributes {stable_mosaic.version = 11 : i64} {
  func.func @_bottleneck_kernel(%arg0: i32, %arg1: i32, %arg2: memref<1x288x8xbf16, #tpu.memory_space<vmem>>, %arg3: memref<8x4xbf16, #tpu.memory_space<vmem>>, %arg4: memref<1x4xf32, #tpu.memory_space<vmem>>, %arg5: memref<9x4x4xbf16, #tpu.memory_space<vmem>>, %arg6: memref<1x4xf32, #tpu.memory_space<vmem>>, %arg7: memref<4x16xbf16, #tpu.memory_space<vmem>>, %arg8: memref<8x16xbf16, #tpu.memory_space<vmem>>, %arg9: memref<1x16xf32, #tpu.memory_space<vmem>>, %arg10: memref<1x128x16xf32, #tpu.memory_space<vmem>>, %arg11: memref<10x33x4xbf16, #tpu.memory_space<vmem>>) attributes {dimension_semantics = [#tpu.dimension_semantics<parallel>, #tpu.dimension_semantics<parallel>], iteration_bounds = array<i64: 2, 2>, scalar_prefetch = 0 : i64, scratch_operands = 1 : i64, tpu.core_type = #tpu.core_type<tc>, window_params = [{transform_indices = @transform_0, window_bounds = array<i64: 1, 288, 8>}, {pipeline_mode = #tpu.pipeline_mode<synchronous>, transform_indices = @transform_1, window_bounds = array<i64: 8, 4>}, {pipeline_mode = #tpu.pipeline_mode<synchronous>, transform_indices = @transform_2, window_bounds = array<i64: 1, 4>}, {pipeline_mode = #tpu.pipeline_mode<synchronous>, transform_indices = @transform_3, window_bounds = array<i64: 9, 4, 4>}, {pipeline_mode = #tpu.pipeline_mode<synchronous>, transform_indices = @transform_4, window_bounds = array<i64: 1, 4>}, {pipeline_mode = #tpu.pipeline_mode<synchronous>, transform_indices = @transform_5, window_bounds = array<i64: 4, 16>}, {pipeline_mode = #tpu.pipeline_mode<synchronous>, transform_indices = @transform_6, window_bounds = array<i64: 8, 16>}, {pipeline_mode = #tpu.pipeline_mode<synchronous>, transform_indices = @transform_7, window_bounds = array<i64: 1, 16>}, {transform_indices = @transform_8, window_bounds = array<i64: 1, 128, 16>}]} {
    %c128_i32 = arith.constant 128 : i32
    %0 = arith.muli %arg1, %c128_i32 : i32
    %1 = tpu.assume_multiple %0, 128 : i32
    %c0 = arith.constant 0 : index
    %2 = arith.index_cast %1 : i32 to index
    %c0_0 = arith.constant 0 : index
    %3 = vector.load %arg2[%c0, %2, %c0_0] : memref<1x288x8xbf16, #tpu.memory_space<vmem>>, vector<1x160x8xbf16>
    %4 = vector.shape_cast %3 : vector<1x160x8xbf16> to vector<160x8xbf16>
    %c0_1 = arith.constant 0 : index
    %c0_2 = arith.constant 0 : index
    %5 = vector.load %arg3[%c0_1, %c0_2] : memref<8x4xbf16, #tpu.memory_space<vmem>>, vector<8x4xbf16>
    %cst = arith.constant dense<0.000000e+00> : vector<160x4xf32>
    %6 = tpu.matmul %4, %5, %cst {dimension_numbers = #tpu.dot_dimension_numbers<[1], [0], [0], [1], [0, 0, 1, 1], [], []>} : vector<160x8xbf16>, vector<8x4xbf16>, vector<160x4xf32> -> vector<160x4xf32>
    %c0_3 = arith.constant 0 : index
    %c0_4 = arith.constant 0 : index
    %7 = vector.load %arg4[%c0_3, %c0_4] : memref<1x4xf32, #tpu.memory_space<vmem>>, vector<1x4xf32>
    %8 = vector.broadcast %7 : vector<1x4xf32> to vector<160x4xf32>
    %9 = arith.addf %6, %8 : vector<160x4xf32>
    %cst_5 = arith.constant 0.000000e+00 : f32
    %10 = vector.broadcast %cst_5 : f32 to vector<160x4xf32>
    %11 = arith.maximumf %9, %10 : vector<160x4xf32>
    %12 = arith.truncf %11 : vector<160x4xf32> to vector<160x4xbf16>
    %cst_6 = arith.constant 0.000000e+00 : bf16
    %13 = vector.broadcast %cst_6 : bf16 to vector<10x1x4xbf16>
    %c0_7 = arith.constant 0 : index
    %c15 = arith.constant 15 : index
    %c0_8 = arith.constant 0 : index
    %14 = vector.load %arg11[%c0_7, %c15, %c0_8] : memref<10x33x4xbf16, #tpu.memory_space<vmem>>, vector<10x1x4xbf16>
    tpu.vector_store %arg11[%c0_7, %c15, %c0_8], %13 {strides = array<i32>} : memref<10x33x4xbf16, #tpu.memory_space<vmem>>, vector<10x1x4xbf16>,
    %c0_9 = arith.constant 0 : index
    %c32 = arith.constant 32 : index
    %c0_10 = arith.constant 0 : index
    %15 = vector.load %arg11[%c0_9, %c32, %c0_10] : memref<10x33x4xbf16, #tpu.memory_space<vmem>>, vector<10x1x4xbf16>
    tpu.vector_store %arg11[%c0_9, %c32, %c0_10], %13 {strides = array<i32>} : memref<10x33x4xbf16, #tpu.memory_space<vmem>>, vector<10x1x4xbf16>,
    %16 = vector.shape_cast %12 : vector<160x4xbf16> to vector<10x16x4xbf16>
    %c0_11 = arith.constant 0 : index
    %c16 = arith.constant 16 : index
    %c0_12 = arith.constant 0 : index
    %17 = vector.load %arg11[%c0_11, %c16, %c0_12] : memref<10x33x4xbf16, #tpu.memory_space<vmem>>, vector<10x16x4xbf16>
    tpu.vector_store %arg11[%c0_11, %c16, %c0_12], %16 {strides = array<i32>} : memref<10x33x4xbf16, #tpu.memory_space<vmem>>, vector<10x16x4xbf16>,
    %cst_13 = arith.constant 0.000000e+00 : bf16
    %18 = vector.broadcast %cst_13 : bf16 to vector<1x16x4xbf16>
    %c0_i32 = arith.constant 0 : i32
    %19 = arith.cmpi eq, %arg1, %c0_i32 : i32
    %20 = arith.extui %19 : i1 to i32
    %c0_i32_14 = arith.constant 0 : i32
    %21 = arith.cmpi ne, %20, %c0_i32_14 : i32
    scf.if %21 {
      %c0_88 = arith.constant 0 : index
      %c16_89 = arith.constant 16 : index
      %c0_90 = arith.constant 0 : index
      %104 = vector.load %arg11[%c0_88, %c16_89, %c0_90] : memref<10x33x4xbf16, #tpu.memory_space<vmem>>, vector<1x16x4xbf16>
      tpu.vector_store %arg11[%c0_88, %c16_89, %c0_90], %18 {strides = array<i32>} : memref<10x33x4xbf16, #tpu.memory_space<vmem>>, vector<1x16x4xbf16>,
    } else {
    }
    %c1_i32 = arith.constant 1 : i32
    %22 = arith.cmpi eq, %arg1, %c1_i32 : i32
    %23 = arith.extui %22 : i1 to i32
    %c0_i32_15 = arith.constant 0 : i32
    %24 = arith.cmpi ne, %23, %c0_i32_15 : i32
    scf.if %24 {
      %c9 = arith.constant 9 : index
      %c16_88 = arith.constant 16 : index
      %c0_89 = arith.constant 0 : index
      %104 = vector.load %arg11[%c9, %c16_88, %c0_89] : memref<10x33x4xbf16, #tpu.memory_space<vmem>>, vector<1x16x4xbf16>
      tpu.vector_store %arg11[%c9, %c16_88, %c0_89], %18 {strides = array<i32>} : memref<10x33x4xbf16, #tpu.memory_space<vmem>>, vector<1x16x4xbf16>,
    } else {
    }
    %c0_16 = arith.constant 0 : index
    %c15_17 = arith.constant 15 : index
    %c0_18 = arith.constant 0 : index
    %25 = vector.load %arg11[%c0_16, %c15_17, %c0_18] : memref<10x33x4xbf16, #tpu.memory_space<vmem>>, vector<8x16x4xbf16>
    %26 = vector.shape_cast %25 : vector<8x16x4xbf16> to vector<128x4xbf16>
    %c0_19 = arith.constant 0 : index
    %c0_20 = arith.constant 0 : index
    %c0_21 = arith.constant 0 : index
    %27 = vector.load %arg5[%c0_19, %c0_20, %c0_21] : memref<9x4x4xbf16, #tpu.memory_space<vmem>>, vector<1x4x4xbf16>
    %28 = vector.shape_cast %27 : vector<1x4x4xbf16> to vector<4x4xbf16>
    %cst_22 = arith.constant dense<0.000000e+00> : vector<128x4xf32>
    %29 = tpu.matmul %26, %28, %cst_22 {dimension_numbers = #tpu.dot_dimension_numbers<[1], [0], [0], [1], [0, 0, 1, 1], [], []>} : vector<128x4xbf16>, vector<4x4xbf16>, vector<128x4xf32> -> vector<128x4xf32>
    %c0_23 = arith.constant 0 : index
    %c16_24 = arith.constant 16 : index
    %c0_25 = arith.constant 0 : index
    %30 = vector.load %arg11[%c0_23, %c16_24, %c0_25] : memref<10x33x4xbf16, #tpu.memory_space<vmem>>, vector<8x16x4xbf16>
    %31 = vector.shape_cast %30 : vector<8x16x4xbf16> to vector<128x4xbf16>
    %c1 = arith.constant 1 : index
    %c0_26 = arith.constant 0 : index
    %c0_27 = arith.constant 0 : index
    %32 = vector.load %arg5[%c1, %c0_26, %c0_27] : memref<9x4x4xbf16, #tpu.memory_space<vmem>>, vector<1x4x4xbf16>
    %33 = vector.shape_cast %32 : vector<1x4x4xbf16> to vector<4x4xbf16>
    %cst_28 = arith.constant dense<0.000000e+00> : vector<128x4xf32>
    %34 = tpu.matmul %31, %33, %cst_28 {dimension_numbers = #tpu.dot_dimension_numbers<[1], [0], [0], [1], [0, 0, 1, 1], [], []>} : vector<128x4xbf16>, vector<4x4xbf16>, vector<128x4xf32> -> vector<128x4xf32>
    %35 = arith.addf %29, %34 : vector<128x4xf32>
    %c0_29 = arith.constant 0 : index
    %c17 = arith.constant 17 : index
    %c0_30 = arith.constant 0 : index
    %36 = vector.load %arg11[%c0_29, %c17, %c0_30] : memref<10x33x4xbf16, #tpu.memory_space<vmem>>, vector<8x16x4xbf16>
    %37 = vector.shape_cast %36 : vector<8x16x4xbf16> to vector<128x4xbf16>
    %c2 = arith.constant 2 : index
    %c0_31 = arith.constant 0 : index
    %c0_32 = arith.constant 0 : index
    %38 = vector.load %arg5[%c2, %c0_31, %c0_32] : memref<9x4x4xbf16, #tpu.memory_space<vmem>>, vector<1x4x4xbf16>
    %39 = vector.shape_cast %38 : vector<1x4x4xbf16> to vector<4x4xbf16>
    %cst_33 = arith.constant dense<0.000000e+00> : vector<128x4xf32>
    %40 = tpu.matmul %37, %39, %cst_33 {dimension_numbers = #tpu.dot_dimension_numbers<[1], [0], [0], [1], [0, 0, 1, 1], [], []>} : vector<128x4xbf16>, vector<4x4xbf16>, vector<128x4xf32> -> vector<128x4xf32>
    %41 = arith.addf %35, %40 : vector<128x4xf32>
    %c1_34 = arith.constant 1 : index
    %c15_35 = arith.constant 15 : index
    %c0_36 = arith.constant 0 : index
    %42 = vector.load %arg11[%c1_34, %c15_35, %c0_36] : memref<10x33x4xbf16, #tpu.memory_space<vmem>>, vector<8x16x4xbf16>
    %43 = vector.shape_cast %42 : vector<8x16x4xbf16> to vector<128x4xbf16>
    %c3 = arith.constant 3 : index
    %c0_37 = arith.constant 0 : index
    %c0_38 = arith.constant 0 : index
    %44 = vector.load %arg5[%c3, %c0_37, %c0_38] : memref<9x4x4xbf16, #tpu.memory_space<vmem>>, vector<1x4x4xbf16>
    %45 = vector.shape_cast %44 : vector<1x4x4xbf16> to vector<4x4xbf16>
    %cst_39 = arith.constant dense<0.000000e+00> : vector<128x4xf32>
    %46 = tpu.matmul %43, %45, %cst_39 {dimension_numbers = #tpu.dot_dimension_numbers<[1], [0], [0], [1], [0, 0, 1, 1], [], []>} : vector<128x4xbf16>, vector<4x4xbf16>, vector<128x4xf32> -> vector<128x4xf32>
    %47 = arith.addf %41, %46 : vector<128x4xf32>
    %c1_40 = arith.constant 1 : index
    %c16_41 = arith.constant 16 : index
    %c0_42 = arith.constant 0 : index
    %48 = vector.load %arg11[%c1_40, %c16_41, %c0_42] : memref<10x33x4xbf16, #tpu.memory_space<vmem>>, vector<8x16x4xbf16>
    %49 = vector.shape_cast %48 : vector<8x16x4xbf16> to vector<128x4xbf16>
    %c4 = arith.constant 4 : index
    %c0_43 = arith.constant 0 : index
    %c0_44 = arith.constant 0 : index
    %50 = vector.load %arg5[%c4, %c0_43, %c0_44] : memref<9x4x4xbf16, #tpu.memory_space<vmem>>, vector<1x4x4xbf16>
    %51 = vector.shape_cast %50 : vector<1x4x4xbf16> to vector<4x4xbf16>
    %cst_45 = arith.constant dense<0.000000e+00> : vector<128x4xf32>
    %52 = tpu.matmul %49, %51, %cst_45 {dimension_numbers = #tpu.dot_dimension_numbers<[1], [0], [0], [1], [0, 0, 1, 1], [], []>} : vector<128x4xbf16>, vector<4x4xbf16>, vector<128x4xf32> -> vector<128x4xf32>
    %53 = arith.addf %47, %52 : vector<128x4xf32>
    %c1_46 = arith.constant 1 : index
    %c17_47 = arith.constant 17 : index
    %c0_48 = arith.constant 0 : index
    %54 = vector.load %arg11[%c1_46, %c17_47, %c0_48] : memref<10x33x4xbf16, #tpu.memory_space<vmem>>, vector<8x16x4xbf16>
    %55 = vector.shape_cast %54 : vector<8x16x4xbf16> to vector<128x4xbf16>
    %c5 = arith.constant 5 : index
    %c0_49 = arith.constant 0 : index
    %c0_50 = arith.constant 0 : index
    %56 = vector.load %arg5[%c5, %c0_49, %c0_50] : memref<9x4x4xbf16, #tpu.memory_space<vmem>>, vector<1x4x4xbf16>
    %57 = vector.shape_cast %56 : vector<1x4x4xbf16> to vector<4x4xbf16>
    %cst_51 = arith.constant dense<0.000000e+00> : vector<128x4xf32>
    %58 = tpu.matmul %55, %57, %cst_51 {dimension_numbers = #tpu.dot_dimension_numbers<[1], [0], [0], [1], [0, 0, 1, 1], [], []>} : vector<128x4xbf16>, vector<4x4xbf16>, vector<128x4xf32> -> vector<128x4xf32>
    %59 = arith.addf %53, %58 : vector<128x4xf32>
    %c2_52 = arith.constant 2 : index
    %c15_53 = arith.constant 15 : index
    %c0_54 = arith.constant 0 : index
    %60 = vector.load %arg11[%c2_52, %c15_53, %c0_54] : memref<10x33x4xbf16, #tpu.memory_space<vmem>>, vector<8x16x4xbf16>
    %61 = vector.shape_cast %60 : vector<8x16x4xbf16> to vector<128x4xbf16>
    %c6 = arith.constant 6 : index
    %c0_55 = arith.constant 0 : index
    %c0_56 = arith.constant 0 : index
    %62 = vector.load %arg5[%c6, %c0_55, %c0_56] : memref<9x4x4xbf16, #tpu.memory_space<vmem>>, vector<1x4x4xbf16>
    %63 = vector.shape_cast %62 : vector<1x4x4xbf16> to vector<4x4xbf16>
    %cst_57 = arith.constant dense<0.000000e+00> : vector<128x4xf32>
    %64 = tpu.matmul %61, %63, %cst_57 {dimension_numbers = #tpu.dot_dimension_numbers<[1], [0], [0], [1], [0, 0, 1, 1], [], []>} : vector<128x4xbf16>, vector<4x4xbf16>, vector<128x4xf32> -> vector<128x4xf32>
    %65 = arith.addf %59, %64 : vector<128x4xf32>
    %c2_58 = arith.constant 2 : index
    %c16_59 = arith.constant 16 : index
    %c0_60 = arith.constant 0 : index
    %66 = vector.load %arg11[%c2_58, %c16_59, %c0_60] : memref<10x33x4xbf16, #tpu.memory_space<vmem>>, vector<8x16x4xbf16>
    %67 = vector.shape_cast %66 : vector<8x16x4xbf16> to vector<128x4xbf16>
    %c7 = arith.constant 7 : index
    %c0_61 = arith.constant 0 : index
    %c0_62 = arith.constant 0 : index
    %68 = vector.load %arg5[%c7, %c0_61, %c0_62] : memref<9x4x4xbf16, #tpu.memory_space<vmem>>, vector<1x4x4xbf16>
    %69 = vector.shape_cast %68 : vector<1x4x4xbf16> to vector<4x4xbf16>
    %cst_63 = arith.constant dense<0.000000e+00> : vector<128x4xf32>
    %70 = tpu.matmul %67, %69, %cst_63 {dimension_numbers = #tpu.dot_dimension_numbers<[1], [0], [0], [1], [0, 0, 1, 1], [], []>} : vector<128x4xbf16>, vector<4x4xbf16>, vector<128x4xf32> -> vector<128x4xf32>
    %71 = arith.addf %65, %70 : vector<128x4xf32>
    %c2_64 = arith.constant 2 : index
    %c17_65 = arith.constant 17 : index
    %c0_66 = arith.constant 0 : index
    %72 = vector.load %arg11[%c2_64, %c17_65, %c0_66] : memref<10x33x4xbf16, #tpu.memory_space<vmem>>, vector<8x16x4xbf16>
    %73 = vector.shape_cast %72 : vector<8x16x4xbf16> to vector<128x4xbf16>
    %c8 = arith.constant 8 : index
    %c0_67 = arith.constant 0 : index
    %c0_68 = arith.constant 0 : index
    %74 = vector.load %arg5[%c8, %c0_67, %c0_68] : memref<9x4x4xbf16, #tpu.memory_space<vmem>>, vector<1x4x4xbf16>
    %75 = vector.shape_cast %74 : vector<1x4x4xbf16> to vector<4x4xbf16>
    %cst_69 = arith.constant dense<0.000000e+00> : vector<128x4xf32>
    %76 = tpu.matmul %73, %75, %cst_69 {dimension_numbers = #tpu.dot_dimension_numbers<[1], [0], [0], [1], [0, 0, 1, 1], [], []>} : vector<128x4xbf16>, vector<4x4xbf16>, vector<128x4xf32> -> vector<128x4xf32>
    %77 = arith.addf %71, %76 : vector<128x4xf32>
    %c0_70 = arith.constant 0 : index
    %c0_71 = arith.constant 0 : index
    %78 = vector.load %arg6[%c0_70, %c0_71] : memref<1x4xf32, #tpu.memory_space<vmem>>, vector<1x4xf32>
    %79 = vector.broadcast %78 : vector<1x4xf32> to vector<128x4xf32>
    %80 = arith.addf %77, %79 : vector<128x4xf32>
    %cst_72 = arith.constant 0.000000e+00 : f32
    %81 = vector.broadcast %cst_72 : f32 to vector<128x4xf32>
    %82 = arith.maximumf %80, %81 : vector<128x4xf32>
    %83 = arith.truncf %82 : vector<128x4xf32> to vector<128x4xbf16>
    %c8_i32 = arith.constant 8 : i32
    %84 = arith.muli %arg1, %c8_i32 : i32
    %c1_i32_73 = arith.constant 1 : i32
    %85 = arith.addi %84, %c1_i32_73 : i32
    %c16_i32 = arith.constant 16 : i32
    %86 = arith.muli %85, %c16_i32 : i32
    %87 = tpu.assume_multiple %86, 16 : i32
    %c0_74 = arith.constant 0 : index
    %88 = arith.index_cast %87 : i32 to index
    %c0_75 = arith.constant 0 : index
    %89 = vector.load %arg2[%c0_74, %88, %c0_75] : memref<1x288x8xbf16, #tpu.memory_space<vmem>>, vector<1x128x8xbf16>
    %90 = vector.shape_cast %89 : vector<1x128x8xbf16> to vector<128x8xbf16>
    %c0_76 = arith.constant 0 : index
    %c0_77 = arith.constant 0 : index
    %91 = vector.load %arg7[%c0_76, %c0_77] : memref<4x16xbf16, #tpu.memory_space<vmem>>, vector<4x16xbf16>
    %cst_78 = arith.constant dense<0.000000e+00> : vector<128x16xf32>
    %92 = tpu.matmul %83, %91, %cst_78 {dimension_numbers = #tpu.dot_dimension_numbers<[1], [0], [0], [1], [0, 0, 1, 1], [], []>} : vector<128x4xbf16>, vector<4x16xbf16>, vector<128x16xf32> -> vector<128x16xf32>
    %c0_79 = arith.constant 0 : index
    %c0_80 = arith.constant 0 : index
    %93 = vector.load %arg8[%c0_79, %c0_80] : memref<8x16xbf16, #tpu.memory_space<vmem>>, vector<8x16xbf16>
    %cst_81 = arith.constant dense<0.000000e+00> : vector<128x16xf32>
    %94 = tpu.matmul %90, %93, %cst_81 {dimension_numbers = #tpu.dot_dimension_numbers<[1], [0], [0], [1], [0, 0, 1, 1], [], []>} : vector<128x8xbf16>, vector<8x16xbf16>, vector<128x16xf32> -> vector<128x16xf32>
    %95 = arith.addf %92, %94 : vector<128x16xf32>
    %c0_82 = arith.constant 0 : index
    %c0_83 = arith.constant 0 : index
    %96 = vector.load %arg9[%c0_82, %c0_83] : memref<1x16xf32, #tpu.memory_space<vmem>>, vector<1x16xf32>
    %97 = vector.broadcast %96 : vector<1x16xf32> to vector<128x16xf32>
    %98 = arith.addf %95, %97 : vector<128x16xf32>
    %cst_84 = arith.constant 0.000000e+00 : f32
    %99 = vector.broadcast %cst_84 : f32 to vector<128x16xf32>
    %100 = arith.maximumf %98, %99 : vector<128x16xf32>
    %c0_85 = arith.constant 0 : index
    %c0_86 = arith.constant 0 : index
    %c0_87 = arith.constant 0 : index
    %101 = vector.load %arg10[%c0_85, %c0_86, %c0_87] : memref<1x128x16xf32, #tpu.memory_space<vmem>>, vector<1x128x16xf32>
    %102 = vector.shape_cast %101 : vector<1x128x16xf32> to vector<128x16xf32>
    %103 = vector.shape_cast %100 : vector<128x16xf32> to vector<1x128x16xf32>
    tpu.vector_store %arg10[%c0_85, %c0_86, %c0_87], %103 {strides = array<i32>} : memref<1x128x16xf32, #tpu.memory_space<vmem>>, vector<1x128x16xf32>,
    return
  }
  func.func @transform_0(%arg0: i32, %arg1: i32) -> (i32, i32, i32) {
    %c0_i32 = arith.constant 0 : i32
    %c0_i32_0 = arith.constant 0 : i32
    %c0_i32_1 = arith.constant 0 : i32
    return %arg0, %c0_i32, %c0_i32_0 : i32, i32, i32
  }
  func.func @transform_1(%arg0: i32, %arg1: i32) -> (i32, i32) {
    %c0_i32 = arith.constant 0 : i32
    %c0_i32_0 = arith.constant 0 : i32
    %c0_i32_1 = arith.constant 0 : i32
    return %c0_i32, %c0_i32_0 : i32, i32
  }
  func.func @transform_2(%arg0: i32, %arg1: i32) -> (i32, i32) {
    %c0_i32 = arith.constant 0 : i32
    %c0_i32_0 = arith.constant 0 : i32
    %c0_i32_1 = arith.constant 0 : i32
    return %c0_i32, %c0_i32_0 : i32, i32
  }
  func.func @transform_3(%arg0: i32, %arg1: i32) -> (i32, i32, i32) {
    %c0_i32 = arith.constant 0 : i32
    %c0_i32_0 = arith.constant 0 : i32
    %c0_i32_1 = arith.constant 0 : i32
    %c0_i32_2 = arith.constant 0 : i32
    return %c0_i32, %c0_i32_0, %c0_i32_1 : i32, i32, i32
  }
  func.func @transform_4(%arg0: i32, %arg1: i32) -> (i32, i32) {
    %c0_i32 = arith.constant 0 : i32
    %c0_i32_0 = arith.constant 0 : i32
    %c0_i32_1 = arith.constant 0 : i32
    return %c0_i32, %c0_i32_0 : i32, i32
  }
  func.func @transform_5(%arg0: i32, %arg1: i32) -> (i32, i32) {
    %c0_i32 = arith.constant 0 : i32
    %c0_i32_0 = arith.constant 0 : i32
    %c0_i32_1 = arith.constant 0 : i32
    return %c0_i32, %c0_i32_0 : i32, i32
  }
  func.func @transform_6(%arg0: i32, %arg1: i32) -> (i32, i32) {
    %c0_i32 = arith.constant 0 : i32
    %c0_i32_0 = arith.constant 0 : i32
    %c0_i32_1 = arith.constant 0 : i32
    return %c0_i32, %c0_i32_0 : i32, i32
  }
  func.func @transform_7(%arg0: i32, %arg1: i32) -> (i32, i32) {
    %c0_i32 = arith.constant 0 : i32
    %c0_i32_0 = arith.constant 0 : i32
    %c0_i32_1 = arith.constant 0 : i32
    return %c0_i32, %c0_i32_0 : i32, i32
  }
  func.func @transform_8(%arg0: i32, %arg1: i32) -> (i32, i32, i32) {
    %c0_i32 = arith.constant 0 : i32
    %c0_i32_0 = arith.constant 0 : i32
    return %arg0, %arg1, %c0_i32 : i32, i32, i32
  }
}

</mosaic_0001>

<llo_original>
// kernel: tpu_custom_call.1
$region0: #{tpu_custom_call.1}
  #allocation0 [shape = 'u32[]', space=smem, size = 0x4, offset = 0x4, fixed_abs, tag = 'smem constant byte address 0x4 - core index']
  #allocation1 [shape = 'u32[144,128]{1,0:T(1,128)}', space=vmem, size = 0x12000, scoped, tag = 'internal scratch']
  #allocation2 [shape = 'bf16[10,33,4]{2,1,0:T(8,128)(2,1)}', space=vmem, size = 0x19000, scoped, tag = 'scratch operand']
  %s0 = inlined_call_operand.vmem [shape: bf16[2,288,8], index: 0, kind: input, shape index: {}]
  %s1 = inlined_call_operand.vmem [shape: bf16[8,4], index: 1, kind: input, shape index: {}]
  %s2 = inlined_call_operand.vmem [shape: f32[1,4], index: 2, kind: input, shape index: {}]
  %s3 = inlined_call_operand.vmem [shape: bf16[9,4,4], index: 3, kind: input, shape index: {}]
  %s4 = inlined_call_operand.vmem [shape: f32[1,4], index: 4, kind: input, shape index: {}]
  %s5 = inlined_call_operand.vmem [shape: bf16[4,16], index: 5, kind: input, shape index: {}]
  %s6 = inlined_call_operand.vmem [shape: bf16[8,16], index: 6, kind: input, shape index: {}]
  %s7 = inlined_call_operand.vmem [shape: f32[1,16], index: 7, kind: input, shape index: {}]
  %s8 = inlined_call_operand.vmem [shape: f32[2,256,16], index: 8, kind: output, shape index: {}]
  %s9 = sld [smem:[#allocation0]]
  $region73: #{tpu_custom_call.1} parent=0
    _
  %s11 = ssub.s32 1, %s9
  %s12 = scalar_select 0, %s11, %s9
  loop: start=0, step=1, limit=6
  $region2: #{tpu_custom_call.1} parent=0 // loop_pre_header
    _
  $region3: #{tpu_custom_call.1} parent=0 // loop_header
    %s14 = sphi 0, %s18
    %p15 = scmp.ge.s32.totalorder %s14, 6
    %s21 = sphi 0, %s33
    %s22 = sphi 0, %s29
    %s23 = sphi 0, %s21
    %s24 = sphi 0, %s22
    %s25 = sphi 0, %s23
    %s26 = sphi 0, %s24
    %s36 = sphi 0, %s38
    %s39 = sphi 0, %s36
    %s40 = sphi 0, %s39
    %s56 = sphi 0, %s40
    %s60 = sphi 0, %s60
    %s62 = sphi 0, %s60
    %s63 = sphi 0, %s62
    %s77 = sphi 0, %s63
    %s81 = sphi 0, %s81
    %s83 = sphi 0, %s81
    %s84 = sphi 0, %s83
    %s98 = sphi 0, %s84
    %s102 = sphi 0, %s102
    %s104 = sphi 0, %s102
    %s105 = sphi 0, %s104
    %s119 = sphi 0, %s105
    %s123 = sphi 0, %s123
    %s125 = sphi 0, %s123
    %s126 = sphi 0, %s125
    %s140 = sphi 0, %s126
    %s144 = sphi 0, %s144
    %s146 = sphi 0, %s144
    %s147 = sphi 0, %s146
    %s161 = sphi 0, %s147
    %s165 = sphi 0, %s165
    %s167 = sphi 0, %s165
    %s168 = sphi 0, %s167
    %s182 = sphi 0, %s168
    %s186 = sphi 0, %s186
    %s188 = sphi 0, %s186
    %s189 = sphi 0, %s188
    %s203 = sphi 0, %s189
    %s211 = sphi 0, %s213
    %s214 = sphi 0, %s211
    %s215 = sphi 0, %s214
    %s231 = sphi 0, %s215
  $region4: #{tpu_custom_call.1} parent=0 // loop_header_branch
    %17 = sbr.rel (%p15) target = $region8
  $region5: #{tpu_custom_call.1} parent=0 // loop_body
    %s19 = ssub.s32 %s14, 1
    %s20 = ssub.s32 %s14, 2
    %s27 = sadd.s32 1, %s22
    %p28 = scmp.ge.s32.totalorder %s27, 2
    %s29 = scalar_select %p28, 0, %s27
    %s30 = sadd.s32 1, %s21
    %s31 = scalar_select %p28, %s30, %s21
    %p32 = scmp.ge.s32.totalorder %s31, 2
    %s33 = scalar_select %p32, 0, %s31
    %s34 = ssub.s32 %s21, %s33
    %p35 = scmp.eq.s32.totalorder %s34, 0
    %s37 = sadd.s32 %s36, 1
    %s38 = scalar_select %p35, %s36, %s37
    %p41 = pneg %p35
    %p42 = scmp.eq.s32.totalorder %s14, 3
    %p43 = por %p41, %p42
    %p44 = scmp.ne.s32.totalorder %s36, %s39
    %p45 = scmp.eq.s32.totalorder %s14, 0
    %p46 = por %p44, %p45
    %p47 = scmp.ne.s32.totalorder %s36, %s39
    %p48 = scmp.eq.s32.totalorder %s19, 3
    %p49 = por %p47, %p48
    %p50 = scmp.ne.s32.totalorder %s39, %s40
    %p51 = scmp.eq.s32.totalorder %s19, 0
    %p52 = por %p50, %p51
    %p53 = scmp.ne.s32.totalorder %s39, %s40
    %p54 = scmp.eq.s32.totalorder %s20, 3
    %p55 = por %p53, %p54
    %p57 = scmp.ne.s32.totalorder %s40, %s56
    %p58 = scmp.eq.s32.totalorder %s20, 0
    %p59 = por %p57, %p58
    %s61 = sadd.s32 %s60, 1
    %p64 = scmp.eq.s32.totalorder %s14, 3
    %p65 = scmp.ne.s32.totalorder %s60, %s62
    %p66 = scmp.eq.s32.totalorder %s14, 0
    %p67 = por %p65, %p66
    %p68 = scmp.ne.s32.totalorder %s60, %s62
    %p69 = scmp.eq.s32.totalorder %s19, 3
    %p70 = por %p68, %p69
    %p71 = scmp.ne.s32.totalorder %s62, %s63
    %p72 = scmp.eq.s32.totalorder %s19, 0
    %p73 = por %p71, %p72
    %p74 = scmp.ne.s32.totalorder %s62, %s63
    %p75 = scmp.eq.s32.totalorder %s20, 3
    %p76 = por %p74, %p75
    %p78 = scmp.ne.s32.totalorder %s63, %s77
    %p79 = scmp.eq.s32.totalorder %s20, 0
    %p80 = por %p78, %p79
    %s82 = sadd.s32 %s81, 1
    %p85 = scmp.eq.s32.totalorder %s14, 3
    %p86 = scmp.ne.s32.totalorder %s81, %s83
    %p87 = scmp.eq.s32.totalorder %s14, 0
    %p88 = por %p86, %p87
    %p89 = scmp.ne.s32.totalorder %s81, %s83
    %p90 = scmp.eq.s32.totalorder %s19, 3
    %p91 = por %p89, %p90
    %p92 = scmp.ne.s32.totalorder %s83, %s84
    %p93 = scmp.eq.s32.totalorder %s19, 0
    %p94 = por %p92, %p93
    %p95 = scmp.ne.s32.totalorder %s83, %s84
    %p96 = scmp.eq.s32.totalorder %s20, 3
    %p97 = por %p95, %p96
    %p99 = scmp.ne.s32.totalorder %s84, %s98
    %p100 = scmp.eq.s32.totalorder %s20, 0
    %p101 = por %p99, %p100
    %s103 = sadd.s32 %s102, 1
    %p106 = scmp.eq.s32.totalorder %s14, 3
    %p107 = scmp.ne.s32.totalorder %s102, %s104
    %p108 = scmp.eq.s32.totalorder %s14, 0
    %p109 = por %p107, %p108
    %p110 = scmp.ne.s32.totalorder %s102, %s104
    %p111 = scmp.eq.s32.totalorder %s19, 3
    %p112 = por %p110, %p111
    %p113 = scmp.ne.s32.totalorder %s104, %s105
    %p114 = scmp.eq.s32.totalorder %s19, 0
    %p115 = por %p113, %p114
    %p116 = scmp.ne.s32.totalorder %s104, %s105
    %p117 = scmp.eq.s32.totalorder %s20, 3
    %p118 = por %p116, %p117
    %p120 = scmp.ne.s32.totalorder %s105, %s119
    %p121 = scmp.eq.s32.totalorder %s20, 0
    %p122 = por %p120, %p121
    %s124 = sadd.s32 %s123, 1
    %p127 = scmp.eq.s32.totalorder %s14, 3
    %p128 = scmp.ne.s32.totalorder %s123, %s125
    %p129 = scmp.eq.s32.totalorder %s14, 0
    %p130 = por %p128, %p129
    %p131 = scmp.ne.s32.totalorder %s123, %s125
    %p132 = scmp.eq.s32.totalorder %s19, 3
    %p133 = por %p131, %p132
    %p134 = scmp.ne.s32.totalorder %s125, %s126
    %p135 = scmp.eq.s32.totalorder %s19, 0
    %p136 = por %p134, %p135
    %p137 = scmp.ne.s32.totalorder %s125, %s126
    %p138 = scmp.eq.s32.totalorder %s20, 3
    %p139 = por %p137, %p138
    %p141 = scmp.ne.s32.totalorder %s126, %s140
    %p142 = scmp.eq.s32.totalorder %s20, 0
    %p143 = por %p141, %p142
    %s145 = sadd.s32 %s144, 1
    %p148 = scmp.eq.s32.totalorder %s14, 3
    %p149 = scmp.ne.s32.totalorder %s144, %s146
    %p150 = scmp.eq.s32.totalorder %s14, 0
    %p151 = por %p149, %p150
    %p152 = scmp.ne.s32.totalorder %s144, %s146
    %p153 = scmp.eq.s32.totalorder %s19, 3
    %p154 = por %p152, %p153
    %p155 = scmp.ne.s32.totalorder %s146, %s147
    %p156 = scmp.eq.s32.totalorder %s19, 0
    %p157 = por %p155, %p156
    %p158 = scmp.ne.s32.totalorder %s146, %s147
    %p159 = scmp.eq.s32.totalorder %s20, 3
    %p160 = por %p158, %p159
    %p162 = scmp.ne.s32.totalorder %s147, %s161
    %p163 = scmp.eq.s32.totalorder %s20, 0
    %p164 = por %p162, %p163
    %s166 = sadd.s32 %s165, 1
    %p169 = scmp.eq.s32.totalorder %s14, 3
    %p170 = scmp.ne.s32.totalorder %s165, %s167
    %p171 = scmp.eq.s32.totalorder %s14, 0
    %p172 = por %p170, %p171
    %p173 = scmp.ne.s32.totalorder %s165, %s167
    %p174 = scmp.eq.s32.totalorder %s19, 3
    %p175 = por %p173, %p174
    %p176 = scmp.ne.s32.totalorder %s167, %s168
    %p177 = scmp.eq.s32.totalorder %s19, 0
    %p178 = por %p176, %p177
    %p179 = scmp.ne.s32.totalorder %s167, %s168
    %p180 = scmp.eq.s32.totalorder %s20, 3
    %p181 = por %p179, %p180
    %p183 = scmp.ne.s32.totalorder %s168, %s182
    %p184 = scmp.eq.s32.totalorder %s20, 0
    %p185 = por %p183, %p184
    %s187 = sadd.s32 %s186, 1
    %p190 = scmp.eq.s32.totalorder %s14, 3
    %p191 = scmp.ne.s32.totalorder %s186, %s188
    %p192 = scmp.eq.s32.totalorder %s14, 0
    %p193 = por %p191, %p192
    %p194 = scmp.ne.s32.totalorder %s186, %s188
    %p195 = scmp.eq.s32.totalorder %s19, 3
    %p196 = por %p194, %p195
    %p197 = scmp.ne.s32.totalorder %s188, %s189
    %p198 = scmp.eq.s32.totalorder %s19, 0
    %p199 = por %p197, %p198
    %p200 = scmp.ne.s32.totalorder %s188, %s189
    %p201 = scmp.eq.s32.totalorder %s20, 3
    %p202 = por %p200, %p201
    %p204 = scmp.ne.s32.totalorder %s189, %s203
    %p205 = scmp.eq.s32.totalorder %s20, 0
    %p206 = por %p204, %p205
    %s207 = ssub.s32 %s21, %s33
    %s208 = ssub.s32 %s22, %s29
    %s209 = sor.u32 %s207, %s208
    %p210 = scmp.eq.s32.totalorder %s209, 0
    %s212 = sadd.s32 %s211, 1
    %s213 = scalar_select %p210, %s211, %s212
    %p216 = pneg %p210
    %p217 = scmp.eq.s32.totalorder %s14, 3
    %p218 = por %p216, %p217
    %p219 = scmp.ne.s32.totalorder %s211, %s214
    %p220 = scmp.eq.s32.totalorder %s14, 0
    %p221 = por %p219, %p220
    %p222 = scmp.ne.s32.totalorder %s211, %s214
    %p223 = scmp.eq.s32.totalorder %s19, 3
    %p224 = por %p222, %p223
    %p225 = scmp.ne.s32.totalorder %s214, %s215
    %p226 = scmp.eq.s32.totalorder %s19, 0
    %p227 = por %p225, %p226
    %p228 = scmp.ne.s32.totalorder %s214, %s215
    %p229 = scmp.eq.s32.totalorder %s20, 3
    %p230 = por %p228, %p229
    %p232 = scmp.ne.s32.totalorder %s215, %s231
    %p233 = scmp.eq.s32.totalorder %s20, 0
    %p234 = por %p232, %p233
    %p235 = scmp.le.s32.totalorder 1, %s14
    %p236 = scmp.lt.s32.totalorder %s14, 5
    %p237 = pnand %p235, %p236
    %p238 = pneg %p237
    // Predicated region
    $region9: #{tpu_custom_call.1} parent=5 // pred_check
      _
    $region10: #{tpu_custom_call.1} parent=5 // pred_check_branch
      %240 = sbr.rel (%p237) target = $region12
    $region11: #{tpu_custom_call.1} parent=5 // pred_region
      %s241 = ssub.s32 %s14, 1
      // Predicated region
      $region13: #{tpu_custom_call.1} parent=11 // pred_check
        %p242 = pneg %p73
      $region14: #{tpu_custom_call.1} parent=11 // pred_check_branch
        %244 = sbr.rel (%p242) target = $region16
      $region15: #{tpu_custom_call.1} parent=11 // pred_region
        _
      $region16: #{tpu_custom_call.1} parent=11 // pred_fallthru
        _
      // Predicated region
      $region17: #{tpu_custom_call.1} parent=11 // pred_check
        %p245 = pneg %p94
      $region18: #{tpu_custom_call.1} parent=11 // pred_check_branch
        %247 = sbr.rel (%p245) target = $region20
      $region19: #{tpu_custom_call.1} parent=11 // pred_region
        _
      $region20: #{tpu_custom_call.1} parent=11 // pred_fallthru
        _
      // Predicated region
      $region21: #{tpu_custom_call.1} parent=11 // pred_check
        %p248 = pneg %p115
      $region22: #{tpu_custom_call.1} parent=11 // pred_check_branch
        %250 = sbr.rel (%p248) target = $region24
      $region23: #{tpu_custom_call.1} parent=11 // pred_region
        _
      $region24: #{tpu_custom_call.1} parent=11 // pred_fallthru
        _
      // Predicated region
      $region25: #{tpu_custom_call.1} parent=11 // pred_check
        %p251 = pneg %p136
      $region26: #{tpu_custom_call.1} parent=11 // pred_check_branch
        %253 = sbr.rel (%p251) target = $region28
      $region27: #{tpu_custom_call.1} parent=11 // pred_region
        _
      $region28: #{tpu_custom_call.1} parent=11 // pred_fallthru
        _
      // Predicated region
      $region29: #{tpu_custom_call.1} parent=11 // pred_check
        %p254 = pneg %p157
      $region30: #{tpu_custom_call.1} parent=11 // pred_check_branch
        %256 = sbr.rel (%p254) target = $region32
      $region31: #{tpu_custom_call.1} parent=11 // pred_region
        _
      $region32: #{tpu_custom_call.1} parent=11 // pred_fallthru
        _
      // Predicated region
      $region33: #{tpu_custom_call.1} parent=11 // pred_check
        %p257 = pneg %p178
      $region34: #{tpu_custom_call.1} parent=11 // pred_check_branch
        %259 = sbr.rel (%p257) target = $region36
      $region35: #{tpu_custom_call.1} parent=11 // pred_region
        _
      $region36: #{tpu_custom_call.1} parent=11 // pred_fallthru
        _
      // Predicated region
      $region37: #{tpu_custom_call.1} parent=11 // pred_check
        %p260 = pneg %p199
      $region38: #{tpu_custom_call.1} parent=11 // pred_check_branch
        %262 = sbr.rel (%p260) target = $region40
      $region39: #{tpu_custom_call.1} parent=11 // pred_region
        _
      $region40: #{tpu_custom_call.1} parent=11 // pred_fallthru
        _
    $region12: #{tpu_custom_call.1} parent=5 // pred_fallthru
      _
    %p263 = scmp.lt.s32.totalorder %s14, 4
    // Predicated region
    $region41: #{tpu_custom_call.1} parent=5 // pred_check
      %p264 = pneg %p263
    $region42: #{tpu_custom_call.1} parent=5 // pred_check_branch
      %266 = sbr.rel (%p264) target = $region44
    $region43: #{tpu_custom_call.1} parent=5 // pred_region
      // Predicated region
      $region45: #{tpu_custom_call.1} parent=43 // pred_check
        %p267 = pneg %p46
      $region46: #{tpu_custom_call.1} parent=43 // pred_check_branch
        %269 = sbr.rel (%p267) target = $region48
      $region47: #{tpu_custom_call.1} parent=43 // pred_region
        %p270 = scmp.lt.s32.totalorder %s21, 1
        %s271 = scalar_select %p270, %s21, 1
        %s272 = smul.addr %s271, 36
        %s273 = smul.addr %s272, 4
        %s274 = scalar_lea.vmem %s0, %s273
      $region48: #{tpu_custom_call.1} parent=43 // pred_fallthru
        _
    $region44: #{tpu_custom_call.1} parent=5 // pred_fallthru
      _
    %p275 = scmp.le.s32.totalorder 1, %s14
    %p276 = scmp.lt.s32.totalorder %s14, 5
    %p277 = pnand %p275, %p276
    %p278 = pneg %p277
    // Predicated region
    $region49: #{tpu_custom_call.1} parent=5 // pred_check
      _
    $region50: #{tpu_custom_call.1} parent=5 // pred_check_branch
      %280 = sbr.rel (%p277) target = $region52
    $region51: #{tpu_custom_call.1} parent=5 // pred_region
      %s281 = ssub.s32 %s14, 1
      %p282 = scmp.lt.s32.totalorder %s23, 1
      %s283 = scalar_select %p282, %s23, 1
      %s284 = smul.addr %s283, 36
      %s285 = smul.addr %s284, 4
      %s286 = scalar_lea.vmem %s0, %s285
      %p287 = pneg %p52
      %p288 = pneg %p49
      %p289 = pneg %p73
      %p290 = pneg %p70
      %p291 = pneg %p94
      %p292 = pneg %p91
      %p293 = pneg %p115
      %p294 = pneg %p112
      %p295 = pneg %p136
      %p296 = pneg %p133
      %p297 = pneg %p157
      %p298 = pneg %p154
      %p299 = pneg %p178
      %p300 = pneg %p175
      %p301 = pneg %p199
      %p302 = pneg %p196
      %p303 = pneg %p227
      %p304 = pneg %p224
      %s305 = smul.u32 16, %s24
      %p306 = scmp.lt.s32.totalorder %s23, 1
      %s307 = scalar_select %p306, %s23, 1
      %p308 = scmp.lt.s32.totalorder %s305, 31
      %s309 = scalar_select %p308, %s305, 31
      %s310 = smul.addr %s307, 32
      %s311 = sadd.s32 %s309, %s310
      %s312 = smul.addr %s311, 8
      %s313 = scalar_lea.vmem %s8, %s312
      %p314 = scmp.lt.s32.totalorder %s23, 1
      %s315 = scalar_select %p314, %s23, 1
      %s316 = smul.addr %s315, 36
      %s317 = smul.addr %s316, 4
      %s318 = scalar_lea.vmem %s0, %s317
      %s319 = smul.u32 16, %s24
      %p320 = scmp.lt.s32.totalorder %s23, 1
      %s321 = scalar_select %p320, %s23, 1
      %p322 = scmp.lt.s32.totalorder %s319, 31
      %s323 = scalar_select %p322, %s319, 31
      %s324 = smul.addr %s321, 32
      %s325 = sadd.s32 %s323, %s324
      %s326 = smul.addr %s325, 8
      %s327 = scalar_lea.vmem %s8, %s326
      %s328 = smul.u32 16, %s24
      %s330 = smul.u32 %s24, 128
      %s331 = sshra.s32 %s330, 3
      %s332 = sand.u32 %s330, 7
      %s333 = smul.addr %s331, 4
      %s334 = scalar_lea.vmem %s318, %s333
      %v335 = vld [vmem:[%s334] sm:$0xf]
      %v336 = vld [vmem:[%s334 + $0x4] sm:$0xf]
      %v337 = vld [vmem:[%s334 + $0x8] sm:$0xf]
      %v338 = vld [vmem:[%s334 + $0xc] sm:$0xf]
      %v339 = vld [vmem:[%s334 + $0x10] sm:$0xf]
      %v340 = vld [vmem:[%s334 + $0x14] sm:$0xf]
      %v341 = vld [vmem:[%s334 + $0x18] sm:$0xf]
      %v342 = vld [vmem:[%s334 + $0x1c] sm:$0xf]
      %v343 = vld [vmem:[%s334 + $0x20] sm:$0xf]
      %v344 = vld [vmem:[%s334 + $0x24] sm:$0xf]
      %v345 = vld [vmem:[%s334 + $0x28] sm:$0xf]
      %v346 = vld [vmem:[%s334 + $0x2c] sm:$0xf]
      %v347 = vld [vmem:[%s334 + $0x30] sm:$0xf]
      %v348 = vld [vmem:[%s334 + $0x34] sm:$0xf]
      %v349 = vld [vmem:[%s334 + $0x38] sm:$0xf]
      %v350 = vld [vmem:[%s334 + $0x3c] sm:$0xf]
      %v351 = vld [vmem:[%s334 + $0x40] sm:$0xf]
      %v352 = vld [vmem:[%s334 + $0x44] sm:$0xf]
      %v353 = vld [vmem:[%s334 + $0x48] sm:$0xf]
      %v354 = vld [vmem:[%s334 + $0x4c] sm:$0xf]
      %v355 = vld [vmem:[%s1] sm:$0xf]
      %v356 = vld [vmem:[%s2] sm:$0x1]
      %v358 = vlaneseq
      %v359 = vshrl.u32 %v358, 7
      %v360 = vsub.s32 0, %v359
      %v361 = vrot.slane %v356, %v360
      %v383 = vunpack.c.l.b16 %v335
      %v384 = vunpack.c.l.b16 %v336
      %v385 = vunpack.c.l.b16 %v337
      %v386 = vunpack.c.l.b16 %v338
      %v387 = vunpack.c.l.b16 %v339
      %v388 = vunpack.c.l.b16 %v340
      %v389 = vunpack.c.l.b16 %v341
      %v390 = vunpack.c.l.b16 %v342
      %v391 = vunpack.c.l.b16 %v343
      %v392 = vunpack.c.l.b16 %v344
      %v393 = vunpack.c.l.b16 %v345
      %v394 = vunpack.c.l.b16 %v346
      %v395 = vunpack.c.l.b16 %v347
      %v396 = vunpack.c.l.b16 %v348
      %v397 = vunpack.c.l.b16 %v349
      %v398 = vunpack.c.l.b16 %v350
      %v399 = vunpack.c.l.b16 %v351
      %v400 = vunpack.c.l.b16 %v352
      %v401 = vunpack.c.l.b16 %v353
      %v402 = vunpack.c.l.b16 %v354
      %v403 = vpack.c.b16 %v384, %v383
      %v404 = vpack.c.b16 %v386, %v385
      %v405 = vpack.c.b16 %v388, %v387
      %v406 = vpack.c.b16 %v390, %v389
      %v407 = vpack.c.b16 %v392, %v391
      %v408 = vpack.c.b16 %v394, %v393
      %v409 = vpack.c.b16 %v396, %v395
      %v410 = vpack.c.b16 %v398, %v397
      %v411 = vpack.c.b16 %v400, %v399
      %v412 = vpack.c.b16 %v402, %v401
      %vm413 = vcmask 64512
      %v415 = vsel %vm413, %v403, 0
      %v418 = vsel %vm413, %v404, 0
      %v421 = vsel %vm413, %v405, 0
      %v424 = vsel %vm413, %v406, 0
      %v427 = vsel %vm413, %v407, 0
      %v430 = vsel %vm413, %v408, 0
      %v433 = vsel %vm413, %v409, 0
      %v436 = vsel %vm413, %v410, 0
      %v439 = vsel %vm413, %v411, 0
      %v442 = vsel %vm413, %v412, 0
      %vm444 = vcmask 1043456
      %v446 = vsel %vm444, %v355, 0
      %448 = vmatprep.subr.bf16.mxu0 0
      %449 = vmatpush1.bf16.msra.mxu0 %v446
      %450 = vmatprep.subr.bf16.mxu0 0
      %451 = vmatpush1.bf16.msra.mxu0 0
      %452 = vmatprep.subr.bf16.mxu0 0
      %453 = vmatpush1.bf16.msra.mxu0 0
      %454 = vmatprep.subr.bf16.mxu0 0
      %455 = vmatpush1.bf16.msra.mxu0 0
      %456 = vmatprep.subr.bf16.mxu0 0
      %457 = vmatpush1.bf16.msra.mxu0 0
      %458 = vmatprep.subr.bf16.mxu0 0
      %459 = vmatpush1.bf16.msra.mxu0 0
      %460 = vmatprep.subr.bf16.mxu0 0
      %461 = vmatpush1.bf16.msra.mxu0 0
      %462 = vmatprep.subr.bf16.mxu0 0
      %463 = vmatpush1.bf16.msra.mxu0 0
      %464 = vmatprep.subr.bf16.mxu0 0
      %465 = vmatpush1.bf16.msra.mxu0 0
      %466 = vmatprep.subr.bf16.mxu0 0
      %467 = vmatpush1.bf16.msra.mxu0 0
      %468 = vmatprep.subr.bf16.mxu0 0
      %469 = vmatpush1.bf16.msra.mxu0 0
      %470 = vmatprep.subr.bf16.mxu0 0
      %471 = vmatpush1.bf16.msra.mxu0 0
      %472 = vmatprep.subr.bf16.mxu0 0
      %473 = vmatpush1.bf16.msra.mxu0 0
      %474 = vmatprep.subr.bf16.mxu0 0
      %475 = vmatpush1.bf16.msra.mxu0 0
      %476 = vmatprep.subr.bf16.mxu0 0
      %477 = vmatpush1.bf16.msra.mxu0 0
      %478 = vmatprep.subr.bf16.mxu0 0
      %479 = vmatpush1.bf16.msra.mxu0 0
      %480 = vmatprep.mubr.bf16.mxu0 0
      %481 = vmatmul.mubr.bf16.gmra.mrb[0].mxu0 %v415
      %v482 = vpop.f32.mrb[0].mxu0
      %v483 = vadd.f32 %v361, %v482
      %v484 = vpop.f32.mrb[0].mxu0
      %v485 = vpop.f32.mrb[0].mxu0
      %v486 = vadd.f32 %v361, %v485
      %v487 = vpop.f32.mrb[0].mxu0
      %488 = vmatprep.mubr.bf16.mxu0 0
      %489 = vmatmul.mubr.bf16.gmra.mrb[0].mxu0 %v418
      %v490 = vpop.f32.mrb[0].mxu0
      %v491 = vadd.f32 %v361, %v490
      %v492 = vpop.f32.mrb[0].mxu0
      %v493 = vpop.f32.mrb[0].mxu0
      %v494 = vadd.f32 %v361, %v493
      %v495 = vpop.f32.mrb[0].mxu0
      %496 = vmatprep.mubr.bf16.mxu0 0
      %497 = vmatmul.mubr.bf16.gmra.mrb[0].mxu0 %v421
      %v498 = vpop.f32.mrb[0].mxu0
      %v499 = vadd.f32 %v361, %v498
      %v500 = vpop.f32.mrb[0].mxu0
      %v501 = vpop.f32.mrb[0].mxu0
      %v502 = vadd.f32 %v361, %v501
      %v503 = vpop.f32.mrb[0].mxu0
      %504 = vmatprep.mubr.bf16.mxu0 0
      %505 = vmatmul.mubr.bf16.gmra.mrb[0].mxu0 %v424
      %v506 = vpop.f32.mrb[0].mxu0
      %v507 = vadd.f32 %v361, %v506
      %v508 = vpop.f32.mrb[0].mxu0
      %v509 = vpop.f32.mrb[0].mxu0
      %v510 = vadd.f32 %v361, %v509
      %v511 = vpop.f32.mrb[0].mxu0
      %512 = vmatprep.mubr.bf16.mxu0 0
      %513 = vmatmul.mubr.bf16.gmra.mrb[0].mxu0 %v427
      %v514 = vpop.f32.mrb[0].mxu0
      %v515 = vadd.f32 %v361, %v514
      %v516 = vpop.f32.mrb[0].mxu0
      %v517 = vpop.f32.mrb[0].mxu0
      %v518 = vadd.f32 %v361, %v517
      %v519 = vpop.f32.mrb[0].mxu0
      %520 = vmatprep.mubr.bf16.mxu0 0
      %521 = vmatmul.mubr.bf16.gmra.mrb[0].mxu0 %v430
      %v522 = vpop.f32.mrb[0].mxu0
      %v523 = vadd.f32 %v361, %v522
      %v524 = vpop.f32.mrb[0].mxu0
      %v525 = vpop.f32.mrb[0].mxu0
      %v526 = vadd.f32 %v361, %v525
      %v527 = vpop.f32.mrb[0].mxu0
      %528 = vmatprep.mubr.bf16.mxu0 0
      %529 = vmatmul.mubr.bf16.gmra.mrb[0].mxu0 %v433
      %v530 = vpop.f32.mrb[0].mxu0
      %v531 = vadd.f32 %v361, %v530
      %v532 = vpop.f32.mrb[0].mxu0
      %v533 = vpop.f32.mrb[0].mxu0
      %v534 = vadd.f32 %v361, %v533
      %v535 = vpop.f32.mrb[0].mxu0
      %536 = vmatprep.mubr.bf16.mxu0 0
      %537 = vmatmul.mubr.bf16.gmra.mrb[0].mxu0 %v436
      %v538 = vpop.f32.mrb[0].mxu0
      %v539 = vadd.f32 %v361, %v538
      %v540 = vpop.f32.mrb[0].mxu0
      %v541 = vpop.f32.mrb[0].mxu0
      %v542 = vadd.f32 %v361, %v541
      %v543 = vpop.f32.mrb[0].mxu0
      %544 = vmatprep.mubr.bf16.mxu0 0
      %545 = vmatmul.mubr.bf16.gmra.mrb[0].mxu0 %v439
      %v546 = vpop.f32.mrb[0].mxu0
      %v547 = vadd.f32 %v361, %v546
      %v548 = vpop.f32.mrb[0].mxu0
      %v549 = vpop.f32.mrb[0].mxu0
      %v550 = vadd.f32 %v361, %v549
      %v551 = vpop.f32.mrb[0].mxu0
      %552 = vmatprep.mubr.bf16.mxu0 0
      %553 = vmatmul.mubr.bf16.gmra.mrb[0].mxu0 %v442
      %v554 = vpop.f32.mrb[0].mxu0
      %v555 = vadd.f32 %v361, %v554
      %v556 = vpop.f32.mrb[0].mxu0
      %v557 = vpop.f32.mrb[0].mxu0
      %v558 = vadd.f32 %v361, %v557
      %v559 = vpop.f32.mrb[0].mxu0
      %560 = vdwg.mxu0
      %v561 = vmax.f32 %v483, 0.0
      %v562 = vmax.f32 %v486, 0.0
      %v563 = vmax.f32 %v491, 0.0
      %v564 = vmax.f32 %v494, 0.0
      %v565 = vmax.f32 %v499, 0.0
      %v566 = vmax.f32 %v502, 0.0
      %v567 = vmax.f32 %v507, 0.0
      %v568 = vmax.f32 %v510, 0.0
      %v569 = vmax.f32 %v515, 0.0
      %v570 = vmax.f32 %v518, 0.0
      %v571 = vmax.f32 %v523, 0.0
      %v572 = vmax.f32 %v526, 0.0
      %v573 = vmax.f32 %v531, 0.0
      %v574 = vmax.f32 %v534, 0.0
      %v575 = vmax.f32 %v539, 0.0
      %v576 = vmax.f32 %v542, 0.0
      %v577 = vmax.f32 %v547, 0.0
      %v578 = vmax.f32 %v550, 0.0
      %v579 = vmax.f32 %v555, 0.0
      %v580 = vmax.f32 %v558, 0.0
      %v581 = vpack.c.bf16 %v562, %v561
      %v582 = vpack.c.bf16 %v564, %v563
      %v583 = vpack.c.bf16 %v566, %v565
      %v584 = vpack.c.bf16 %v568, %v567
      %v585 = vpack.c.bf16 %v570, %v569
      %v586 = vpack.c.bf16 %v572, %v571
      %v587 = vpack.c.bf16 %v574, %v573
      %v588 = vpack.c.bf16 %v576, %v575
      %v589 = vpack.c.bf16 %v578, %v577
      %v590 = vpack.c.bf16 %v580, %v579
      %vm591 = vcmask 27651
      %vm592 = vsmask.f32 7950
      %vm593 = vmand %vm591, %vm592
      %v594 = vld [vmem:[#allocation2 + $0x4] sm:$0x8]
      %v595 = vsel %vm593, 0, %v594
      %596 = vst [vmem:[#allocation2 + $0x4] sm:$0x8] %v595
      %v597 = vld [vmem:[#allocation2 + $0x18] sm:$0x8]
      %v598 = vsel %vm593, 0, %v597
      %599 = vst [vmem:[#allocation2 + $0x18] sm:$0x8] %v598
      %v600 = vld [vmem:[#allocation2 + $0x2c] sm:$0x8]
      %v601 = vsel %vm593, 0, %v600
      %602 = vst [vmem:[#allocation2 + $0x2c] sm:$0x8] %v601
      %v603 = vld [vmem:[#allocation2 + $0x40] sm:$0x8]
      %v604 = vsel %vm593, 0, %v603
      %605 = vst [vmem:[#allocation2 + $0x40] sm:$0x8] %v604
      %v606 = vld [vmem:[#allocation2 + $0x54] sm:$0x8]
      %v607 = vsel %vm593, 0, %v606
      %608 = vst [vmem:[#allocation2 + $0x54] sm:$0x8] %v607
      %v609 = vld [vmem:[#allocation2 + $0x68] sm:$0x8]
      %v610 = vsel %vm593, 0, %v609
      %611 = vst [vmem:[#allocation2 + $0x68] sm:$0x8] %v610
      %v612 = vld [vmem:[#allocation2 + $0x7c] sm:$0x8]
      %v613 = vsel %vm593, 0, %v612
      %614 = vst [vmem:[#allocation2 + $0x7c] sm:$0x8] %v613
      %v615 = vld [vmem:[#allocation2 + $0x90] sm:$0x8]
      %v616 = vsel %vm593, 0, %v615
      %617 = vst [vmem:[#allocation2 + $0x90] sm:$0x8] %v616
      %v618 = vld [vmem:[#allocation2 + $0xa4] sm:$0x8]
      %v619 = vsel %vm593, 0, %v618
      %620 = vst [vmem:[#allocation2 + $0xa4] sm:$0x8] %v619
      %v621 = vld [vmem:[#allocation2 + $0xb8] sm:$0x8]
      %v622 = vsel %vm593, 0, %v621
      %623 = vst [vmem:[#allocation2 + $0xb8] sm:$0x8] %v622
      %vm624 = vcmask 24576
      %vm625 = vsmask.f32 256
      %vm626 = vmand %vm624, %vm625
      %v627 = vld [vmem:[#allocation2 + $0x10] sm:$0x1]
      %v628 = vsel %vm626, 0, %v627
      %629 = vst [vmem:[#allocation2 + $0x10] sm:$0x1] %v628
      %v630 = vld [vmem:[#allocation2 + $0x24] sm:$0x1]
      %v631 = vsel %vm626, 0, %v630
      %632 = vst [vmem:[#allocation2 + $0x24] sm:$0x1] %v631
      %v633 = vld [vmem:[#allocation2 + $0x38] sm:$0x1]
      %v634 = vsel %vm626, 0, %v633
      %635 = vst [vmem:[#allocation2 + $0x38] sm:$0x1] %v634
      %v636 = vld [vmem:[#allocation2 + $0x4c] sm:$0x1]
      %v637 = vsel %vm626, 0, %v636
      %638 = vst [vmem:[#allocation2 + $0x4c] sm:$0x1] %v637
      %v639 = vld [vmem:[#allocation2 + $0x60] sm:$0x1]
      %v640 = vsel %vm626, 0, %v639
      %641 = vst [vmem:[#allocation2 + $0x60] sm:$0x1] %v640
      %v642 = vld [vmem:[#allocation2 + $0x74] sm:$0x1]
      %v643 = vsel %vm626, 0, %v642
      %644 = vst [vmem:[#allocation2 + $0x74] sm:$0x1] %v643
      %v645 = vld [vmem:[#allocation2 + $0x88] sm:$0x1]
      %v646 = vsel %vm626, 0, %v645
      %647 = vst [vmem:[#allocation2 + $0x88] sm:$0x1] %v646
      %v648 = vld [vmem:[#allocation2 + $0x9c] sm:$0x1]
      %v649 = vsel %vm626, 0, %v648
      %650 = vst [vmem:[#allocation2 + $0x9c] sm:$0x1] %v649
      %v651 = vld [vmem:[#allocation2 + $0xb0] sm:$0x1]
      %v652 = vsel %vm626, 0, %v651
      %653 = vst [vmem:[#allocation2 + $0xb0] sm:$0x1] %v652
      %v654 = vld [vmem:[#allocation2 + $0xc4] sm:$0x1]
      %v655 = vsel %vm626, 0, %v654
      %656 = vst [vmem:[#allocation2 + $0xc4] sm:$0x1] %v655
      %v667 = vunpack.c.l.b16 %v581
      %v668 = vunpack.c.h.b16 %v581
      %v669 = vunpack.c.l.b16 %v582
      %v670 = vunpack.c.h.b16 %v582
      %v671 = vunpack.c.l.b16 %v583
      %v672 = vunpack.c.h.b16 %v583
      %v673 = vunpack.c.l.b16 %v584
      %v674 = vunpack.c.h.b16 %v584
      %v675 = vunpack.c.l.b16 %v585
      %v676 = vunpack.c.h.b16 %v585
      %v677 = vunpack.c.l.b16 %v586
      %v678 = vunpack.c.h.b16 %v586
      %v679 = vunpack.c.l.b16 %v587
      %v680 = vunpack.c.h.b16 %v587
      %v681 = vunpack.c.l.b16 %v588
      %v682 = vunpack.c.h.b16 %v588
      %v683 = vunpack.c.l.b16 %v589
      %v684 = vunpack.c.h.b16 %v589
      %v685 = vunpack.c.l.b16 %v590
      %v686 = vunpack.c.h.b16 %v590
      %v687 = vpack.c.b16 %v667, %v667
      %v688 = vpack.c.b16 %v668, %v668
      %v689 = vpack.c.b16 %v669, %v669
      %v690 = vpack.c.b16 %v670, %v670
      %v691 = vpack.c.b16 %v671, %v671
      %v692 = vpack.c.b16 %v672, %v672
      %v693 = vpack.c.b16 %v673, %v673
      %v694 = vpack.c.b16 %v674, %v674
      %v695 = vpack.c.b16 %v675, %v675
      %v696 = vpack.c.b16 %v676, %v676
      %v697 = vpack.c.b16 %v677, %v677
      %v698 = vpack.c.b16 %v678, %v678
      %v699 = vpack.c.b16 %v679, %v679
      %v700 = vpack.c.b16 %v680, %v680
      %v701 = vpack.c.b16 %v681, %v681
      %v702 = vpack.c.b16 %v682, %v682
      %v703 = vpack.c.b16 %v683, %v683
      %v704 = vpack.c.b16 %v684, %v684
      %v705 = vpack.c.b16 %v685, %v685
      %v706 = vpack.c.b16 %v686, %v686
      %vm727 = vcmask 27648
      %728 = vst.msk [vmem:[#allocation2 + $0x8] sm:$0xf] %vm727, %v687
      %729 = vst.msk [vmem:[#allocation2 + $0xc] sm:$0xf] %vm727, %v688
      %730 = vst.msk [vmem:[#allocation2 + $0x1c] sm:$0xf] %vm727, %v689
      %731 = vst.msk [vmem:[#allocation2 + $0x20] sm:$0xf] %vm727, %v690
      %732 = vst.msk [vmem:[#allocation2 + $0x30] sm:$0xf] %vm727, %v691
      %733 = vst.msk [vmem:[#allocation2 + $0x34] sm:$0xf] %vm727, %v692
      %734 = vst.msk [vmem:[#allocation2 + $0x44] sm:$0xf] %vm727, %v693
      %735 = vst.msk [vmem:[#allocation2 + $0x48] sm:$0xf] %vm727, %v694
      %736 = vst.msk [vmem:[#allocation2 + $0x58] sm:$0xf] %vm727, %v695
      %737 = vst.msk [vmem:[#allocation2 + $0x5c] sm:$0xf] %vm727, %v696
      %738 = vst.msk [vmem:[#allocation2 + $0x6c] sm:$0xf] %vm727, %v697
      %739 = vst.msk [vmem:[#allocation2 + $0x70] sm:$0xf] %vm727, %v698
      %740 = vst.msk [vmem:[#allocation2 + $0x80] sm:$0xf] %vm727, %v699
      %741 = vst.msk [vmem:[#allocation2 + $0x84] sm:$0xf] %vm727, %v700
      %742 = vst.msk [vmem:[#allocation2 + $0x94] sm:$0xf] %vm727, %v701
      %743 = vst.msk [vmem:[#allocation2 + $0x98] sm:$0xf] %vm727, %v702
      %744 = vst.msk [vmem:[#allocation2 + $0xa8] sm:$0xf] %vm727, %v703
      %745 = vst.msk [vmem:[#allocation2 + $0xac] sm:$0xf] %vm727, %v704
      %746 = vst.msk [vmem:[#allocation2 + $0xbc] sm:$0xf] %vm727, %v705
      %747 = vst.msk [vmem:[#allocation2 + $0xc0] sm:$0xf] %vm727, %v706
      %p748 = scmp.eq.s32.totalorder %s24, 0
      // Predicated region
      $region53: #{tpu_custom_call.1} parent=51 // pred_check
        %p749 = pneg %p748
      $region54: #{tpu_custom_call.1} parent=51 // pred_check_branch
        %751 = sbr.rel (%p749) target = $region56
      $region55: #{tpu_custom_call.1} parent=51 // pred_region
        %752 = vst.msk [vmem:[#allocation2 + $0x8] sm:$0xf] %vm727, 0
        %753 = vst.msk [vmem:[#allocation2 + $0xc] sm:$0xf] %vm727, 0
      $region56: #{tpu_custom_call.1} parent=51 // pred_fallthru
        _
      %p754 = scmp.eq.s32.totalorder %s24, 1
      // Predicated region
      $region57: #{tpu_custom_call.1} parent=51 // pred_check
        %p755 = pneg %p754
      $region58: #{tpu_custom_call.1} parent=51 // pred_check_branch
        %757 = sbr.rel (%p755) target = $region60
      $region59: #{tpu_custom_call.1} parent=51 // pred_region
        %s758 = scalar_lea.vmem [#allocation2], 180
        %759 = vst.msk [vmem:[%s758 + $0x8] sm:$0xf] %vm727, 0
        %760 = vst.msk [vmem:[%s758 + $0xc] sm:$0xf] %vm727, 0
      $region60: #{tpu_custom_call.1} parent=51 // pred_fallthru
        _
      %v761 = vld [vmem:[#allocation2 + $0x4] sm:$0x8]
      %v762 = vld [vmem:[#allocation2 + $0x8] sm:$0xf]
      %v763 = vld [vmem:[#allocation2 + $0xc] sm:$0xf]
      %v764 = vld [vmem:[#allocation2 + $0x18] sm:$0x8]
      %v765 = vld [vmem:[#allocation2 + $0x1c] sm:$0xf]
      %v766 = vld [vmem:[#allocation2 + $0x20] sm:$0xf]
      %v767 = vld [vmem:[#allocation2 + $0x2c] sm:$0x8]
      %v768 = vld [vmem:[#allocation2 + $0x30] sm:$0xf]
      %v769 = vld [vmem:[#allocation2 + $0x34] sm:$0xf]
      %v770 = vld [vmem:[#allocation2 + $0x40] sm:$0x8]
      %v771 = vld [vmem:[#allocation2 + $0x44] sm:$0xf]
      %v772 = vld [vmem:[#allocation2 + $0x48] sm:$0xf]
      %v773 = vld [vmem:[#allocation2 + $0x54] sm:$0x8]
      %v774 = vld [vmem:[#allocation2 + $0x58] sm:$0xf]
      %v775 = vld [vmem:[#allocation2 + $0x5c] sm:$0xf]
      %v776 = vld [vmem:[#allocation2 + $0x68] sm:$0x8]
      %v777 = vld [vmem:[#allocation2 + $0x6c] sm:$0xf]
      %v778 = vld [vmem:[#allocation2 + $0x70] sm:$0xf]
      %v779 = vld [vmem:[#allocation2 + $0x7c] sm:$0x8]
      %v780 = vld [vmem:[#allocation2 + $0x80] sm:$0xf]
      %v781 = vld [vmem:[#allocation2 + $0x84] sm:$0xf]
      %v782 = vld [vmem:[#allocation2 + $0x90] sm:$0x8]
      %v783 = vld [vmem:[#allocation2 + $0x94] sm:$0xf]
      %v784 = vld [vmem:[#allocation2 + $0x98] sm:$0xf]
      %vm785 = vsmask.f32 4368
      %vm786 = vmor %vm625, %vm785
      %v788 = vshrl.u32 %v761, 16
      %v790 = vrot.slane %v788, 7
      %v791 = vrot.slane %v790, 4
      %v793 = vshrl.u32 %v762, 16
      %v795 = vrot.slane %v793, 7
      %v796 = vshll.u32 %v762, 16
      %v798 = vor.u32 %v795, %v796
      %v799 = vsel %vm786, %v791, %v798
      %v800 = vrot.slane %v795, 4
      %v802 = vshrl.u32 %v763, 16
      %v804 = vrot.slane %v802, 7
      %v805 = vshll.u32 %v763, 16
      %v807 = vor.u32 %v804, %v805
      %v808 = vsel %vm786, %v800, %v807
      %v810 = vshrl.u32 %v764, 16
      %v812 = vrot.slane %v810, 7
      %v813 = vrot.slane %v812, 4
      %v815 = vshrl.u32 %v765, 16
      %v817 = vrot.slane %v815, 7
      %v818 = vshll.u32 %v765, 16
      %v820 = vor.u32 %v817, %v818
      %v821 = vsel %vm786, %v813, %v820
      %v822 = vrot.slane %v817, 4
      %v824 = vshrl.u32 %v766, 16
      %v826 = vrot.slane %v824, 7
      %v827 = vshll.u32 %v766, 16
      %v829 = vor.u32 %v826, %v827
      %v830 = vsel %vm786, %v822, %v829
      %v832 = vshrl.u32 %v767, 16
      %v834 = vrot.slane %v832, 7
      %v835 = vrot.slane %v834, 4
      %v837 = vshrl.u32 %v768, 16
      %v839 = vrot.slane %v837, 7
      %v840 = vshll.u32 %v768, 16
      %v842 = vor.u32 %v839, %v840
      %v843 = vsel %vm786, %v835, %v842
      %v844 = vrot.slane %v839, 4
      %v846 = vshrl.u32 %v769, 16
      %v848 = vrot.slane %v846, 7
      %v849 = vshll.u32 %v769, 16
      %v851 = vor.u32 %v848, %v849
      %v852 = vsel %vm786, %v844, %v851
      %v854 = vshrl.u32 %v770, 16
      %v856 = vrot.slane %v854, 7
      %v857 = vrot.slane %v856, 4
      %v859 = vshrl.u32 %v771, 16
      %v861 = vrot.slane %v859, 7
      %v862 = vshll.u32 %v771, 16
      %v864 = vor.u32 %v861, %v862
      %v865 = vsel %vm786, %v857, %v864
      %v866 = vrot.slane %v861, 4
      %v868 = vshrl.u32 %v772, 16
      %v870 = vrot.slane %v868, 7
      %v871 = vshll.u32 %v772, 16
      %v873 = vor.u32 %v870, %v871
      %v874 = vsel %vm786, %v866, %v873
      %v876 = vshrl.u32 %v773, 16
      %v878 = vrot.slane %v876, 7
      %v879 = vrot.slane %v878, 4
      %v881 = vshrl.u32 %v774, 16
      %v883 = vrot.slane %v881, 7
      %v884 = vshll.u32 %v774, 16
      %v886 = vor.u32 %v883, %v884
      %v887 = vsel %vm786, %v879, %v886
      %v888 = vrot.slane %v883, 4
      %v890 = vshrl.u32 %v775, 16
      %v892 = vrot.slane %v890, 7
      %v893 = vshll.u32 %v775, 16
      %v895 = vor.u32 %v892, %v893
      %v896 = vsel %vm786, %v888, %v895
      %v898 = vshrl.u32 %v776, 16
      %v900 = vrot.slane %v898, 7
      %v901 = vrot.slane %v900, 4
      %v903 = vshrl.u32 %v777, 16
      %v905 = vrot.slane %v903, 7
      %v906 = vshll.u32 %v777, 16
      %v908 = vor.u32 %v905, %v906
      %v909 = vsel %vm786, %v901, %v908
      %v910 = vrot.slane %v905, 4
      %v912 = vshrl.u32 %v778, 16
      %v914 = vrot.slane %v912, 7
      %v915 = vshll.u32 %v778, 16
      %v917 = vor.u32 %v914, %v915
      %v918 = vsel %vm786, %v910, %v917
      %v920 = vshrl.u32 %v779, 16
      %v922 = vrot.slane %v920, 7
      %v923 = vrot.slane %v922, 4
      %v925 = vshrl.u32 %v780, 16
      %v927 = vrot.slane %v925, 7
      %v928 = vshll.u32 %v780, 16
      %v930 = vor.u32 %v927, %v928
      %v931 = vsel %vm786, %v923, %v930
      %v932 = vrot.slane %v927, 4
      %v934 = vshrl.u32 %v781, 16
      %v936 = vrot.slane %v934, 7
      %v937 = vshll.u32 %v781, 16
      %v939 = vor.u32 %v936, %v937
      %v940 = vsel %vm786, %v932, %v939
      %v942 = vshrl.u32 %v782, 16
      %v944 = vrot.slane %v942, 7
      %v945 = vrot.slane %v944, 4
      %v947 = vshrl.u32 %v783, 16
      %v949 = vrot.slane %v947, 7
      %v950 = vshll.u32 %v783, 16
      %v952 = vor.u32 %v949, %v950
      %v953 = vsel %vm786, %v945, %v952
      %v954 = vrot.slane %v949, 4
      %v956 = vshrl.u32 %v784, 16
      %v958 = vrot.slane %v956, 7
      %v959 = vshll.u32 %v784, 16
      %v961 = vor.u32 %v958, %v959
      %v962 = vsel %vm786, %v954, %v961
      %v963 = vld [vmem:[%s3] sm:$0x3]
      %s964 = scalar_lea.vmem %s3, 2
      %v965 = vld [vmem:[%s964] sm:$0x3]
      %v982 = vunpack.c.l.b16 %v762
      %v983 = vunpack.c.l.b16 %v763
      %v984 = vunpack.c.l.b16 %v765
      %v985 = vunpack.c.l.b16 %v766
      %v986 = vunpack.c.l.b16 %v768
      %v987 = vunpack.c.l.b16 %v769
      %v988 = vunpack.c.l.b16 %v771
      %v989 = vunpack.c.l.b16 %v772
      %v990 = vunpack.c.l.b16 %v774
      %v991 = vunpack.c.l.b16 %v775
      %v992 = vunpack.c.l.b16 %v777
      %v993 = vunpack.c.l.b16 %v778
      %v994 = vunpack.c.l.b16 %v780
      %v995 = vunpack.c.l.b16 %v781
      %v996 = vunpack.c.l.b16 %v783
      %v997 = vunpack.c.l.b16 %v784
      %v998 = vpack.c.b16 %v983, %v982
      %v999 = vpack.c.b16 %v985, %v984
      %v1000 = vpack.c.b16 %v987, %v986
      %v1001 = vpack.c.b16 %v989, %v988
      %v1002 = vpack.c.b16 %v991, %v990
      %v1003 = vpack.c.b16 %v993, %v992
      %v1004 = vpack.c.b16 %v995, %v994
      %v1005 = vpack.c.b16 %v997, %v996
      %vm1006 = vcmask 31744
      %v1008 = vsel %vm1006, %v998, 0
      %v1011 = vsel %vm1006, %v999, 0
      %v1014 = vsel %vm1006, %v1000, 0
      %v1017 = vsel %vm1006, %v1001, 0
      %v1020 = vsel %vm1006, %v1002, 0
      %v1023 = vsel %vm1006, %v1003, 0
      %v1026 = vsel %vm1006, %v1004, 0
      %v1029 = vsel %vm1006, %v1005, 0
      %vm1031 = vcmask 1041408
      %v1033 = vsel %vm1031, %v965, 0
      %1035 = vmatprep.subr.bf16.mxu0 0
      %1036 = vmatpush1.bf16.msra.mxu0 %v1033
      %1037 = vmatprep.subr.bf16.mxu0 0
      %1038 = vmatpush1.bf16.msra.mxu0 0
      %1039 = vmatprep.subr.bf16.mxu0 0
      %1040 = vmatpush1.bf16.msra.mxu0 0
      %1041 = vmatprep.subr.bf16.mxu0 0
      %1042 = vmatpush1.bf16.msra.mxu0 0
      %1043 = vmatprep.subr.bf16.mxu0 0
      %1044 = vmatpush1.bf16.msra.mxu0 0
      %1045 = vmatprep.subr.bf16.mxu0 0
      %1046 = vmatpush1.bf16.msra.mxu0 0
      %1047 = vmatprep.subr.bf16.mxu0 0
      %1048 = vmatpush1.bf16.msra.mxu0 0
      %1049 = vmatprep.subr.bf16.mxu0 0
      %1050 = vmatpush1.bf16.msra.mxu0 0
      %1051 = vmatprep.subr.bf16.mxu0 0
      %1052 = vmatpush1.bf16.msra.mxu0 0
      %1053 = vmatprep.subr.bf16.mxu0 0
      %1054 = vmatpush1.bf16.msra.mxu0 0
      %1055 = vmatprep.subr.bf16.mxu0 0
      %1056 = vmatpush1.bf16.msra.mxu0 0
      %1057 = vmatprep.subr.bf16.mxu0 0
      %1058 = vmatpush1.bf16.msra.mxu0 0
      %1059 = vmatprep.subr.bf16.mxu0 0
      %1060 = vmatpush1.bf16.msra.mxu0 0
      %1061 = vmatprep.subr.bf16.mxu0 0
      %1062 = vmatpush1.bf16.msra.mxu0 0
      %1063 = vmatprep.subr.bf16.mxu0 0
      %1064 = vmatpush1.bf16.msra.mxu0 0
      %1065 = vmatprep.subr.bf16.mxu0 0
      %1066 = vmatpush1.bf16.msra.mxu0 0
      %1067 = vmatprep.mubr.bf16.mxu0 0
      %1068 = vmatmul.mubr.bf16.gmra.mrb[0].mxu0 %v1008
      %v1069 = vpop.f32.mrb[0].mxu0
      %v1070 = vadd.f32 0.0, %v1069
      %v1071 = vpop.f32.mrb[0].mxu0
      %v1072 = vpop.f32.mrb[0].mxu0
      %v1073 = vadd.f32 0.0, %v1072
      %v1074 = vpop.f32.mrb[0].mxu0
      %1075 = vmatprep.mubr.bf16.mxu0 0
      %1076 = vmatmul.mubr.bf16.gmra.mrb[0].mxu0 %v1011
      %v1077 = vpop.f32.mrb[0].mxu0
      %v1078 = vadd.f32 0.0, %v1077
      %v1079 = vpop.f32.mrb[0].mxu0
      %v1080 = vpop.f32.mrb[0].mxu0
      %v1081 = vadd.f32 0.0, %v1080
      %v1082 = vpop.f32.mrb[0].mxu0
      %1083 = vmatprep.mubr.bf16.mxu0 0
      %1084 = vmatmul.mubr.bf16.gmra.mrb[0].mxu0 %v1014
      %v1085 = vpop.f32.mrb[0].mxu0
      %v1086 = vadd.f32 0.0, %v1085
      %v1087 = vpop.f32.mrb[0].mxu0
      %v1088 = vpop.f32.mrb[0].mxu0
      %v1089 = vadd.f32 0.0, %v1088
      %v1090 = vpop.f32.mrb[0].mxu0
      %1091 = vmatprep.mubr.bf16.mxu0 0
      %1092 = vmatmul.mubr.bf16.gmra.mrb[0].mxu0 %v1017
      %v1093 = vpop.f32.mrb[0].mxu0
      %v1094 = vadd.f32 0.0, %v1093
      %v1095 = vpop.f32.mrb[0].mxu0
      %v1096 = vpop.f32.mrb[0].mxu0
      %v1097 = vadd.f32 0.0, %v1096
      %v1098 = vpop.f32.mrb[0].mxu0
      %1099 = vmatprep.mubr.bf16.mxu0 0
      %1100 = vmatmul.mubr.bf16.gmra.mrb[0].mxu0 %v1020
      %v1101 = vpop.f32.mrb[0].mxu0
      %v1102 = vadd.f32 0.0, %v1101
      %v1103 = vpop.f32.mrb[0].mxu0
      %v1104 = vpop.f32.mrb[0].mxu0
      %v1105 = vadd.f32 0.0, %v1104
      %v1106 = vpop.f32.mrb[0].mxu0
      %1107 = vmatprep.mubr.bf16.mxu0 0
      %1108 = vmatmul.mubr.bf16.gmra.mrb[0].mxu0 %v1023
      %v1109 = vpop.f32.mrb[0].mxu0
      %v1110 = vadd.f32 0.0, %v1109
      %v1111 = vpop.f32.mrb[0].mxu0
      %v1112 = vpop.f32.mrb[0].mxu0
      %v1113 = vadd.f32 0.0, %v1112
      %v1114 = vpop.f32.mrb[0].mxu0
      %1115 = vmatprep.mubr.bf16.mxu0 0
      %1116 = vmatmul.mubr.bf16.gmra.mrb[0].mxu0 %v1026
      %v1117 = vpop.f32.mrb[0].mxu0
      %v1118 = vadd.f32 0.0, %v1117
      %v1119 = vpop.f32.mrb[0].mxu0
      %v1120 = vpop.f32.mrb[0].mxu0
      %v1121 = vadd.f32 0.0, %v1120
      %v1122 = vpop.f32.mrb[0].mxu0
      %1123 = vmatprep.mubr.bf16.mxu0 0
      %1124 = vmatmul.mubr.bf16.gmra.mrb[0].mxu0 %v1029
      %v1125 = vpop.f32.mrb[0].mxu0
      %v1126 = vadd.f32 0.0, %v1125
      %v1127 = vpop.f32.mrb[0].mxu0
      %v1128 = vpop.f32.mrb[0].mxu0
      %v1129 = vadd.f32 0.0, %v1128
      %v1130 = vpop.f32.mrb[0].mxu0
      %1131 = vdwg.mxu0
      %v1132 = vunpack.c.l.b16 %v799
      %v1133 = vunpack.c.l.b16 %v808
      %v1134 = vunpack.c.l.b16 %v821
      %v1135 = vunpack.c.l.b16 %v830
      %v1136 = vunpack.c.l.b16 %v843
      %v1137 = vunpack.c.l.b16 %v852
      %v1138 = vunpack.c.l.b16 %v865
      %v1139 = vunpack.c.l.b16 %v874
      %v1140 = vunpack.c.l.b16 %v887
      %v1141 = vunpack.c.l.b16 %v896
      %v1142 = vunpack.c.l.b16 %v909
      %v1143 = vunpack.c.l.b16 %v918
      %v1144 = vunpack.c.l.b16 %v931
      %v1145 = vunpack.c.l.b16 %v940
      %v1146 = vunpack.c.l.b16 %v953
      %v1147 = vunpack.c.l.b16 %v962
      %v1148 = vpack.c.b16 %v1133, %v1132
      %v1149 = vpack.c.b16 %v1135, %v1134
      %v1150 = vpack.c.b16 %v1137, %v1136
      %v1151 = vpack.c.b16 %v1139, %v1138
      %v1152 = vpack.c.b16 %v1141, %v1140
      %v1153 = vpack.c.b16 %v1143, %v1142
      %v1154 = vpack.c.b16 %v1145, %v1144
      %v1155 = vpack.c.b16 %v1147, %v1146
      %v1157 = vsel %vm1006, %v1148, 0
      %v1160 = vsel %vm1006, %v1149, 0
      %v1163 = vsel %vm1006, %v1150, 0
      %v1166 = vsel %vm1006, %v1151, 0
      %v1169 = vsel %vm1006, %v1152, 0
      %v1172 = vsel %vm1006, %v1153, 0
      %v1175 = vsel %vm1006, %v1154, 0
      %v1178 = vsel %vm1006, %v1155, 0
      %v1181 = vsel %vm1031, %v963, 0
      %1183 = vmatprep.subr.bf16.mxu0 0
      %1184 = vmatpush1.bf16.msra.mxu0 %v1181
      %1185 = vmatprep.subr.bf16.mxu0 0
      %1186 = vmatpush1.bf16.msra.mxu0 0
      %1187 = vmatprep.subr.bf16.mxu0 0
      %1188 = vmatpush1.bf16.msra.mxu0 0
      %1189 = vmatprep.subr.bf16.mxu0 0
      %1190 = vmatpush1.bf16.msra.mxu0 0
      %1191 = vmatprep.subr.bf16.mxu0 0
      %1192 = vmatpush1.bf16.msra.mxu0 0
      %1193 = vmatprep.subr.bf16.mxu0 0
      %1194 = vmatpush1.bf16.msra.mxu0 0
      %1195 = vmatprep.subr.bf16.mxu0 0
      %1196 = vmatpush1.bf16.msra.mxu0 0
      %1197 = vmatprep.subr.bf16.mxu0 0
      %1198 = vmatpush1.bf16.msra.mxu0 0
      %1199 = vmatprep.subr.bf16.mxu0 0
      %1200 = vmatpush1.bf16.msra.mxu0 0
      %1201 = vmatprep.subr.bf16.mxu0 0
      %1202 = vmatpush1.bf16.msra.mxu0 0
      %1203 = vmatprep.subr.bf16.mxu0 0
      %1204 = vmatpush1.bf16.msra.mxu0 0
      %1205 = vmatprep.subr.bf16.mxu0 0
      %1206 = vmatpush1.bf16.msra.mxu0 0
      %1207 = vmatprep.subr.bf16.mxu0 0
      %1208 = vmatpush1.bf16.msra.mxu0 0
      %1209 = vmatprep.subr.bf16.mxu0 0
      %1210 = vmatpush1.bf16.msra.mxu0 0
      %1211 = vmatprep.subr.bf16.mxu0 0
      %1212 = vmatpush1.bf16.msra.mxu0 0
      %1213 = vmatprep.subr.bf16.mxu0 0
      %1214 = vmatpush1.bf16.msra.mxu0 0
      %1215 = vmatprep.mubr.bf16.mxu0 0
      %1216 = vmatmul.mubr.bf16.gmra.mrb[0].mxu0 %v1157
      %v1217 = vpop.f32.mrb[0].mxu0
      %v1218 = vadd.f32 %v1070, %v1217
      %v1219 = vpop.f32.mrb[0].mxu0
      %v1220 = vpop.f32.mrb[0].mxu0
      %v1221 = vadd.f32 %v1073, %v1220
      %v1222 = vpop.f32.mrb[0].mxu0
      %1223 = vmatprep.mubr.bf16.mxu0 0
      %1224 = vmatmul.mubr.bf16.gmra.mrb[0].mxu0 %v1160
      %v1225 = vpop.f32.mrb[0].mxu0
      %v1226 = vadd.f32 %v1078, %v1225
      %v1227 = vpop.f32.mrb[0].mxu0
      %v1228 = vpop.f32.mrb[0].mxu0
      %v1229 = vadd.f32 %v1081, %v1228
      %v1230 = vpop.f32.mrb[0].mxu0
      %1231 = vmatprep.mubr.bf16.mxu0 0
      %1232 = vmatmul.mubr.bf16.gmra.mrb[0].mxu0 %v1163
      %v1233 = vpop.f32.mrb[0].mxu0
      %v1234 = vadd.f32 %v1086, %v1233
      %v1235 = vpop.f32.mrb[0].mxu0
      %v1236 = vpop.f32.mrb[0].mxu0
      %v1237 = vadd.f32 %v1089, %v1236
      %v1238 = vpop.f32.mrb[0].mxu0
      %1239 = vmatprep.mubr.bf16.mxu0 0
      %1240 = vmatmul.mubr.bf16.gmra.mrb[0].mxu0 %v1166
      %v1241 = vpop.f32.mrb[0].mxu0
      %v1242 = vadd.f32 %v1094, %v1241
      %v1243 = vpop.f32.mrb[0].mxu0
      %v1244 = vpop.f32.mrb[0].mxu0
      %v1245 = vadd.f32 %v1097, %v1244
      %v1246 = vpop.f32.mrb[0].mxu0
      %1247 = vmatprep.mubr.bf16.mxu0 0
      %1248 = vmatmul.mubr.bf16.gmra.mrb[0].mxu0 %v1169
      %v1249 = vpop.f32.mrb[0].mxu0
      %v1250 = vadd.f32 %v1102, %v1249
      %v1251 = vpop.f32.mrb[0].mxu0
      %v1252 = vpop.f32.mrb[0].mxu0
      %v1253 = vadd.f32 %v1105, %v1252
      %v1254 = vpop.f32.mrb[0].mxu0
      %1255 = vmatprep.mubr.bf16.mxu0 0
      %1256 = vmatmul.mubr.bf16.gmra.mrb[0].mxu0 %v1172
      %v1257 = vpop.f32.mrb[0].mxu0
      %v1258 = vadd.f32 %v1110, %v1257
      %v1259 = vpop.f32.mrb[0].mxu0
      %v1260 = vpop.f32.mrb[0].mxu0
      %v1261 = vadd.f32 %v1113, %v1260
      %v1262 = vpop.f32.mrb[0].mxu0
      %1263 = vmatprep.mubr.bf16.mxu0 0
      %1264 = vmatmul.mubr.bf16.gmra.mrb[0].mxu0 %v1175
      %v1265 = vpop.f32.mrb[0].mxu0
      %v1266 = vadd.f32 %v1118, %v1265
      %v1267 = vpop.f32.mrb[0].mxu0
      %v1268 = vpop.f32.mrb[0].mxu0
      %v1269 = vadd.f32 %v1121, %v1268
      %v1270 = vpop.f32.mrb[0].mxu0
      %1271 = vmatprep.mubr.bf16.mxu0 0
      %1272 = vmatmul.mubr.bf16.gmra.mrb[0].mxu0 %v1178
      %v1273 = vpop.f32.mrb[0].mxu0
      %v1274 = vadd.f32 %v1126, %v1273
      %v1275 = vpop.f32.mrb[0].mxu0
      %v1276 = vpop.f32.mrb[0].mxu0
      %v1277 = vadd.f32 %v1129, %v1276
      %v1278 = vpop.f32.mrb[0].mxu0
      %1279 = vdwg.mxu0
      %v1280 = vld [vmem:[#allocation2 + $0x8] sm:$0xf]
      %v1281 = vld [vmem:[#allocation2 + $0xc] sm:$0xf]
      %v1282 = vld [vmem:[#allocation2 + $0x10] sm:$0x1]
      %v1283 = vld [vmem:[#allocation2 + $0x1c] sm:$0xf]
      %v1284 = vld [vmem:[#allocation2 + $0x20] sm:$0xf]
      %v1285 = vld [vmem:[#allocation2 + $0x24] sm:$0x1]
      %v1286 = vld [vmem:[#allocation2 + $0x30] sm:$0xf]
      %v1287 = vld [vmem:[#allocation2 + $0x34] sm:$0xf]
      %v1288 = vld [vmem:[#allocation2 + $0x38] sm:$0x1]
      %v1289 = vld [vmem:[#allocation2 + $0x44] sm:$0xf]
      %v1290 = vld [vmem:[#allocation2 + $0x48] sm:$0xf]
      %v1291 = vld [vmem:[#allocation2 + $0x4c] sm:$0x1]
      %v1292 = vld [vmem:[#allocation2 + $0x58] sm:$0xf]
      %v1293 = vld [vmem:[#allocation2 + $0x5c] sm:$0xf]
      %v1294 = vld [vmem:[#allocation2 + $0x60] sm:$0x1]
      %v1295 = vld [vmem:[#allocation2 + $0x6c] sm:$0xf]
      %v1296 = vld [vmem:[#allocation2 + $0x70] sm:$0xf]
      %v1297 = vld [vmem:[#allocation2 + $0x74] sm:$0x1]
      %v1298 = vld [vmem:[#allocation2 + $0x80] sm:$0xf]
      %v1299 = vld [vmem:[#allocation2 + $0x84] sm:$0xf]
      %v1300 = vld [vmem:[#allocation2 + $0x88] sm:$0x1]
      %v1301 = vld [vmem:[#allocation2 + $0x94] sm:$0xf]
      %v1302 = vld [vmem:[#allocation2 + $0x98] sm:$0xf]
      %v1303 = vld [vmem:[#allocation2 + $0x9c] sm:$0x1]
      %vm1304 = vsmask.f32 3328
      %vm1305 = vsmask.f32 7440
      %vm1306 = vmor %vm1304, %vm1305
      %v1308 = vshrl.u32 %v1280, 16
      %v1310 = vrot.slane %v1308, 4
      %v1311 = vshll.u32 %v1280, 16
      %v1313 = vrot.slane %v1311, 5
      %v1314 = vor.u32 %v1310, %v1313
      %v1315 = vrot.slane %v1314, 4
      %v1317 = vshll.u32 %v1281, 16
      %v1319 = vrot.slane %v1317, 5
      %v1320 = vsel %vm1306, %v1315, %v1319
      %v1321 = vshrl.u32 %v1281, 16
      %v1323 = vrot.slane %v1321, 4
      %v1324 = vor.u32 %v1323, %v1319
      %v1325 = vrot.slane %v1324, 4
      %v1327 = vshll.u32 %v1282, 16
      %v1329 = vrot.slane %v1327, 5
      %v1330 = vsel %vm1306, %v1325, %v1329
      %v1332 = vshrl.u32 %v1283, 16
      %v1334 = vrot.slane %v1332, 4
      %v1335 = vshll.u32 %v1283, 16
      %v1337 = vrot.slane %v1335, 5
      %v1338 = vor.u32 %v1334, %v1337
      %v1339 = vrot.slane %v1338, 4
      %v1341 = vshll.u32 %v1284, 16
      %v1343 = vrot.slane %v1341, 5
      %v1344 = vsel %vm1306, %v1339, %v1343
      %v1345 = vshrl.u32 %v1284, 16
      %v1347 = vrot.slane %v1345, 4
      %v1348 = vor.u32 %v1347, %v1343
      %v1349 = vrot.slane %v1348, 4
      %v1351 = vshll.u32 %v1285, 16
      %v1353 = vrot.slane %v1351, 5
      %v1354 = vsel %vm1306, %v1349, %v1353
      %v1356 = vshrl.u32 %v1286, 16
      %v1358 = vrot.slane %v1356, 4
      %v1359 = vshll.u32 %v1286, 16
      %v1361 = vrot.slane %v1359, 5
      %v1362 = vor.u32 %v1358, %v1361
      %v1363 = vrot.slane %v1362, 4
      %v1365 = vshll.u32 %v1287, 16
      %v1367 = vrot.slane %v1365, 5
      %v1368 = vsel %vm1306, %v1363, %v1367
      %v1369 = vshrl.u32 %v1287, 16
      %v1371 = vrot.slane %v1369, 4
      %v1372 = vor.u32 %v1371, %v1367
      %v1373 = vrot.slane %v1372, 4
      %v1375 = vshll.u32 %v1288, 16
      %v1377 = vrot.slane %v1375, 5
      %v1378 = vsel %vm1306, %v1373, %v1377
      %v1380 = vshrl.u32 %v1289, 16
      %v1382 = vrot.slane %v1380, 4
      %v1383 = vshll.u32 %v1289, 16
      %v1385 = vrot.slane %v1383, 5
      %v1386 = vor.u32 %v1382, %v1385
      %v1387 = vrot.slane %v1386, 4
      %v1389 = vshll.u32 %v1290, 16
      %v1391 = vrot.slane %v1389, 5
      %v1392 = vsel %vm1306, %v1387, %v1391
      %v1393 = vshrl.u32 %v1290, 16
      %v1395 = vrot.slane %v1393, 4
      %v1396 = vor.u32 %v1395, %v1391
      %v1397 = vrot.slane %v1396, 4
      %v1399 = vshll.u32 %v1291, 16
      %v1401 = vrot.slane %v1399, 5
      %v1402 = vsel %vm1306, %v1397, %v1401
      %v1404 = vshrl.u32 %v1292, 16
      %v1406 = vrot.slane %v1404, 4
      %v1407 = vshll.u32 %v1292, 16
      %v1409 = vrot.slane %v1407, 5
      %v1410 = vor.u32 %v1406, %v1409
      %v1411 = vrot.slane %v1410, 4
      %v1413 = vshll.u32 %v1293, 16
      %v1415 = vrot.slane %v1413, 5
      %v1416 = vsel %vm1306, %v1411, %v1415
      %v1417 = vshrl.u32 %v1293, 16
      %v1419 = vrot.slane %v1417, 4
      %v1420 = vor.u32 %v1419, %v1415
      %v1421 = vrot.slane %v1420, 4
      %v1423 = vshll.u32 %v1294, 16
      %v1425 = vrot.slane %v1423, 5
      %v1426 = vsel %vm1306, %v1421, %v1425
      %v1428 = vshrl.u32 %v1295, 16
      %v1430 = vrot.slane %v1428, 4
      %v1431 = vshll.u32 %v1295, 16
      %v1433 = vrot.slane %v1431, 5
      %v1434 = vor.u32 %v1430, %v1433
      %v1435 = vrot.slane %v1434, 4
      %v1437 = vshll.u32 %v1296, 16
      %v1439 = vrot.slane %v1437, 5
      %v1440 = vsel %vm1306, %v1435, %v1439
      %v1441 = vshrl.u32 %v1296, 16
      %v1443 = vrot.slane %v1441, 4
      %v1444 = vor.u32 %v1443, %v1439
      %v1445 = vrot.slane %v1444, 4
      %v1447 = vshll.u32 %v1297, 16
      %v1449 = vrot.slane %v1447, 5
      %v1450 = vsel %vm1306, %v1445, %v1449
      %v1452 = vshrl.u32 %v1298, 16
      %v1454 = vrot.slane %v1452, 4
      %v1455 = vshll.u32 %v1298, 16
      %v1457 = vrot.slane %v1455, 5
      %v1458 = vor.u32 %v1454, %v1457
      %v1459 = vrot.slane %v1458, 4
      %v1461 = vshll.u32 %v1299, 16
      %v1463 = vrot.slane %v1461, 5
      %v1464 = vsel %vm1306, %v1459, %v1463
      %v1465 = vshrl.u32 %v1299, 16
      %v1467 = vrot.slane %v1465, 4
      %v1468 = vor.u32 %v1467, %v1463
      %v1469 = vrot.slane %v1468, 4
      %v1471 = vshll.u32 %v1300, 16
      %v1473 = vrot.slane %v1471, 5
      %v1474 = vsel %vm1306, %v1469, %v1473
      %v1476 = vshrl.u32 %v1301, 16
      %v1478 = vrot.slane %v1476, 4
      %v1479 = vshll.u32 %v1301, 16
      %v1481 = vrot.slane %v1479, 5
      %v1482 = vor.u32 %v1478, %v1481
      %v1483 = vrot.slane %v1482, 4
      %v1485 = vshll.u32 %v1302, 16
      %v1487 = vrot.slane %v1485, 5
      %v1488 = vsel %vm1306, %v1483, %v1487
      %v1489 = vshrl.u32 %v1302, 16
      %v1491 = vrot.slane %v1489, 4
      %v1492 = vor.u32 %v1491, %v1487
      %v1493 = vrot.slane %v1492, 4
      %v1495 = vshll.u32 %v1303, 16
      %v1497 = vrot.slane %v1495, 5
      %v1498 = vsel %vm1306, %v1493, %v1497
      %s1499 = scalar_lea.vmem %s3, 4
      %v1500 = vld [vmem:[%s1499] sm:$0x3]
      %v1501 = vunpack.c.l.b16 %v1320
      %v1502 = vunpack.c.l.b16 %v1330
      %v1503 = vunpack.c.l.b16 %v1344
      %v1504 = vunpack.c.l.b16 %v1354
      %v1505 = vunpack.c.l.b16 %v1368
      %v1506 = vunpack.c.l.b16 %v1378
      %v1507 = vunpack.c.l.b16 %v1392
      %v1508 = vunpack.c.l.b16 %v1402
      %v1509 = vunpack.c.l.b16 %v1416
      %v1510 = vunpack.c.l.b16 %v1426
      %v1511 = vunpack.c.l.b16 %v1440
      %v1512 = vunpack.c.l.b16 %v1450
      %v1513 = vunpack.c.l.b16 %v1464
      %v1514 = vunpack.c.l.b16 %v1474
      %v1515 = vunpack.c.l.b16 %v1488
      %v1516 = vunpack.c.l.b16 %v1498
      %v1517 = vpack.c.b16 %v1502, %v1501
      %v1518 = vpack.c.b16 %v1504, %v1503
      %v1519 = vpack.c.b16 %v1506, %v1505
      %v1520 = vpack.c.b16 %v1508, %v1507
      %v1521 = vpack.c.b16 %v1510, %v1509
      %v1522 = vpack.c.b16 %v1512, %v1511
      %v1523 = vpack.c.b16 %v1514, %v1513
      %v1524 = vpack.c.b16 %v1516, %v1515
      %v1526 = vsel %vm1006, %v1517, 0
      %v1529 = vsel %vm1006, %v1518, 0
      %v1532 = vsel %vm1006, %v1519, 0
      %v1535 = vsel %vm1006, %v1520, 0
      %v1538 = vsel %vm1006, %v1521, 0
      %v1541 = vsel %vm1006, %v1522, 0
      %v1544 = vsel %vm1006, %v1523, 0
      %v1547 = vsel %vm1006, %v1524, 0
      %v1550 = vsel %vm1031, %v1500, 0
      %1552 = vmatprep.subr.bf16.mxu0 0
      %1553 = vmatpush1.bf16.msra.mxu0 %v1550
      %1554 = vmatprep.subr.bf16.mxu0 0
      %1555 = vmatpush1.bf16.msra.mxu0 0
      %1556 = vmatprep.subr.bf16.mxu0 0
      %1557 = vmatpush1.bf16.msra.mxu0 0
      %1558 = vmatprep.subr.bf16.mxu0 0
      %1559 = vmatpush1.bf16.msra.mxu0 0
      %1560 = vmatprep.subr.bf16.mxu0 0
      %1561 = vmatpush1.bf16.msra.mxu0 0
      %1562 = vmatprep.subr.bf16.mxu0 0
      %1563 = vmatpush1.bf16.msra.mxu0 0
      %1564 = vmatprep.subr.bf16.mxu0 0
      %1565 = vmatpush1.bf16.msra.mxu0 0
      %1566 = vmatprep.subr.bf16.mxu0 0
      %1567 = vmatpush1.bf16.msra.mxu0 0
      %1568 = vmatprep.subr.bf16.mxu0 0
      %1569 = vmatpush1.bf16.msra.mxu0 0
      %1570 = vmatprep.subr.bf16.mxu0 0
      %1571 = vmatpush1.bf16.msra.mxu0 0
      %1572 = vmatprep.subr.bf16.mxu0 0
      %1573 = vmatpush1.bf16.msra.mxu0 0
      %1574 = vmatprep.subr.bf16.mxu0 0
      %1575 = vmatpush1.bf16.msra.mxu0 0
      %1576 = vmatprep.subr.bf16.mxu0 0
      %1577 = vmatpush1.bf16.msra.mxu0 0
      %1578 = vmatprep.subr.bf16.mxu0 0
      %1579 = vmatpush1.bf16.msra.mxu0 0
      %1580 = vmatprep.subr.bf16.mxu0 0
      %1581 = vmatpush1.bf16.msra.mxu0 0
      %1582 = vmatprep.subr.bf16.mxu0 0
      %1583 = vmatpush1.bf16.msra.mxu0 0
      %1584 = vmatprep.mubr.bf16.mxu0 0
      %1585 = vmatmul.mubr.bf16.gmra.mrb[0].mxu0 %v1526
      %v1586 = vpop.f32.mrb[0].mxu0
      %v1587 = vadd.f32 0.0, %v1586
      %v1588 = vpop.f32.mrb[0].mxu0
      %v1589 = vpop.f32.mrb[0].mxu0
      %v1590 = vadd.f32 0.0, %v1589
      %v1591 = vpop.f32.mrb[0].mxu0
      %1592 = vmatprep.mubr.bf16.mxu0 0
      %1593 = vmatmul.mubr.bf16.gmra.mrb[0].mxu0 %v1529
      %v1594 = vpop.f32.mrb[0].mxu0
      %v1595 = vadd.f32 0.0, %v1594
      %v1596 = vpop.f32.mrb[0].mxu0
      %v1597 = vpop.f32.mrb[0].mxu0
      %v1598 = vadd.f32 0.0, %v1597
      %v1599 = vpop.f32.mrb[0].mxu0
      %1600 = vmatprep.mubr.bf16.mxu0 0
      %1601 = vmatmul.mubr.bf16.gmra.mrb[0].mxu0 %v1532
      %v1602 = vpop.f32.mrb[0].mxu0
      %v1603 = vadd.f32 0.0, %v1602
      %v1604 = vpop.f32.mrb[0].mxu0
      %v1605 = vpop.f32.mrb[0].mxu0
      %v1606 = vadd.f32 0.0, %v1605
      %v1607 = vpop.f32.mrb[0].mxu0
      %1608 = vmatprep.mubr.bf16.mxu0 0
      %1609 = vmatmul.mubr.bf16.gmra.mrb[0].mxu0 %v1535
      %v1610 = vpop.f32.mrb[0].mxu0
      %v1611 = vadd.f32 0.0, %v1610
      %v1612 = vpop.f32.mrb[0].mxu0
      %v1613 = vpop.f32.mrb[0].mxu0
      %v1614 = vadd.f32 0.0, %v1613
      %v1615 = vpop.f32.mrb[0].mxu0
      %1616 = vmatprep.mubr.bf16.mxu0 0
      %1617 = vmatmul.mubr.bf16.gmra.mrb[0].mxu0 %v1538
      %v1618 = vpop.f32.mrb[0].mxu0
      %v1619 = vadd.f32 0.0, %v1618
      %v1620 = vpop.f32.mrb[0].mxu0
      %v1621 = vpop.f32.mrb[0].mxu0
      %v1622 = vadd.f32 0.0, %v1621
      %v1623 = vpop.f32.mrb[0].mxu0
      %1624 = vmatprep.mubr.bf16.mxu0 0
      %1625 = vmatmul.mubr.bf16.gmra.mrb[0].mxu0 %v1541
      %v1626 = vpop.f32.mrb[0].mxu0
      %v1627 = vadd.f32 0.0, %v1626
      %v1628 = vpop.f32.mrb[0].mxu0
      %v1629 = vpop.f32.mrb[0].mxu0
      %v1630 = vadd.f32 0.0, %v1629
      %v1631 = vpop.f32.mrb[0].mxu0
      %1632 = vmatprep.mubr.bf16.mxu0 0
      %1633 = vmatmul.mubr.bf16.gmra.mrb[0].mxu0 %v1544
      %v1634 = vpop.f32.mrb[0].mxu0
      %v1635 = vadd.f32 0.0, %v1634
      %v1636 = vpop.f32.mrb[0].mxu0
      %v1637 = vpop.f32.mrb[0].mxu0
      %v1638 = vadd.f32 0.0, %v1637
      %v1639 = vpop.f32.mrb[0].mxu0
      %1640 = vmatprep.mubr.bf16.mxu0 0
      %1641 = vmatmul.mubr.bf16.gmra.mrb[0].mxu0 %v1547
      %v1642 = vpop.f32.mrb[0].mxu0
      %v1643 = vadd.f32 0.0, %v1642
      %v1644 = vpop.f32.mrb[0].mxu0
      %v1645 = vpop.f32.mrb[0].mxu0
      %v1646 = vadd.f32 0.0, %v1645
      %v1647 = vpop.f32.mrb[0].mxu0
      %1648 = vdwg.mxu0
      %v1649 = vadd.f32 %v1218, %v1587
      %v1650 = vadd.f32 %v1221, %v1590
      %v1651 = vadd.f32 %v1226, %v1595
      %v1652 = vadd.f32 %v1229, %v1598
      %v1653 = vadd.f32 %v1234, %v1603
      %v1654 = vadd.f32 %v1237, %v1606
      %v1655 = vadd.f32 %v1242, %v1611
      %v1656 = vadd.f32 %v1245, %v1614
      %v1657 = vadd.f32 %v1250, %v1619
      %v1658 = vadd.f32 %v1253, %v1622
      %v1659 = vadd.f32 %v1258, %v1627
      %v1660 = vadd.f32 %v1261, %v1630
      %v1661 = vadd.f32 %v1266, %v1635
      %v1662 = vadd.f32 %v1269, %v1638
      %v1663 = vadd.f32 %v1274, %v1643
      %v1664 = vadd.f32 %v1277, %v1646
      %s1665 = scalar_lea.vmem [#allocation2], 20
      %v1666 = vld [vmem:[%s1665 + $0x4] sm:$0x8]
      %v1667 = vld [vmem:[%s1665 + $0x8] sm:$0xf]
      %v1668 = vld [vmem:[%s1665 + $0xc] sm:$0xf]
      %v1669 = vld [vmem:[%s1665 + $0x18] sm:$0x8]
      %v1670 = vld [vmem:[%s1665 + $0x1c] sm:$0xf]
      %v1671 = vld [vmem:[%s1665 + $0x20] sm:$0xf]
      %v1672 = vld [vmem:[%s1665 + $0x2c] sm:$0x8]
      %v1673 = vld [vmem:[%s1665 + $0x30] sm:$0xf]
      %v1674 = vld [vmem:[%s1665 + $0x34] sm:$0xf]
      %v1675 = vld [vmem:[%s1665 + $0x40] sm:$0x8]
      %v1676 = vld [vmem:[%s1665 + $0x44] sm:$0xf]
      %v1677 = vld [vmem:[%s1665 + $0x48] sm:$0xf]
      %v1678 = vld [vmem:[%s1665 + $0x54] sm:$0x8]
      %v1679 = vld [vmem:[%s1665 + $0x58] sm:$0xf]
      %v1680 = vld [vmem:[%s1665 + $0x5c] sm:$0xf]
      %v1681 = vld [vmem:[%s1665 + $0x68] sm:$0x8]
      %v1682 = vld [vmem:[%s1665 + $0x6c] sm:$0xf]
      %v1683 = vld [vmem:[%s1665 + $0x70] sm:$0xf]
      %v1684 = vld [vmem:[%s1665 + $0x7c] sm:$0x8]
      %v1685 = vld [vmem:[%s1665 + $0x80] sm:$0xf]
      %v1686 = vld [vmem:[%s1665 + $0x84] sm:$0xf]
      %v1687 = vld [vmem:[%s1665 + $0x90] sm:$0x8]
      %v1688 = vld [vmem:[%s1665 + $0x94] sm:$0xf]
      %v1689 = vld [vmem:[%s1665 + $0x98] sm:$0xf]
      %v1691 = vshrl.u32 %v1666, 16
      %v1693 = vrot.slane %v1691, 7
      %v1694 = vrot.slane %v1693, 4
      %v1696 = vshrl.u32 %v1667, 16
      %v1698 = vrot.slane %v1696, 7
      %v1699 = vshll.u32 %v1667, 16
      %v1701 = vor.u32 %v1698, %v1699
      %v1702 = vsel %vm786, %v1694, %v1701
      %v1703 = vrot.slane %v1698, 4
      %v1705 = vshrl.u32 %v1668, 16
      %v1707 = vrot.slane %v1705, 7
      %v1708 = vshll.u32 %v1668, 16
      %v1710 = vor.u32 %v1707, %v1708
      %v1711 = vsel %vm786, %v1703, %v1710
      %v1713 = vshrl.u32 %v1669, 16
      %v1715 = vrot.slane %v1713, 7
      %v1716 = vrot.slane %v1715, 4
      %v1718 = vshrl.u32 %v1670, 16
      %v1720 = vrot.slane %v1718, 7
      %v1721 = vshll.u32 %v1670, 16
      %v1723 = vor.u32 %v1720, %v1721
      %v1724 = vsel %vm786, %v1716, %v1723
      %v1725 = vrot.slane %v1720, 4
      %v1727 = vshrl.u32 %v1671, 16
      %v1729 = vrot.slane %v1727, 7
      %v1730 = vshll.u32 %v1671, 16
      %v1732 = vor.u32 %v1729, %v1730
      %v1733 = vsel %vm786, %v1725, %v1732
      %v1735 = vshrl.u32 %v1672, 16
      %v1737 = vrot.slane %v1735, 7
      %v1738 = vrot.slane %v1737, 4
      %v1740 = vshrl.u32 %v1673, 16
      %v1742 = vrot.slane %v1740, 7
      %v1743 = vshll.u32 %v1673, 16
      %v1745 = vor.u32 %v1742, %v1743
      %v1746 = vsel %vm786, %v1738, %v1745
      %v1747 = vrot.slane %v1742, 4
      %v1749 = vshrl.u32 %v1674, 16
      %v1751 = vrot.slane %v1749, 7
      %v1752 = vshll.u32 %v1674, 16
      %v1754 = vor.u32 %v1751, %v1752
      %v1755 = vsel %vm786, %v1747, %v1754
      %v1757 = vshrl.u32 %v1675, 16
      %v1759 = vrot.slane %v1757, 7
      %v1760 = vrot.slane %v1759, 4
      %v1762 = vshrl.u32 %v1676, 16
      %v1764 = vrot.slane %v1762, 7
      %v1765 = vshll.u32 %v1676, 16
      %v1767 = vor.u32 %v1764, %v1765
      %v1768 = vsel %vm786, %v1760, %v1767
      %v1769 = vrot.slane %v1764, 4
      %v1771 = vshrl.u32 %v1677, 16
      %v1773 = vrot.slane %v1771, 7
      %v1774 = vshll.u32 %v1677, 16
      %v1776 = vor.u32 %v1773, %v1774
      %v1777 = vsel %vm786, %v1769, %v1776
      %v1779 = vshrl.u32 %v1678, 16
      %v1781 = vrot.slane %v1779, 7
      %v1782 = vrot.slane %v1781, 4
      %v1784 = vshrl.u32 %v1679, 16
      %v1786 = vrot.slane %v1784, 7
      %v1787 = vshll.u32 %v1679, 16
      %v1789 = vor.u32 %v1786, %v1787
      %v1790 = vsel %vm786, %v1782, %v1789
      %v1791 = vrot.slane %v1786, 4
      %v1793 = vshrl.u32 %v1680, 16
      %v1795 = vrot.slane %v1793, 7
      %v1796 = vshll.u32 %v1680, 16
      %v1798 = vor.u32 %v1795, %v1796
      %v1799 = vsel %vm786, %v1791, %v1798
      %v1801 = vshrl.u32 %v1681, 16
      %v1803 = vrot.slane %v1801, 7
      %v1804 = vrot.slane %v1803, 4
      %v1806 = vshrl.u32 %v1682, 16
      %v1808 = vrot.slane %v1806, 7
      %v1809 = vshll.u32 %v1682, 16
      %v1811 = vor.u32 %v1808, %v1809
      %v1812 = vsel %vm786, %v1804, %v1811
      %v1813 = vrot.slane %v1808, 4
      %v1815 = vshrl.u32 %v1683, 16
      %v1817 = vrot.slane %v1815, 7
      %v1818 = vshll.u32 %v1683, 16
      %v1820 = vor.u32 %v1817, %v1818
      %v1821 = vsel %vm786, %v1813, %v1820
      %v1823 = vshrl.u32 %v1684, 16
      %v1825 = vrot.slane %v1823, 7
      %v1826 = vrot.slane %v1825, 4
      %v1828 = vshrl.u32 %v1685, 16
      %v1830 = vrot.slane %v1828, 7
      %v1831 = vshll.u32 %v1685, 16
      %v1833 = vor.u32 %v1830, %v1831
      %v1834 = vsel %vm786, %v1826, %v1833
      %v1835 = vrot.slane %v1830, 4
      %v1837 = vshrl.u32 %v1686, 16
      %v1839 = vrot.slane %v1837, 7
      %v1840 = vshll.u32 %v1686, 16
      %v1842 = vor.u32 %v1839, %v1840
      %v1843 = vsel %vm786, %v1835, %v1842
      %v1845 = vshrl.u32 %v1687, 16
      %v1847 = vrot.slane %v1845, 7
      %v1848 = vrot.slane %v1847, 4
      %v1850 = vshrl.u32 %v1688, 16
      %v1852 = vrot.slane %v1850, 7
      %v1853 = vshll.u32 %v1688, 16
      %v1855 = vor.u32 %v1852, %v1853
      %v1856 = vsel %vm786, %v1848, %v1855
      %v1857 = vrot.slane %v1852, 4
      %v1859 = vshrl.u32 %v1689, 16
      %v1861 = vrot.slane %v1859, 7
      %v1862 = vshll.u32 %v1689, 16
      %v1864 = vor.u32 %v1861, %v1862
      %v1865 = vsel %vm786, %v1857, %v1864
      %s1866 = scalar_lea.vmem %s3, 6
      %v1867 = vld [vmem:[%s1866] sm:$0x3]
      %v1868 = vunpack.c.l.b16 %v1702
      %v1869 = vunpack.c.l.b16 %v1711
      %v1870 = vunpack.c.l.b16 %v1724
      %v1871 = vunpack.c.l.b16 %v1733
      %v1872 = vunpack.c.l.b16 %v1746
      %v1873 = vunpack.c.l.b16 %v1755
      %v1874 = vunpack.c.l.b16 %v1768
      %v1875 = vunpack.c.l.b16 %v1777
      %v1876 = vunpack.c.l.b16 %v1790
      %v1877 = vunpack.c.l.b16 %v1799
      %v1878 = vunpack.c.l.b16 %v1812
      %v1879 = vunpack.c.l.b16 %v1821
      %v1880 = vunpack.c.l.b16 %v1834
      %v1881 = vunpack.c.l.b16 %v1843
      %v1882 = vunpack.c.l.b16 %v1856
      %v1883 = vunpack.c.l.b16 %v1865
      %v1884 = vpack.c.b16 %v1869, %v1868
      %v1885 = vpack.c.b16 %v1871, %v1870
      %v1886 = vpack.c.b16 %v1873, %v1872
      %v1887 = vpack.c.b16 %v1875, %v1874
      %v1888 = vpack.c.b16 %v1877, %v1876
      %v1889 = vpack.c.b16 %v1879, %v1878
      %v1890 = vpack.c.b16 %v1881, %v1880
      %v1891 = vpack.c.b16 %v1883, %v1882
      %v1893 = vsel %vm1006, %v1884, 0
      %v1896 = vsel %vm1006, %v1885, 0
      %v1899 = vsel %vm1006, %v1886, 0
      %v1902 = vsel %vm1006, %v1887, 0
      %v1905 = vsel %vm1006, %v1888, 0
      %v1908 = vsel %vm1006, %v1889, 0
      %v1911 = vsel %vm1006, %v1890, 0
      %v1914 = vsel %vm1006, %v1891, 0
      %v1917 = vsel %vm1031, %v1867, 0
      %1919 = vmatprep.subr.bf16.mxu0 0
      %1920 = vmatpush1.bf16.msra.mxu0 %v1917
      %1921 = vmatprep.subr.bf16.mxu0 0
      %1922 = vmatpush1.bf16.msra.mxu0 0
      %1923 = vmatprep.subr.bf16.mxu0 0
      %1924 = vmatpush1.bf16.msra.mxu0 0
      %1925 = vmatprep.subr.bf16.mxu0 0
      %1926 = vmatpush1.bf16.msra.mxu0 0
      %1927 = vmatprep.subr.bf16.mxu0 0
      %1928 = vmatpush1.bf16.msra.mxu0 0
      %1929 = vmatprep.subr.bf16.mxu0 0
      %1930 = vmatpush1.bf16.msra.mxu0 0
      %1931 = vmatprep.subr.bf16.mxu0 0
      %1932 = vmatpush1.bf16.msra.mxu0 0
      %1933 = vmatprep.subr.bf16.mxu0 0
      %1934 = vmatpush1.bf16.msra.mxu0 0
      %1935 = vmatprep.subr.bf16.mxu0 0
      %1936 = vmatpush1.bf16.msra.mxu0 0
      %1937 = vmatprep.subr.bf16.mxu0 0
      %1938 = vmatpush1.bf16.msra.mxu0 0
      %1939 = vmatprep.subr.bf16.mxu0 0
      %1940 = vmatpush1.bf16.msra.mxu0 0
      %1941 = vmatprep.subr.bf16.mxu0 0
      %1942 = vmatpush1.bf16.msra.mxu0 0
      %1943 = vmatprep.subr.bf16.mxu0 0
      %1944 = vmatpush1.bf16.msra.mxu0 0
      %1945 = vmatprep.subr.bf16.mxu0 0
      %1946 = vmatpush1.bf16.msra.mxu0 0
      %1947 = vmatprep.subr.bf16.mxu0 0
      %1948 = vmatpush1.bf16.msra.mxu0 0
      %1949 = vmatprep.subr.bf16.mxu0 0
      %1950 = vmatpush1.bf16.msra.mxu0 0
      %1951 = vmatprep.mubr.bf16.mxu0 0
      %1952 = vmatmul.mubr.bf16.gmra.mrb[0].mxu0 %v1893
      %v1953 = vpop.f32.mrb[0].mxu0
      %v1954 = vadd.f32 0.0, %v1953
      %v1955 = vpop.f32.mrb[0].mxu0
      %v1956 = vpop.f32.mrb[0].mxu0
      %v1957 = vadd.f32 0.0, %v1956
      %v1958 = vpop.f32.mrb[0].mxu0
      %1959 = vmatprep.mubr.bf16.mxu0 0
      %1960 = vmatmul.mubr.bf16.gmra.mrb[0].mxu0 %v1896
      %v1961 = vpop.f32.mrb[0].mxu0
      %v1962 = vadd.f32 0.0, %v1961
      %v1963 = vpop.f32.mrb[0].mxu0
      %v1964 = vpop.f32.mrb[0].mxu0
      %v1965 = vadd.f32 0.0, %v1964
      %v1966 = vpop.f32.mrb[0].mxu0
      %1967 = vmatprep.mubr.bf16.mxu0 0
      %1968 = vmatmul.mubr.bf16.gmra.mrb[0].mxu0 %v1899
      %v1969 = vpop.f32.mrb[0].mxu0
      %v1970 = vadd.f32 0.0, %v1969
      %v1971 = vpop.f32.mrb[0].mxu0
      %v1972 = vpop.f32.mrb[0].mxu0
      %v1973 = vadd.f32 0.0, %v1972
      %v1974 = vpop.f32.mrb[0].mxu0
      %1975 = vmatprep.mubr.bf16.mxu0 0
      %1976 = vmatmul.mubr.bf16.gmra.mrb[0].mxu0 %v1902
      %v1977 = vpop.f32.mrb[0].mxu0
      %v1978 = vadd.f32 0.0, %v1977
      %v1979 = vpop.f32.mrb[0].mxu0
      %v1980 = vpop.f32.mrb[0].mxu0
      %v1981 = vadd.f32 0.0, %v1980
      %v1982 = vpop.f32.mrb[0].mxu0
      %1983 = vmatprep.mubr.bf16.mxu0 0
      %1984 = vmatmul.mubr.bf16.gmra.mrb[0].mxu0 %v1905
      %v1985 = vpop.f32.mrb[0].mxu0
      %v1986 = vadd.f32 0.0, %v1985
      %v1987 = vpop.f32.mrb[0].mxu0
      %v1988 = vpop.f32.mrb[0].mxu0
      %v1989 = vadd.f32 0.0, %v1988
      %v1990 = vpop.f32.mrb[0].mxu0
      %1991 = vmatprep.mubr.bf16.mxu0 0
      %1992 = vmatmul.mubr.bf16.gmra.mrb[0].mxu0 %v1908
      %v1993 = vpop.f32.mrb[0].mxu0
      %v1994 = vadd.f32 0.0, %v1993
      %v1995 = vpop.f32.mrb[0].mxu0
      %v1996 = vpop.f32.mrb[0].mxu0
      %v1997 = vadd.f32 0.0, %v1996
      %v1998 = vpop.f32.mrb[0].mxu0
      %1999 = vmatprep.mubr.bf16.mxu0 0
      %2000 = vmatmul.mubr.bf16.gmra.mrb[0].mxu0 %v1911
      %v2001 = vpop.f32.mrb[0].mxu0
      %v2002 = vadd.f32 0.0, %v2001
      %v2003 = vpop.f32.mrb[0].mxu0
      %v2004 = vpop.f32.mrb[0].mxu0
      %v2005 = vadd.f32 0.0, %v2004
      %v2006 = vpop.f32.mrb[0].mxu0
      %2007 = vmatprep.mubr.bf16.mxu0 0
      %2008 = vmatmul.mubr.bf16.gmra.mrb[0].mxu0 %v1914
      %v2009 = vpop.f32.mrb[0].mxu0
      %v2010 = vadd.f32 0.0, %v2009
      %v2011 = vpop.f32.mrb[0].mxu0
      %v2012 = vpop.f32.mrb[0].mxu0
      %v2013 = vadd.f32 0.0, %v2012
      %v2014 = vpop.f32.mrb[0].mxu0
      %2015 = vdwg.mxu0
      %v2016 = vadd.f32 %v1649, %v1954
      %v2017 = vadd.f32 %v1650, %v1957
      %v2018 = vadd.f32 %v1651, %v1962
      %v2019 = vadd.f32 %v1652, %v1965
      %v2020 = vadd.f32 %v1653, %v1970
      %v2021 = vadd.f32 %v1654, %v1973
      %v2022 = vadd.f32 %v1655, %v1978
      %v2023 = vadd.f32 %v1656, %v1981
      %v2024 = vadd.f32 %v1657, %v1986
      %v2025 = vadd.f32 %v1658, %v1989
      %v2026 = vadd.f32 %v1659, %v1994
      %v2027 = vadd.f32 %v1660, %v1997
      %v2028 = vadd.f32 %v1661, %v2002
      %v2029 = vadd.f32 %v1662, %v2005
      %v2030 = vadd.f32 %v1663, %v2010
      %v2031 = vadd.f32 %v1664, %v2013
      %s2032 = scalar_lea.vmem %s3, 8
      %v2033 = vld [vmem:[%s2032] sm:$0x3]
      %v2050 = vunpack.c.l.b16 %v1667
      %v2051 = vunpack.c.l.b16 %v1668
      %v2052 = vunpack.c.l.b16 %v1670
      %v2053 = vunpack.c.l.b16 %v1671
      %v2054 = vunpack.c.l.b16 %v1673
      %v2055 = vunpack.c.l.b16 %v1674
      %v2056 = vunpack.c.l.b16 %v1676
      %v2057 = vunpack.c.l.b16 %v1677
      %v2058 = vunpack.c.l.b16 %v1679
      %v2059 = vunpack.c.l.b16 %v1680
      %v2060 = vunpack.c.l.b16 %v1682
      %v2061 = vunpack.c.l.b16 %v1683
      %v2062 = vunpack.c.l.b16 %v1685
      %v2063 = vunpack.c.l.b16 %v1686
      %v2064 = vunpack.c.l.b16 %v1688
      %v2065 = vunpack.c.l.b16 %v1689
      %v2066 = vpack.c.b16 %v2051, %v2050
      %v2067 = vpack.c.b16 %v2053, %v2052
      %v2068 = vpack.c.b16 %v2055, %v2054
      %v2069 = vpack.c.b16 %v2057, %v2056
      %v2070 = vpack.c.b16 %v2059, %v2058
      %v2071 = vpack.c.b16 %v2061, %v2060
      %v2072 = vpack.c.b16 %v2063, %v2062
      %v2073 = vpack.c.b16 %v2065, %v2064
      %v2075 = vsel %vm1006, %v2066, 0
      %v2078 = vsel %vm1006, %v2067, 0
      %v2081 = vsel %vm1006, %v2068, 0
      %v2084 = vsel %vm1006, %v2069, 0
      %v2087 = vsel %vm1006, %v2070, 0
      %v2090 = vsel %vm1006, %v2071, 0
      %v2093 = vsel %vm1006, %v2072, 0
      %v2096 = vsel %vm1006, %v2073, 0
      %v2099 = vsel %vm1031, %v2033, 0
      %2101 = vmatprep.subr.bf16.mxu0 0
      %2102 = vmatpush1.bf16.msra.mxu0 %v2099
      %2103 = vmatprep.subr.bf16.mxu0 0
      %2104 = vmatpush1.bf16.msra.mxu0 0
      %2105 = vmatprep.subr.bf16.mxu0 0
      %2106 = vmatpush1.bf16.msra.mxu0 0
      %2107 = vmatprep.subr.bf16.mxu0 0
      %2108 = vmatpush1.bf16.msra.mxu0 0
      %2109 = vmatprep.subr.bf16.mxu0 0
      %2110 = vmatpush1.bf16.msra.mxu0 0
      %2111 = vmatprep.subr.bf16.mxu0 0
      %2112 = vmatpush1.bf16.msra.mxu0 0
      %2113 = vmatprep.subr.bf16.mxu0 0
      %2114 = vmatpush1.bf16.msra.mxu0 0
      %2115 = vmatprep.subr.bf16.mxu0 0
      %2116 = vmatpush1.bf16.msra.mxu0 0
      %2117 = vmatprep.subr.bf16.mxu0 0
      %2118 = vmatpush1.bf16.msra.mxu0 0
      %2119 = vmatprep.subr.bf16.mxu0 0
      %2120 = vmatpush1.bf16.msra.mxu0 0
      %2121 = vmatprep.subr.bf16.mxu0 0
      %2122 = vmatpush1.bf16.msra.mxu0 0
      %2123 = vmatprep.subr.bf16.mxu0 0
      %2124 = vmatpush1.bf16.msra.mxu0 0
      %2125 = vmatprep.subr.bf16.mxu0 0
      %2126 = vmatpush1.bf16.msra.mxu0 0
      %2127 = vmatprep.subr.bf16.mxu0 0
      %2128 = vmatpush1.bf16.msra.mxu0 0
      %2129 = vmatprep.subr.bf16.mxu0 0
      %2130 = vmatpush1.bf16.msra.mxu0 0
      %2131 = vmatprep.subr.bf16.mxu0 0
      %2132 = vmatpush1.bf16.msra.mxu0 0
      %2133 = vmatprep.mubr.bf16.mxu0 0
      %2134 = vmatmul.mubr.bf16.gmra.mrb[0].mxu0 %v2075
      %v2135 = vpop.f32.mrb[0].mxu0
      %v2136 = vadd.f32 0.0, %v2135
      %v2137 = vpop.f32.mrb[0].mxu0
      %v2138 = vpop.f32.mrb[0].mxu0
      %v2139 = vadd.f32 0.0, %v2138
      %v2140 = vpop.f32.mrb[0].mxu0
      %2141 = vmatprep.mubr.bf16.mxu0 0
      %2142 = vmatmul.mubr.bf16.gmra.mrb[0].mxu0 %v2078
      %v2143 = vpop.f32.mrb[0].mxu0
      %v2144 = vadd.f32 0.0, %v2143
      %v2145 = vpop.f32.mrb[0].mxu0
      %v2146 = vpop.f32.mrb[0].mxu0
      %v2147 = vadd.f32 0.0, %v2146
      %v2148 = vpop.f32.mrb[0].mxu0
      %2149 = vmatprep.mubr.bf16.mxu0 0
      %2150 = vmatmul.mubr.bf16.gmra.mrb[0].mxu0 %v2081
      %v2151 = vpop.f32.mrb[0].mxu0
      %v2152 = vadd.f32 0.0, %v2151
      %v2153 = vpop.f32.mrb[0].mxu0
      %v2154 = vpop.f32.mrb[0].mxu0
      %v2155 = vadd.f32 0.0, %v2154
      %v2156 = vpop.f32.mrb[0].mxu0
      %2157 = vmatprep.mubr.bf16.mxu0 0
      %2158 = vmatmul.mubr.bf16.gmra.mrb[0].mxu0 %v2084
      %v2159 = vpop.f32.mrb[0].mxu0
      %v2160 = vadd.f32 0.0, %v2159
      %v2161 = vpop.f32.mrb[0].mxu0
      %v2162 = vpop.f32.mrb[0].mxu0
      %v2163 = vadd.f32 0.0, %v2162
      %v2164 = vpop.f32.mrb[0].mxu0
      %2165 = vmatprep.mubr.bf16.mxu0 0
      %2166 = vmatmul.mubr.bf16.gmra.mrb[0].mxu0 %v2087
      %v2167 = vpop.f32.mrb[0].mxu0
      %v2168 = vadd.f32 0.0, %v2167
      %v2169 = vpop.f32.mrb[0].mxu0
      %v2170 = vpop.f32.mrb[0].mxu0
      %v2171 = vadd.f32 0.0, %v2170
      %v2172 = vpop.f32.mrb[0].mxu0
      %2173 = vmatprep.mubr.bf16.mxu0 0
      %2174 = vmatmul.mubr.bf16.gmra.mrb[0].mxu0 %v2090
      %v2175 = vpop.f32.mrb[0].mxu0
      %v2176 = vadd.f32 0.0, %v2175
      %v2177 = vpop.f32.mrb[0].mxu0
      %v2178 = vpop.f32.mrb[0].mxu0
      %v2179 = vadd.f32 0.0, %v2178
      %v2180 = vpop.f32.mrb[0].mxu0
      %2181 = vmatprep.mubr.bf16.mxu0 0
      %2182 = vmatmul.mubr.bf16.gmra.mrb[0].mxu0 %v2093
      %v2183 = vpop.f32.mrb[0].mxu0
      %v2184 = vadd.f32 0.0, %v2183
      %v2185 = vpop.f32.mrb[0].mxu0
      %v2186 = vpop.f32.mrb[0].mxu0
      %v2187 = vadd.f32 0.0, %v2186
      %v2188 = vpop.f32.mrb[0].mxu0
      %2189 = vmatprep.mubr.bf16.mxu0 0
      %2190 = vmatmul.mubr.bf16.gmra.mrb[0].mxu0 %v2096
      %v2191 = vpop.f32.mrb[0].mxu0
      %v2192 = vadd.f32 0.0, %v2191
      %v2193 = vpop.f32.mrb[0].mxu0
      %v2194 = vpop.f32.mrb[0].mxu0
      %v2195 = vadd.f32 0.0, %v2194
      %v2196 = vpop.f32.mrb[0].mxu0
      %2197 = vdwg.mxu0
      %v2198 = vadd.f32 %v2016, %v2136
      %v2199 = vadd.f32 %v2017, %v2139
      %v2200 = vadd.f32 %v2018, %v2144
      %v2201 = vadd.f32 %v2019, %v2147
      %v2202 = vadd.f32 %v2020, %v2152
      %v2203 = vadd.f32 %v2021, %v2155
      %v2204 = vadd.f32 %v2022, %v2160
      %v2205 = vadd.f32 %v2023, %v2163
      %v2206 = vadd.f32 %v2024, %v2168
      %v2207 = vadd.f32 %v2025, %v2171
      %v2208 = vadd.f32 %v2026, %v2176
      %v2209 = vadd.f32 %v2027, %v2179
      %v2210 = vadd.f32 %v2028, %v2184
      %v2211 = vadd.f32 %v2029, %v2187
      %v2212 = vadd.f32 %v2030, %v2192
      %v2213 = vadd.f32 %v2031, %v2195
      %v2214 = vld [vmem:[%s1665 + $0x8] sm:$0xf]
      %v2215 = vld [vmem:[%s1665 + $0xc] sm:$0xf]
      %v2216 = vld [vmem:[%s1665 + $0x10] sm:$0x1]
      %v2217 = vld [vmem:[%s1665 + $0x1c] sm:$0xf]
      %v2218 = vld [vmem:[%s1665 + $0x20] sm:$0xf]
      %v2219 = vld [vmem:[%s1665 + $0x24] sm:$0x1]
      %v2220 = vld [vmem:[%s1665 + $0x30] sm:$0xf]
      %v2221 = vld [vmem:[%s1665 + $0x34] sm:$0xf]
      %v2222 = vld [vmem:[%s1665 + $0x38] sm:$0x1]
      %v2223 = vld [vmem:[%s1665 + $0x44] sm:$0xf]
      %v2224 = vld [vmem:[%s1665 + $0x48] sm:$0xf]
      %v2225 = vld [vmem:[%s1665 + $0x4c] sm:$0x1]
      %v2226 = vld [vmem:[%s1665 + $0x58] sm:$0xf]
      %v2227 = vld [vmem:[%s1665 + $0x5c] sm:$0xf]
      %v2228 = vld [vmem:[%s1665 + $0x60] sm:$0x1]
      %v2229 = vld [vmem:[%s1665 + $0x6c] sm:$0xf]
      %v2230 = vld [vmem:[%s1665 + $0x70] sm:$0xf]
      %v2231 = vld [vmem:[%s1665 + $0x74] sm:$0x1]
      %v2232 = vld [vmem:[%s1665 + $0x80] sm:$0xf]
      %v2233 = vld [vmem:[%s1665 + $0x84] sm:$0xf]
      %v2234 = vld [vmem:[%s1665 + $0x88] sm:$0x1]
      %v2235 = vld [vmem:[%s1665 + $0x94] sm:$0xf]
      %v2236 = vld [vmem:[%s1665 + $0x98] sm:$0xf]
      %v2237 = vld [vmem:[%s1665 + $0x9c] sm:$0x1]
      %v2239 = vshrl.u32 %v2214, 16
      %v2241 = vrot.slane %v2239, 4
      %v2242 = vshll.u32 %v2214, 16
      %v2244 = vrot.slane %v2242, 5
      %v2245 = vor.u32 %v2241, %v2244
      %v2246 = vrot.slane %v2245, 4
      %v2248 = vshll.u32 %v2215, 16
      %v2250 = vrot.slane %v2248, 5
      %v2251 = vsel %vm1306, %v2246, %v2250
      %v2252 = vshrl.u32 %v2215, 16
      %v2254 = vrot.slane %v2252, 4
      %v2255 = vor.u32 %v2254, %v2250
      %v2256 = vrot.slane %v2255, 4
      %v2258 = vshll.u32 %v2216, 16
      %v2260 = vrot.slane %v2258, 5
      %v2261 = vsel %vm1306, %v2256, %v2260
      %v2263 = vshrl.u32 %v2217, 16
      %v2265 = vrot.slane %v2263, 4
      %v2266 = vshll.u32 %v2217, 16
      %v2268 = vrot.slane %v2266, 5
      %v2269 = vor.u32 %v2265, %v2268
      %v2270 = vrot.slane %v2269, 4
      %v2272 = vshll.u32 %v2218, 16
      %v2274 = vrot.slane %v2272, 5
      %v2275 = vsel %vm1306, %v2270, %v2274
      %v2276 = vshrl.u32 %v2218, 16
      %v2278 = vrot.slane %v2276, 4
      %v2279 = vor.u32 %v2278, %v2274
      %v2280 = vrot.slane %v2279, 4
      %v2282 = vshll.u32 %v2219, 16
      %v2284 = vrot.slane %v2282, 5
      %v2285 = vsel %vm1306, %v2280, %v2284
      %v2287 = vshrl.u32 %v2220, 16
      %v2289 = vrot.slane %v2287, 4
      %v2290 = vshll.u32 %v2220, 16
      %v2292 = vrot.slane %v2290, 5
      %v2293 = vor.u32 %v2289, %v2292
      %v2294 = vrot.slane %v2293, 4
      %v2296 = vshll.u32 %v2221, 16
      %v2298 = vrot.slane %v2296, 5
      %v2299 = vsel %vm1306, %v2294, %v2298
      %v2300 = vshrl.u32 %v2221, 16
      %v2302 = vrot.slane %v2300, 4
      %v2303 = vor.u32 %v2302, %v2298
      %v2304 = vrot.slane %v2303, 4
      %v2306 = vshll.u32 %v2222, 16
      %v2308 = vrot.slane %v2306, 5
      %v2309 = vsel %vm1306, %v2304, %v2308
      %v2311 = vshrl.u32 %v2223, 16
      %v2313 = vrot.slane %v2311, 4
      %v2314 = vshll.u32 %v2223, 16
      %v2316 = vrot.slane %v2314, 5
      %v2317 = vor.u32 %v2313, %v2316
      %v2318 = vrot.slane %v2317, 4
      %v2320 = vshll.u32 %v2224, 16
      %v2322 = vrot.slane %v2320, 5
      %v2323 = vsel %vm1306, %v2318, %v2322
      %v2324 = vshrl.u32 %v2224, 16
      %v2326 = vrot.slane %v2324, 4
      %v2327 = vor.u32 %v2326, %v2322
      %v2328 = vrot.slane %v2327, 4
      %v2330 = vshll.u32 %v2225, 16
      %v2332 = vrot.slane %v2330, 5
      %v2333 = vsel %vm1306, %v2328, %v2332
      %v2335 = vshrl.u32 %v2226, 16
      %v2337 = vrot.slane %v2335, 4
      %v2338 = vshll.u32 %v2226, 16
      %v2340 = vrot.slane %v2338, 5
      %v2341 = vor.u32 %v2337, %v2340
      %v2342 = vrot.slane %v2341, 4
      %v2344 = vshll.u32 %v2227, 16
      %v2346 = vrot.slane %v2344, 5
      %v2347 = vsel %vm1306, %v2342, %v2346
      %v2348 = vshrl.u32 %v2227, 16
      %v2350 = vrot.slane %v2348, 4
      %v2351 = vor.u32 %v2350, %v2346
      %v2352 = vrot.slane %v2351, 4
      %v2354 = vshll.u32 %v2228, 16
      %v2356 = vrot.slane %v2354, 5
      %v2357 = vsel %vm1306, %v2352, %v2356
      %v2359 = vshrl.u32 %v2229, 16
      %v2361 = vrot.slane %v2359, 4
      %v2362 = vshll.u32 %v2229, 16
      %v2364 = vrot.slane %v2362, 5
      %v2365 = vor.u32 %v2361, %v2364
      %v2366 = vrot.slane %v2365, 4
      %v2368 = vshll.u32 %v2230, 16
      %v2370 = vrot.slane %v2368, 5
      %v2371 = vsel %vm1306, %v2366, %v2370
      %v2372 = vshrl.u32 %v2230, 16
      %v2374 = vrot.slane %v2372, 4
      %v2375 = vor.u32 %v2374, %v2370
      %v2376 = vrot.slane %v2375, 4
      %v2378 = vshll.u32 %v2231, 16
      %v2380 = vrot.slane %v2378, 5
      %v2381 = vsel %vm1306, %v2376, %v2380
      %v2383 = vshrl.u32 %v2232, 16
      %v2385 = vrot.slane %v2383, 4
      %v2386 = vshll.u32 %v2232, 16
      %v2388 = vrot.slane %v2386, 5
      %v2389 = vor.u32 %v2385, %v2388
      %v2390 = vrot.slane %v2389, 4
      %v2392 = vshll.u32 %v2233, 16
      %v2394 = vrot.slane %v2392, 5
      %v2395 = vsel %vm1306, %v2390, %v2394
      %v2396 = vshrl.u32 %v2233, 16
      %v2398 = vrot.slane %v2396, 4
      %v2399 = vor.u32 %v2398, %v2394
      %v2400 = vrot.slane %v2399, 4
      %v2402 = vshll.u32 %v2234, 16
      %v2404 = vrot.slane %v2402, 5
      %v2405 = vsel %vm1306, %v2400, %v2404
      %v2407 = vshrl.u32 %v2235, 16
      %v2409 = vrot.slane %v2407, 4
      %v2410 = vshll.u32 %v2235, 16
      %v2412 = vrot.slane %v2410, 5
      %v2413 = vor.u32 %v2409, %v2412
      %v2414 = vrot.slane %v2413, 4
      %v2416 = vshll.u32 %v2236, 16
      %v2418 = vrot.slane %v2416, 5
      %v2419 = vsel %vm1306, %v2414, %v2418
      %v2420 = vshrl.u32 %v2236, 16
      %v2422 = vrot.slane %v2420, 4
      %v2423 = vor.u32 %v2422, %v2418
      %v2424 = vrot.slane %v2423, 4
      %v2426 = vshll.u32 %v2237, 16
      %v2428 = vrot.slane %v2426, 5
      %v2429 = vsel %vm1306, %v2424, %v2428
      %s2430 = scalar_lea.vmem %s3, 10
      %v2431 = vld [vmem:[%s2430] sm:$0x3]
      %v2432 = vunpack.c.l.b16 %v2251
      %v2433 = vunpack.c.l.b16 %v2261
      %v2434 = vunpack.c.l.b16 %v2275
      %v2435 = vunpack.c.l.b16 %v2285
      %v2436 = vunpack.c.l.b16 %v2299
      %v2437 = vunpack.c.l.b16 %v2309
      %v2438 = vunpack.c.l.b16 %v2323
      %v2439 = vunpack.c.l.b16 %v2333
      %v2440 = vunpack.c.l.b16 %v2347
      %v2441 = vunpack.c.l.b16 %v2357
      %v2442 = vunpack.c.l.b16 %v2371
      %v2443 = vunpack.c.l.b16 %v2381
      %v2444 = vunpack.c.l.b16 %v2395
      %v2445 = vunpack.c.l.b16 %v2405
      %v2446 = vunpack.c.l.b16 %v2419
      %v2447 = vunpack.c.l.b16 %v2429
      %v2448 = vpack.c.b16 %v2433, %v2432
      %v2449 = vpack.c.b16 %v2435, %v2434
      %v2450 = vpack.c.b16 %v2437, %v2436
      %v2451 = vpack.c.b16 %v2439, %v2438
      %v2452 = vpack.c.b16 %v2441, %v2440
      %v2453 = vpack.c.b16 %v2443, %v2442
      %v2454 = vpack.c.b16 %v2445, %v2444
      %v2455 = vpack.c.b16 %v2447, %v2446
      %v2457 = vsel %vm1006, %v2448, 0
      %v2460 = vsel %vm1006, %v2449, 0
      %v2463 = vsel %vm1006, %v2450, 0
      %v2466 = vsel %vm1006, %v2451, 0
      %v2469 = vsel %vm1006, %v2452, 0
      %v2472 = vsel %vm1006, %v2453, 0
      %v2475 = vsel %vm1006, %v2454, 0
      %v2478 = vsel %vm1006, %v2455, 0
      %v2481 = vsel %vm1031, %v2431, 0
      %2483 = vmatprep.subr.bf16.mxu0 0
      %2484 = vmatpush1.bf16.msra.mxu0 %v2481
      %2485 = vmatprep.subr.bf16.mxu0 0
      %2486 = vmatpush1.bf16.msra.mxu0 0
      %2487 = vmatprep.subr.bf16.mxu0 0
      %2488 = vmatpush1.bf16.msra.mxu0 0
      %2489 = vmatprep.subr.bf16.mxu0 0
      %2490 = vmatpush1.bf16.msra.mxu0 0
      %2491 = vmatprep.subr.bf16.mxu0 0
      %2492 = vmatpush1.bf16.msra.mxu0 0
      %2493 = vmatprep.subr.bf16.mxu0 0
      %2494 = vmatpush1.bf16.msra.mxu0 0
      %2495 = vmatprep.subr.bf16.mxu0 0
      %2496 = vmatpush1.bf16.msra.mxu0 0
      %2497 = vmatprep.subr.bf16.mxu0 0
      %2498 = vmatpush1.bf16.msra.mxu0 0
      %2499 = vmatprep.subr.bf16.mxu0 0
      %2500 = vmatpush1.bf16.msra.mxu0 0
      %2501 = vmatprep.subr.bf16.mxu0 0
      %2502 = vmatpush1.bf16.msra.mxu0 0
      %2503 = vmatprep.subr.bf16.mxu0 0
      %2504 = vmatpush1.bf16.msra.mxu0 0
      %2505 = vmatprep.subr.bf16.mxu0 0
      %2506 = vmatpush1.bf16.msra.mxu0 0
      %2507 = vmatprep.subr.bf16.mxu0 0
      %2508 = vmatpush1.bf16.msra.mxu0 0
      %2509 = vmatprep.subr.bf16.mxu0 0
      %2510 = vmatpush1.bf16.msra.mxu0 0
      %2511 = vmatprep.subr.bf16.mxu0 0
      %2512 = vmatpush1.bf16.msra.mxu0 0
      %2513 = vmatprep.subr.bf16.mxu0 0
      %2514 = vmatpush1.bf16.msra.mxu0 0
      %2515 = vmatprep.mubr.bf16.mxu0 0
      %2516 = vmatmul.mubr.bf16.gmra.mrb[0].mxu0 %v2457
      %v2517 = vpop.f32.mrb[0].mxu0
      %v2518 = vadd.f32 0.0, %v2517
      %v2519 = vpop.f32.mrb[0].mxu0
      %v2520 = vpop.f32.mrb[0].mxu0
      %v2521 = vadd.f32 0.0, %v2520
      %v2522 = vpop.f32.mrb[0].mxu0
      %2523 = vmatprep.mubr.bf16.mxu0 0
      %2524 = vmatmul.mubr.bf16.gmra.mrb[0].mxu0 %v2460
      %v2525 = vpop.f32.mrb[0].mxu0
      %v2526 = vadd.f32 0.0, %v2525
      %v2527 = vpop.f32.mrb[0].mxu0
      %v2528 = vpop.f32.mrb[0].mxu0
      %v2529 = vadd.f32 0.0, %v2528
      %v2530 = vpop.f32.mrb[0].mxu0
      %2531 = vmatprep.mubr.bf16.mxu0 0
      %2532 = vmatmul.mubr.bf16.gmra.mrb[0].mxu0 %v2463
      %v2533 = vpop.f32.mrb[0].mxu0
      %v2534 = vadd.f32 0.0, %v2533
      %v2535 = vpop.f32.mrb[0].mxu0
      %v2536 = vpop.f32.mrb[0].mxu0
      %v2537 = vadd.f32 0.0, %v2536
      %v2538 = vpop.f32.mrb[0].mxu0
      %2539 = vmatprep.mubr.bf16.mxu0 0
      %2540 = vmatmul.mubr.bf16.gmra.mrb[0].mxu0 %v2466
      %v2541 = vpop.f32.mrb[0].mxu0
      %v2542 = vadd.f32 0.0, %v2541
      %v2543 = vpop.f32.mrb[0].mxu0
      %v2544 = vpop.f32.mrb[0].mxu0
      %v2545 = vadd.f32 0.0, %v2544
      %v2546 = vpop.f32.mrb[0].mxu0
      %2547 = vmatprep.mubr.bf16.mxu0 0
      %2548 = vmatmul.mubr.bf16.gmra.mrb[0].mxu0 %v2469
      %v2549 = vpop.f32.mrb[0].mxu0
      %v2550 = vadd.f32 0.0, %v2549
      %v2551 = vpop.f32.mrb[0].mxu0
      %v2552 = vpop.f32.mrb[0].mxu0
      %v2553 = vadd.f32 0.0, %v2552
      %v2554 = vpop.f32.mrb[0].mxu0
      %2555 = vmatprep.mubr.bf16.mxu0 0
      %2556 = vmatmul.mubr.bf16.gmra.mrb[0].mxu0 %v2472
      %v2557 = vpop.f32.mrb[0].mxu0
      %v2558 = vadd.f32 0.0, %v2557
      %v2559 = vpop.f32.mrb[0].mxu0
      %v2560 = vpop.f32.mrb[0].mxu0
      %v2561 = vadd.f32 0.0, %v2560
      %v2562 = vpop.f32.mrb[0].mxu0
      %2563 = vmatprep.mubr.bf16.mxu0 0
      %2564 = vmatmul.mubr.bf16.gmra.mrb[0].mxu0 %v2475
      %v2565 = vpop.f32.mrb[0].mxu0
      %v2566 = vadd.f32 0.0, %v2565
      %v2567 = vpop.f32.mrb[0].mxu0
      %v2568 = vpop.f32.mrb[0].mxu0
      %v2569 = vadd.f32 0.0, %v2568
      %v2570 = vpop.f32.mrb[0].mxu0
      %2571 = vmatprep.mubr.bf16.mxu0 0
      %2572 = vmatmul.mubr.bf16.gmra.mrb[0].mxu0 %v2478
      %v2573 = vpop.f32.mrb[0].mxu0
      %v2574 = vadd.f32 0.0, %v2573
      %v2575 = vpop.f32.mrb[0].mxu0
      %v2576 = vpop.f32.mrb[0].mxu0
      %v2577 = vadd.f32 0.0, %v2576
      %v2578 = vpop.f32.mrb[0].mxu0
      %2579 = vdwg.mxu0
      %v2580 = vadd.f32 %v2198, %v2518
      %v2581 = vadd.f32 %v2199, %v2521
      %v2582 = vadd.f32 %v2200, %v2526
      %v2583 = vadd.f32 %v2201, %v2529
      %v2584 = vadd.f32 %v2202, %v2534
      %v2585 = vadd.f32 %v2203, %v2537
      %v2586 = vadd.f32 %v2204, %v2542
      %v2587 = vadd.f32 %v2205, %v2545
      %v2588 = vadd.f32 %v2206, %v2550
      %v2589 = vadd.f32 %v2207, %v2553
      %v2590 = vadd.f32 %v2208, %v2558
      %v2591 = vadd.f32 %v2209, %v2561
      %v2592 = vadd.f32 %v2210, %v2566
      %v2593 = vadd.f32 %v2211, %v2569
      %v2594 = vadd.f32 %v2212, %v2574
      %v2595 = vadd.f32 %v2213, %v2577
      %s2596 = scalar_lea.vmem [#allocation2], 40
      %v2597 = vld [vmem:[%s2596 + $0x4] sm:$0x8]
      %v2598 = vld [vmem:[%s2596 + $0x8] sm:$0xf]
      %v2599 = vld [vmem:[%s2596 + $0xc] sm:$0xf]
      %v2600 = vld [vmem:[%s2596 + $0x18] sm:$0x8]
      %v2601 = vld [vmem:[%s2596 + $0x1c] sm:$0xf]
      %v2602 = vld [vmem:[%s2596 + $0x20] sm:$0xf]
      %v2603 = vld [vmem:[%s2596 + $0x2c] sm:$0x8]
      %v2604 = vld [vmem:[%s2596 + $0x30] sm:$0xf]
      %v2605 = vld [vmem:[%s2596 + $0x34] sm:$0xf]
      %v2606 = vld [vmem:[%s2596 + $0x40] sm:$0x8]
      %v2607 = vld [vmem:[%s2596 + $0x44] sm:$0xf]
      %v2608 = vld [vmem:[%s2596 + $0x48] sm:$0xf]
      %v2609 = vld [vmem:[%s2596 + $0x54] sm:$0x8]
      %v2610 = vld [vmem:[%s2596 + $0x58] sm:$0xf]
      %v2611 = vld [vmem:[%s2596 + $0x5c] sm:$0xf]
      %v2612 = vld [vmem:[%s2596 + $0x68] sm:$0x8]
      %v2613 = vld [vmem:[%s2596 + $0x6c] sm:$0xf]
      %v2614 = vld [vmem:[%s2596 + $0x70] sm:$0xf]
      %v2615 = vld [vmem:[%s2596 + $0x7c] sm:$0x8]
      %v2616 = vld [vmem:[%s2596 + $0x80] sm:$0xf]
      %v2617 = vld [vmem:[%s2596 + $0x84] sm:$0xf]
      %v2618 = vld [vmem:[%s2596 + $0x90] sm:$0x8]
      %v2619 = vld [vmem:[%s2596 + $0x94] sm:$0xf]
      %v2620 = vld [vmem:[%s2596 + $0x98] sm:$0xf]
      %v2622 = vshrl.u32 %v2597, 16
      %v2624 = vrot.slane %v2622, 7
      %v2625 = vrot.slane %v2624, 4
      %v2627 = vshrl.u32 %v2598, 16
      %v2629 = vrot.slane %v2627, 7
      %v2630 = vshll.u32 %v2598, 16
      %v2632 = vor.u32 %v2629, %v2630
      %v2633 = vsel %vm786, %v2625, %v2632
      %v2634 = vrot.slane %v2629, 4
      %v2636 = vshrl.u32 %v2599, 16
      %v2638 = vrot.slane %v2636, 7
      %v2639 = vshll.u32 %v2599, 16
      %v2641 = vor.u32 %v2638, %v2639
      %v2642 = vsel %vm786, %v2634, %v2641
      %v2644 = vshrl.u32 %v2600, 16
      %v2646 = vrot.slane %v2644, 7
      %v2647 = vrot.slane %v2646, 4
      %v2649 = vshrl.u32 %v2601, 16
      %v2651 = vrot.slane %v2649, 7
      %v2652 = vshll.u32 %v2601, 16
      %v2654 = vor.u32 %v2651, %v2652
      %v2655 = vsel %vm786, %v2647, %v2654
      %v2656 = vrot.slane %v2651, 4
      %v2658 = vshrl.u32 %v2602, 16
      %v2660 = vrot.slane %v2658, 7
      %v2661 = vshll.u32 %v2602, 16
      %v2663 = vor.u32 %v2660, %v2661
      %v2664 = vsel %vm786, %v2656, %v2663
      %v2666 = vshrl.u32 %v2603, 16
      %v2668 = vrot.slane %v2666, 7
      %v2669 = vrot.slane %v2668, 4
      %v2671 = vshrl.u32 %v2604, 16
      %v2673 = vrot.slane %v2671, 7
      %v2674 = vshll.u32 %v2604, 16
      %v2676 = vor.u32 %v2673, %v2674
      %v2677 = vsel %vm786, %v2669, %v2676
      %v2678 = vrot.slane %v2673, 4
      %v2680 = vshrl.u32 %v2605, 16
      %v2682 = vrot.slane %v2680, 7
      %v2683 = vshll.u32 %v2605, 16
      %v2685 = vor.u32 %v2682, %v2683
      %v2686 = vsel %vm786, %v2678, %v2685
      %v2688 = vshrl.u32 %v2606, 16
      %v2690 = vrot.slane %v2688, 7
      %v2691 = vrot.slane %v2690, 4
      %v2693 = vshrl.u32 %v2607, 16
      %v2695 = vrot.slane %v2693, 7
      %v2696 = vshll.u32 %v2607, 16
      %v2698 = vor.u32 %v2695, %v2696
      %v2699 = vsel %vm786, %v2691, %v2698
      %v2700 = vrot.slane %v2695, 4
      %v2702 = vshrl.u32 %v2608, 16
      %v2704 = vrot.slane %v2702, 7
      %v2705 = vshll.u32 %v2608, 16
      %v2707 = vor.u32 %v2704, %v2705
      %v2708 = vsel %vm786, %v2700, %v2707
      %v2710 = vshrl.u32 %v2609, 16
      %v2712 = vrot.slane %v2710, 7
      %v2713 = vrot.slane %v2712, 4
      %v2715 = vshrl.u32 %v2610, 16
      %v2717 = vrot.slane %v2715, 7
      %v2718 = vshll.u32 %v2610, 16
      %v2720 = vor.u32 %v2717, %v2718
      %v2721 = vsel %vm786, %v2713, %v2720
      %v2722 = vrot.slane %v2717, 4
      %v2724 = vshrl.u32 %v2611, 16
      %v2726 = vrot.slane %v2724, 7
      %v2727 = vshll.u32 %v2611, 16
      %v2729 = vor.u32 %v2726, %v2727
      %v2730 = vsel %vm786, %v2722, %v2729
      %v2732 = vshrl.u32 %v2612, 16
      %v2734 = vrot.slane %v2732, 7
      %v2735 = vrot.slane %v2734, 4
      %v2737 = vshrl.u32 %v2613, 16
      %v2739 = vrot.slane %v2737, 7
      %v2740 = vshll.u32 %v2613, 16
      %v2742 = vor.u32 %v2739, %v2740
      %v2743 = vsel %vm786, %v2735, %v2742
      %v2744 = vrot.slane %v2739, 4
      %v2746 = vshrl.u32 %v2614, 16
      %v2748 = vrot.slane %v2746, 7
      %v2749 = vshll.u32 %v2614, 16
      %v2751 = vor.u32 %v2748, %v2749
      %v2752 = vsel %vm786, %v2744, %v2751
      %v2754 = vshrl.u32 %v2615, 16
      %v2756 = vrot.slane %v2754, 7
      %v2757 = vrot.slane %v2756, 4
      %v2759 = vshrl.u32 %v2616, 16
      %v2761 = vrot.slane %v2759, 7
      %v2762 = vshll.u32 %v2616, 16
      %v2764 = vor.u32 %v2761, %v2762
      %v2765 = vsel %vm786, %v2757, %v2764
      %v2766 = vrot.slane %v2761, 4
      %v2768 = vshrl.u32 %v2617, 16
      %v2770 = vrot.slane %v2768, 7
      %v2771 = vshll.u32 %v2617, 16
      %v2773 = vor.u32 %v2770, %v2771
      %v2774 = vsel %vm786, %v2766, %v2773
      %v2776 = vshrl.u32 %v2618, 16
      %v2778 = vrot.slane %v2776, 7
      %v2779 = vrot.slane %v2778, 4
      %v2781 = vshrl.u32 %v2619, 16
      %v2783 = vrot.slane %v2781, 7
      %v2784 = vshll.u32 %v2619, 16
      %v2786 = vor.u32 %v2783, %v2784
      %v2787 = vsel %vm786, %v2779, %v2786
      %v2788 = vrot.slane %v2783, 4
      %v2790 = vshrl.u32 %v2620, 16
      %v2792 = vrot.slane %v2790, 7
      %v2793 = vshll.u32 %v2620, 16
      %v2795 = vor.u32 %v2792, %v2793
      %v2796 = vsel %vm786, %v2788, %v2795
      %s2797 = scalar_lea.vmem %s3, 12
      %v2798 = vld [vmem:[%s2797] sm:$0x3]
      %v2799 = vunpack.c.l.b16 %v2633
      %v2800 = vunpack.c.l.b16 %v2642
      %v2801 = vunpack.c.l.b16 %v2655
      %v2802 = vunpack.c.l.b16 %v2664
      %v2803 = vunpack.c.l.b16 %v2677
      %v2804 = vunpack.c.l.b16 %v2686
      %v2805 = vunpack.c.l.b16 %v2699
      %v2806 = vunpack.c.l.b16 %v2708
      %v2807 = vunpack.c.l.b16 %v2721
      %v2808 = vunpack.c.l.b16 %v2730
      %v2809 = vunpack.c.l.b16 %v2743
      %v2810 = vunpack.c.l.b16 %v2752
      %v2811 = vunpack.c.l.b16 %v2765
      %v2812 = vunpack.c.l.b16 %v2774
      %v2813 = vunpack.c.l.b16 %v2787
      %v2814 = vunpack.c.l.b16 %v2796
      %v2815 = vpack.c.b16 %v2800, %v2799
      %v2816 = vpack.c.b16 %v2802, %v2801
      %v2817 = vpack.c.b16 %v2804, %v2803
      %v2818 = vpack.c.b16 %v2806, %v2805
      %v2819 = vpack.c.b16 %v2808, %v2807
      %v2820 = vpack.c.b16 %v2810, %v2809
      %v2821 = vpack.c.b16 %v2812, %v2811
      %v2822 = vpack.c.b16 %v2814, %v2813
      %v2824 = vsel %vm1006, %v2815, 0
      %v2827 = vsel %vm1006, %v2816, 0
      %v2830 = vsel %vm1006, %v2817, 0
      %v2833 = vsel %vm1006, %v2818, 0
      %v2836 = vsel %vm1006, %v2819, 0
      %v2839 = vsel %vm1006, %v2820, 0
      %v2842 = vsel %vm1006, %v2821, 0
      %v2845 = vsel %vm1006, %v2822, 0
      %v2848 = vsel %vm1031, %v2798, 0
      %2850 = vmatprep.subr.bf16.mxu0 0
      %2851 = vmatpush1.bf16.msra.mxu0 %v2848
      %2852 = vmatprep.subr.bf16.mxu0 0
      %2853 = vmatpush1.bf16.msra.mxu0 0
      %2854 = vmatprep.subr.bf16.mxu0 0
      %2855 = vmatpush1.bf16.msra.mxu0 0
      %2856 = vmatprep.subr.bf16.mxu0 0
      %2857 = vmatpush1.bf16.msra.mxu0 0
      %2858 = vmatprep.subr.bf16.mxu0 0
      %2859 = vmatpush1.bf16.msra.mxu0 0
      %2860 = vmatprep.subr.bf16.mxu0 0
      %2861 = vmatpush1.bf16.msra.mxu0 0
      %2862 = vmatprep.subr.bf16.mxu0 0
      %2863 = vmatpush1.bf16.msra.mxu0 0
      %2864 = vmatprep.subr.bf16.mxu0 0
      %2865 = vmatpush1.bf16.msra.mxu0 0
      %2866 = vmatprep.subr.bf16.mxu0 0
      %2867 = vmatpush1.bf16.msra.mxu0 0
      %2868 = vmatprep.subr.bf16.mxu0 0
      %2869 = vmatpush1.bf16.msra.mxu0 0
      %2870 = vmatprep.subr.bf16.mxu0 0
      %2871 = vmatpush1.bf16.msra.mxu0 0
      %2872 = vmatprep.subr.bf16.mxu0 0
      %2873 = vmatpush1.bf16.msra.mxu0 0
      %2874 = vmatprep.subr.bf16.mxu0 0
      %2875 = vmatpush1.bf16.msra.mxu0 0
      %2876 = vmatprep.subr.bf16.mxu0 0
      %2877 = vmatpush1.bf16.msra.mxu0 0
      %2878 = vmatprep.subr.bf16.mxu0 0
      %2879 = vmatpush1.bf16.msra.mxu0 0
      %2880 = vmatprep.subr.bf16.mxu0 0
      %2881 = vmatpush1.bf16.msra.mxu0 0
      %2882 = vmatprep.mubr.bf16.mxu0 0
      %2883 = vmatmul.mubr.bf16.gmra.mrb[0].mxu0 %v2824
      %v2884 = vpop.f32.mrb[0].mxu0
      %v2885 = vadd.f32 0.0, %v2884
      %v2886 = vpop.f32.mrb[0].mxu0
      %v2887 = vpop.f32.mrb[0].mxu0
      %v2888 = vadd.f32 0.0, %v2887
      %v2889 = vpop.f32.mrb[0].mxu0
      %2890 = vmatprep.mubr.bf16.mxu0 0
      %2891 = vmatmul.mubr.bf16.gmra.mrb[0].mxu0 %v2827
      %v2892 = vpop.f32.mrb[0].mxu0
      %v2893 = vadd.f32 0.0, %v2892
      %v2894 = vpop.f32.mrb[0].mxu0
      %v2895 = vpop.f32.mrb[0].mxu0
      %v2896 = vadd.f32 0.0, %v2895
      %v2897 = vpop.f32.mrb[0].mxu0
      %2898 = vmatprep.mubr.bf16.mxu0 0
      %2899 = vmatmul.mubr.bf16.gmra.mrb[0].mxu0 %v2830
      %v2900 = vpop.f32.mrb[0].mxu0
      %v2901 = vadd.f32 0.0, %v2900
      %v2902 = vpop.f32.mrb[0].mxu0
      %v2903 = vpop.f32.mrb[0].mxu0
      %v2904 = vadd.f32 0.0, %v2903
      %v2905 = vpop.f32.mrb[0].mxu0
      %2906 = vmatprep.mubr.bf16.mxu0 0
      %2907 = vmatmul.mubr.bf16.gmra.mrb[0].mxu0 %v2833
      %v2908 = vpop.f32.mrb[0].mxu0
      %v2909 = vadd.f32 0.0, %v2908
      %v2910 = vpop.f32.mrb[0].mxu0
      %v2911 = vpop.f32.mrb[0].mxu0
      %v2912 = vadd.f32 0.0, %v2911
      %v2913 = vpop.f32.mrb[0].mxu0
      %2914 = vmatprep.mubr.bf16.mxu0 0
      %2915 = vmatmul.mubr.bf16.gmra.mrb[0].mxu0 %v2836
      %v2916 = vpop.f32.mrb[0].mxu0
      %v2917 = vadd.f32 0.0, %v2916
      %v2918 = vpop.f32.mrb[0].mxu0
      %v2919 = vpop.f32.mrb[0].mxu0
      %v2920 = vadd.f32 0.0, %v2919
      %v2921 = vpop.f32.mrb[0].mxu0
      %2922 = vmatprep.mubr.bf16.mxu0 0
      %2923 = vmatmul.mubr.bf16.gmra.mrb[0].mxu0 %v2839
      %v2924 = vpop.f32.mrb[0].mxu0
      %v2925 = vadd.f32 0.0, %v2924
      %v2926 = vpop.f32.mrb[0].mxu0
      %v2927 = vpop.f32.mrb[0].mxu0
      %v2928 = vadd.f32 0.0, %v2927
      %v2929 = vpop.f32.mrb[0].mxu0
      %2930 = vmatprep.mubr.bf16.mxu0 0
      %2931 = vmatmul.mubr.bf16.gmra.mrb[0].mxu0 %v2842
      %v2932 = vpop.f32.mrb[0].mxu0
      %v2933 = vadd.f32 0.0, %v2932
      %v2934 = vpop.f32.mrb[0].mxu0
      %v2935 = vpop.f32.mrb[0].mxu0
      %v2936 = vadd.f32 0.0, %v2935
      %v2937 = vpop.f32.mrb[0].mxu0
      %2938 = vmatprep.mubr.bf16.mxu0 0
      %2939 = vmatmul.mubr.bf16.gmra.mrb[0].mxu0 %v2845
      %v2940 = vpop.f32.mrb[0].mxu0
      %v2941 = vadd.f32 0.0, %v2940
      %v2942 = vpop.f32.mrb[0].mxu0
      %v2943 = vpop.f32.mrb[0].mxu0
      %v2944 = vadd.f32 0.0, %v2943
      %v2945 = vpop.f32.mrb[0].mxu0
      %2946 = vdwg.mxu0
      %v2947 = vadd.f32 %v2580, %v2885
      %v2948 = vadd.f32 %v2581, %v2888
      %v2949 = vadd.f32 %v2582, %v2893
      %v2950 = vadd.f32 %v2583, %v2896
      %v2951 = vadd.f32 %v2584, %v2901
      %v2952 = vadd.f32 %v2585, %v2904
      %v2953 = vadd.f32 %v2586, %v2909
      %v2954 = vadd.f32 %v2587, %v2912
      %v2955 = vadd.f32 %v2588, %v2917
      %v2956 = vadd.f32 %v2589, %v2920
      %v2957 = vadd.f32 %v2590, %v2925
      %v2958 = vadd.f32 %v2591, %v2928
      %v2959 = vadd.f32 %v2592, %v2933
      %v2960 = vadd.f32 %v2593, %v2936
      %v2961 = vadd.f32 %v2594, %v2941
      %v2962 = vadd.f32 %v2595, %v2944
      %s2963 = scalar_lea.vmem %s3, 14
      %v2964 = vld [vmem:[%s2963] sm:$0x3]
      %v2981 = vunpack.c.l.b16 %v2598
      %v2982 = vunpack.c.l.b16 %v2599
      %v2983 = vunpack.c.l.b16 %v2601
      %v2984 = vunpack.c.l.b16 %v2602
      %v2985 = vunpack.c.l.b16 %v2604
      %v2986 = vunpack.c.l.b16 %v2605
      %v2987 = vunpack.c.l.b16 %v2607
      %v2988 = vunpack.c.l.b16 %v2608
      %v2989 = vunpack.c.l.b16 %v2610
      %v2990 = vunpack.c.l.b16 %v2611
      %v2991 = vunpack.c.l.b16 %v2613
      %v2992 = vunpack.c.l.b16 %v2614
      %v2993 = vunpack.c.l.b16 %v2616
      %v2994 = vunpack.c.l.b16 %v2617
      %v2995 = vunpack.c.l.b16 %v2619
      %v2996 = vunpack.c.l.b16 %v2620
      %v2997 = vpack.c.b16 %v2982, %v2981
      %v2998 = vpack.c.b16 %v2984, %v2983
      %v2999 = vpack.c.b16 %v2986, %v2985
      %v3000 = vpack.c.b16 %v2988, %v2987
      %v3001 = vpack.c.b16 %v2990, %v2989
      %v3002 = vpack.c.b16 %v2992, %v2991
      %v3003 = vpack.c.b16 %v2994, %v2993
      %v3004 = vpack.c.b16 %v2996, %v2995
      %v3006 = vsel %vm1006, %v2997, 0
      %v3009 = vsel %vm1006, %v2998, 0
      %v3012 = vsel %vm1006, %v2999, 0
      %v3015 = vsel %vm1006, %v3000, 0
      %v3018 = vsel %vm1006, %v3001, 0
      %v3021 = vsel %vm1006, %v3002, 0
      %v3024 = vsel %vm1006, %v3003, 0
      %v3027 = vsel %vm1006, %v3004, 0
      %v3030 = vsel %vm1031, %v2964, 0
      %3032 = vmatprep.subr.bf16.mxu0 0
      %3033 = vmatpush1.bf16.msra.mxu0 %v3030
      %3034 = vmatprep.subr.bf16.mxu0 0
      %3035 = vmatpush1.bf16.msra.mxu0 0
      %3036 = vmatprep.subr.bf16.mxu0 0
      %3037 = vmatpush1.bf16.msra.mxu0 0
      %3038 = vmatprep.subr.bf16.mxu0 0
      %3039 = vmatpush1.bf16.msra.mxu0 0
      %3040 = vmatprep.subr.bf16.mxu0 0
      %3041 = vmatpush1.bf16.msra.mxu0 0
      %3042 = vmatprep.subr.bf16.mxu0 0
      %3043 = vmatpush1.bf16.msra.mxu0 0
      %3044 = vmatprep.subr.bf16.mxu0 0
      %3045 = vmatpush1.bf16.msra.mxu0 0
      %3046 = vmatprep.subr.bf16.mxu0 0
      %3047 = vmatpush1.bf16.msra.mxu0 0
      %3048 = vmatprep.subr.bf16.mxu0 0
      %3049 = vmatpush1.bf16.msra.mxu0 0
      %3050 = vmatprep.subr.bf16.mxu0 0
      %3051 = vmatpush1.bf16.msra.mxu0 0
      %3052 = vmatprep.subr.bf16.mxu0 0
      %3053 = vmatpush1.bf16.msra.mxu0 0
      %3054 = vmatprep.subr.bf16.mxu0 0
      %3055 = vmatpush1.bf16.msra.mxu0 0
      %3056 = vmatprep.subr.bf16.mxu0 0
      %3057 = vmatpush1.bf16.msra.mxu0 0
      %3058 = vmatprep.subr.bf16.mxu0 0
      %3059 = vmatpush1.bf16.msra.mxu0 0
      %3060 = vmatprep.subr.bf16.mxu0 0
      %3061 = vmatpush1.bf16.msra.mxu0 0
      %3062 = vmatprep.subr.bf16.mxu0 0
      %3063 = vmatpush1.bf16.msra.mxu0 0
      %3064 = vmatprep.mubr.bf16.mxu0 0
      %3065 = vmatmul.mubr.bf16.gmra.mrb[0].mxu0 %v3006
      %v3066 = vpop.f32.mrb[0].mxu0
      %v3067 = vadd.f32 0.0, %v3066
      %v3068 = vpop.f32.mrb[0].mxu0
      %v3069 = vpop.f32.mrb[0].mxu0
      %v3070 = vadd.f32 0.0, %v3069
      %v3071 = vpop.f32.mrb[0].mxu0
      %3072 = vmatprep.mubr.bf16.mxu0 0
      %3073 = vmatmul.mubr.bf16.gmra.mrb[0].mxu0 %v3009
      %v3074 = vpop.f32.mrb[0].mxu0
      %v3075 = vadd.f32 0.0, %v3074
      %v3076 = vpop.f32.mrb[0].mxu0
      %v3077 = vpop.f32.mrb[0].mxu0
      %v3078 = vadd.f32 0.0, %v3077
      %v3079 = vpop.f32.mrb[0].mxu0
      %3080 = vmatprep.mubr.bf16.mxu0 0
      %3081 = vmatmul.mubr.bf16.gmra.mrb[0].mxu0 %v3012
      %v3082 = vpop.f32.mrb[0].mxu0
      %v3083 = vadd.f32 0.0, %v3082
      %v3084 = vpop.f32.mrb[0].mxu0
      %v3085 = vpop.f32.mrb[0].mxu0
      %v3086 = vadd.f32 0.0, %v3085
      %v3087 = vpop.f32.mrb[0].mxu0
      %3088 = vmatprep.mubr.bf16.mxu0 0
      %3089 = vmatmul.mubr.bf16.gmra.mrb[0].mxu0 %v3015
      %v3090 = vpop.f32.mrb[0].mxu0
      %v3091 = vadd.f32 0.0, %v3090
      %v3092 = vpop.f32.mrb[0].mxu0
      %v3093 = vpop.f32.mrb[0].mxu0
      %v3094 = vadd.f32 0.0, %v3093
      %v3095 = vpop.f32.mrb[0].mxu0
      %3096 = vmatprep.mubr.bf16.mxu0 0
      %3097 = vmatmul.mubr.bf16.gmra.mrb[0].mxu0 %v3018
      %v3098 = vpop.f32.mrb[0].mxu0
      %v3099 = vadd.f32 0.0, %v3098
      %v3100 = vpop.f32.mrb[0].mxu0
      %v3101 = vpop.f32.mrb[0].mxu0
      %v3102 = vadd.f32 0.0, %v3101
      %v3103 = vpop.f32.mrb[0].mxu0
      %3104 = vmatprep.mubr.bf16.mxu0 0
      %3105 = vmatmul.mubr.bf16.gmra.mrb[0].mxu0 %v3021
      %v3106 = vpop.f32.mrb[0].mxu0
      %v3107 = vadd.f32 0.0, %v3106
      %v3108 = vpop.f32.mrb[0].mxu0
      %v3109 = vpop.f32.mrb[0].mxu0
      %v3110 = vadd.f32 0.0, %v3109
      %v3111 = vpop.f32.mrb[0].mxu0
      %3112 = vmatprep.mubr.bf16.mxu0 0
      %3113 = vmatmul.mubr.bf16.gmra.mrb[0].mxu0 %v3024
      %v3114 = vpop.f32.mrb[0].mxu0
      %v3115 = vadd.f32 0.0, %v3114
      %v3116 = vpop.f32.mrb[0].mxu0
      %v3117 = vpop.f32.mrb[0].mxu0
      %v3118 = vadd.f32 0.0, %v3117
      %v3119 = vpop.f32.mrb[0].mxu0
      %3120 = vmatprep.mubr.bf16.mxu0 0
      %3121 = vmatmul.mubr.bf16.gmra.mrb[0].mxu0 %v3027
      %v3122 = vpop.f32.mrb[0].mxu0
      %v3123 = vadd.f32 0.0, %v3122
      %v3124 = vpop.f32.mrb[0].mxu0
      %v3125 = vpop.f32.mrb[0].mxu0
      %v3126 = vadd.f32 0.0, %v3125
      %v3127 = vpop.f32.mrb[0].mxu0
      %3128 = vdwg.mxu0
      %v3129 = vadd.f32 %v2947, %v3067
      %v3130 = vadd.f32 %v2948, %v3070
      %v3131 = vadd.f32 %v2949, %v3075
      %v3132 = vadd.f32 %v2950, %v3078
      %v3133 = vadd.f32 %v2951, %v3083
      %v3134 = vadd.f32 %v2952, %v3086
      %v3135 = vadd.f32 %v2953, %v3091
      %v3136 = vadd.f32 %v2954, %v3094
      %v3137 = vadd.f32 %v2955, %v3099
      %v3138 = vadd.f32 %v2956, %v3102
      %v3139 = vadd.f32 %v2957, %v3107
      %v3140 = vadd.f32 %v2958, %v3110
      %v3141 = vadd.f32 %v2959, %v3115
      %v3142 = vadd.f32 %v2960, %v3118
      %v3143 = vadd.f32 %v2961, %v3123
      %v3144 = vadd.f32 %v2962, %v3126
      %v3145 = vld [vmem:[%s2596 + $0x8] sm:$0xf]
      %v3146 = vld [vmem:[%s2596 + $0xc] sm:$0xf]
      %v3147 = vld [vmem:[%s2596 + $0x10] sm:$0x1]
      %v3148 = vld [vmem:[%s2596 + $0x1c] sm:$0xf]
      %v3149 = vld [vmem:[%s2596 + $0x20] sm:$0xf]
      %v3150 = vld [vmem:[%s2596 + $0x24] sm:$0x1]
      %v3151 = vld [vmem:[%s2596 + $0x30] sm:$0xf]
      %v3152 = vld [vmem:[%s2596 + $0x34] sm:$0xf]
      %v3153 = vld [vmem:[%s2596 + $0x38] sm:$0x1]
      %v3154 = vld [vmem:[%s2596 + $0x44] sm:$0xf]
      %v3155 = vld [vmem:[%s2596 + $0x48] sm:$0xf]
      %v3156 = vld [vmem:[%s2596 + $0x4c] sm:$0x1]
      %v3157 = vld [vmem:[%s2596 + $0x58] sm:$0xf]
      %v3158 = vld [vmem:[%s2596 + $0x5c] sm:$0xf]
      %v3159 = vld [vmem:[%s2596 + $0x60] sm:$0x1]
      %v3160 = vld [vmem:[%s2596 + $0x6c] sm:$0xf]
      %v3161 = vld [vmem:[%s2596 + $0x70] sm:$0xf]
      %v3162 = vld [vmem:[%s2596 + $0x74] sm:$0x1]
      %v3163 = vld [vmem:[%s2596 + $0x80] sm:$0xf]
      %v3164 = vld [vmem:[%s2596 + $0x84] sm:$0xf]
      %v3165 = vld [vmem:[%s2596 + $0x88] sm:$0x1]
      %v3166 = vld [vmem:[%s2596 + $0x94] sm:$0xf]
      %v3167 = vld [vmem:[%s2596 + $0x98] sm:$0xf]
      %v3168 = vld [vmem:[%s2596 + $0x9c] sm:$0x1]
      %v3170 = vshrl.u32 %v3145, 16
      %v3172 = vrot.slane %v3170, 4
      %v3173 = vshll.u32 %v3145, 16
      %v3175 = vrot.slane %v3173, 5
      %v3176 = vor.u32 %v3172, %v3175
      %v3177 = vrot.slane %v3176, 4
      %v3179 = vshll.u32 %v3146, 16
      %v3181 = vrot.slane %v3179, 5
      %v3182 = vsel %vm1306, %v3177, %v3181
      %v3183 = vshrl.u32 %v3146, 16
      %v3185 = vrot.slane %v3183, 4
      %v3186 = vor.u32 %v3185, %v3181
      %v3187 = vrot.slane %v3186, 4
      %v3189 = vshll.u32 %v3147, 16
      %v3191 = vrot.slane %v3189, 5
      %v3192 = vsel %vm1306, %v3187, %v3191
      %v3194 = vshrl.u32 %v3148, 16
      %v3196 = vrot.slane %v3194, 4
      %v3197 = vshll.u32 %v3148, 16
      %v3199 = vrot.slane %v3197, 5
      %v3200 = vor.u32 %v3196, %v3199
      %v3201 = vrot.slane %v3200, 4
      %v3203 = vshll.u32 %v3149, 16
      %v3205 = vrot.slane %v3203, 5
      %v3206 = vsel %vm1306, %v3201, %v3205
      %v3207 = vshrl.u32 %v3149, 16
      %v3209 = vrot.slane %v3207, 4
      %v3210 = vor.u32 %v3209, %v3205
      %v3211 = vrot.slane %v3210, 4
      %v3213 = vshll.u32 %v3150, 16
      %v3215 = vrot.slane %v3213, 5
      %v3216 = vsel %vm1306, %v3211, %v3215
      %v3218 = vshrl.u32 %v3151, 16
      %v3220 = vrot.slane %v3218, 4
      %v3221 = vshll.u32 %v3151, 16
      %v3223 = vrot.slane %v3221, 5
      %v3224 = vor.u32 %v3220, %v3223
      %v3225 = vrot.slane %v3224, 4
      %v3227 = vshll.u32 %v3152, 16
      %v3229 = vrot.slane %v3227, 5
      %v3230 = vsel %vm1306, %v3225, %v3229
      %v3231 = vshrl.u32 %v3152, 16
      %v3233 = vrot.slane %v3231, 4
      %v3234 = vor.u32 %v3233, %v3229
      %v3235 = vrot.slane %v3234, 4
      %v3237 = vshll.u32 %v3153, 16
      %v3239 = vrot.slane %v3237, 5
      %v3240 = vsel %vm1306, %v3235, %v3239
      %v3242 = vshrl.u32 %v3154, 16
      %v3244 = vrot.slane %v3242, 4
      %v3245 = vshll.u32 %v3154, 16
      %v3247 = vrot.slane %v3245, 5
      %v3248 = vor.u32 %v3244, %v3247
      %v3249 = vrot.slane %v3248, 4
      %v3251 = vshll.u32 %v3155, 16
      %v3253 = vrot.slane %v3251, 5
      %v3254 = vsel %vm1306, %v3249, %v3253
      %v3255 = vshrl.u32 %v3155, 16
      %v3257 = vrot.slane %v3255, 4
      %v3258 = vor.u32 %v3257, %v3253
      %v3259 = vrot.slane %v3258, 4
      %v3261 = vshll.u32 %v3156, 16
      %v3263 = vrot.slane %v3261, 5
      %v3264 = vsel %vm1306, %v3259, %v3263
      %v3266 = vshrl.u32 %v3157, 16
      %v3268 = vrot.slane %v3266, 4
      %v3269 = vshll.u32 %v3157, 16
      %v3271 = vrot.slane %v3269, 5
      %v3272 = vor.u32 %v3268, %v3271
      %v3273 = vrot.slane %v3272, 4
      %v3275 = vshll.u32 %v3158, 16
      %v3277 = vrot.slane %v3275, 5
      %v3278 = vsel %vm1306, %v3273, %v3277
      %v3279 = vshrl.u32 %v3158, 16
      %v3281 = vrot.slane %v3279, 4
      %v3282 = vor.u32 %v3281, %v3277
      %v3283 = vrot.slane %v3282, 4
      %v3285 = vshll.u32 %v3159, 16
      %v3287 = vrot.slane %v3285, 5
      %v3288 = vsel %vm1306, %v3283, %v3287
      %v3290 = vshrl.u32 %v3160, 16
      %v3292 = vrot.slane %v3290, 4
      %v3293 = vshll.u32 %v3160, 16
      %v3295 = vrot.slane %v3293, 5
      %v3296 = vor.u32 %v3292, %v3295
      %v3297 = vrot.slane %v3296, 4
      %v3299 = vshll.u32 %v3161, 16
      %v3301 = vrot.slane %v3299, 5
      %v3302 = vsel %vm1306, %v3297, %v3301
      %v3303 = vshrl.u32 %v3161, 16
      %v3305 = vrot.slane %v3303, 4
      %v3306 = vor.u32 %v3305, %v3301
      %v3307 = vrot.slane %v3306, 4
      %v3309 = vshll.u32 %v3162, 16
      %v3311 = vrot.slane %v3309, 5
      %v3312 = vsel %vm1306, %v3307, %v3311
      %v3314 = vshrl.u32 %v3163, 16
      %v3316 = vrot.slane %v3314, 4
      %v3317 = vshll.u32 %v3163, 16
      %v3319 = vrot.slane %v3317, 5
      %v3320 = vor.u32 %v3316, %v3319
      %v3321 = vrot.slane %v3320, 4
      %v3323 = vshll.u32 %v3164, 16
      %v3325 = vrot.slane %v3323, 5
      %v3326 = vsel %vm1306, %v3321, %v3325
      %v3327 = vshrl.u32 %v3164, 16
      %v3329 = vrot.slane %v3327, 4
      %v3330 = vor.u32 %v3329, %v3325
      %v3331 = vrot.slane %v3330, 4
      %v3333 = vshll.u32 %v3165, 16
      %v3335 = vrot.slane %v3333, 5
      %v3336 = vsel %vm1306, %v3331, %v3335
      %v3338 = vshrl.u32 %v3166, 16
      %v3340 = vrot.slane %v3338, 4
      %v3341 = vshll.u32 %v3166, 16
      %v3343 = vrot.slane %v3341, 5
      %v3344 = vor.u32 %v3340, %v3343
      %v3345 = vrot.slane %v3344, 4
      %v3347 = vshll.u32 %v3167, 16
      %v3349 = vrot.slane %v3347, 5
      %v3350 = vsel %vm1306, %v3345, %v3349
      %v3351 = vshrl.u32 %v3167, 16
      %v3353 = vrot.slane %v3351, 4
      %v3354 = vor.u32 %v3353, %v3349
      %v3355 = vrot.slane %v3354, 4
      %v3357 = vshll.u32 %v3168, 16
      %v3359 = vrot.slane %v3357, 5
      %v3360 = vsel %vm1306, %v3355, %v3359
      %s3361 = scalar_lea.vmem %s3, 16
      %v3362 = vld [vmem:[%s3361] sm:$0x3]
      %v3363 = vunpack.c.l.b16 %v3182
      %v3364 = vunpack.c.l.b16 %v3192
      %v3365 = vunpack.c.l.b16 %v3206
      %v3366 = vunpack.c.l.b16 %v3216
      %v3367 = vunpack.c.l.b16 %v3230
      %v3368 = vunpack.c.l.b16 %v3240
      %v3369 = vunpack.c.l.b16 %v3254
      %v3370 = vunpack.c.l.b16 %v3264
      %v3371 = vunpack.c.l.b16 %v3278
      %v3372 = vunpack.c.l.b16 %v3288
      %v3373 = vunpack.c.l.b16 %v3302
      %v3374 = vunpack.c.l.b16 %v3312
      %v3375 = vunpack.c.l.b16 %v3326
      %v3376 = vunpack.c.l.b16 %v3336
      %v3377 = vunpack.c.l.b16 %v3350
      %v3378 = vunpack.c.l.b16 %v3360
      %v3379 = vpack.c.b16 %v3364, %v3363
      %v3380 = vpack.c.b16 %v3366, %v3365
      %v3381 = vpack.c.b16 %v3368, %v3367
      %v3382 = vpack.c.b16 %v3370, %v3369
      %v3383 = vpack.c.b16 %v3372, %v3371
      %v3384 = vpack.c.b16 %v3374, %v3373
      %v3385 = vpack.c.b16 %v3376, %v3375
      %v3386 = vpack.c.b16 %v3378, %v3377
      %v3388 = vsel %vm1006, %v3379, 0
      %v3391 = vsel %vm1006, %v3380, 0
      %v3394 = vsel %vm1006, %v3381, 0
      %v3397 = vsel %vm1006, %v3382, 0
      %v3400 = vsel %vm1006, %v3383, 0
      %v3403 = vsel %vm1006, %v3384, 0
      %v3406 = vsel %vm1006, %v3385, 0
      %v3409 = vsel %vm1006, %v3386, 0
      %v3412 = vsel %vm1031, %v3362, 0
      %3414 = vmatprep.subr.bf16.mxu0 0
      %3415 = vmatpush1.bf16.msra.mxu0 %v3412
      %3416 = vmatprep.subr.bf16.mxu0 0
      %3417 = vmatpush1.bf16.msra.mxu0 0
      %3418 = vmatprep.subr.bf16.mxu0 0
      %3419 = vmatpush1.bf16.msra.mxu0 0
      %3420 = vmatprep.subr.bf16.mxu0 0
      %3421 = vmatpush1.bf16.msra.mxu0 0
      %3422 = vmatprep.subr.bf16.mxu0 0
      %3423 = vmatpush1.bf16.msra.mxu0 0
      %3424 = vmatprep.subr.bf16.mxu0 0
      %3425 = vmatpush1.bf16.msra.mxu0 0
      %3426 = vmatprep.subr.bf16.mxu0 0
      %3427 = vmatpush1.bf16.msra.mxu0 0
      %3428 = vmatprep.subr.bf16.mxu0 0
      %3429 = vmatpush1.bf16.msra.mxu0 0
      %3430 = vmatprep.subr.bf16.mxu0 0
      %3431 = vmatpush1.bf16.msra.mxu0 0
      %3432 = vmatprep.subr.bf16.mxu0 0
      %3433 = vmatpush1.bf16.msra.mxu0 0
      %3434 = vmatprep.subr.bf16.mxu0 0
      %3435 = vmatpush1.bf16.msra.mxu0 0
      %3436 = vmatprep.subr.bf16.mxu0 0
      %3437 = vmatpush1.bf16.msra.mxu0 0
      %3438 = vmatprep.subr.bf16.mxu0 0
      %3439 = vmatpush1.bf16.msra.mxu0 0
      %3440 = vmatprep.subr.bf16.mxu0 0
      %3441 = vmatpush1.bf16.msra.mxu0 0
      %3442 = vmatprep.subr.bf16.mxu0 0
      %3443 = vmatpush1.bf16.msra.mxu0 0
      %3444 = vmatprep.subr.bf16.mxu0 0
      %3445 = vmatpush1.bf16.msra.mxu0 0
      %3446 = vmatprep.mubr.bf16.mxu0 0
      %3447 = vmatmul.mubr.bf16.gmra.mrb[0].mxu0 %v3388
      %v3448 = vpop.f32.mrb[0].mxu0
      %v3449 = vadd.f32 0.0, %v3448
      %v3450 = vpop.f32.mrb[0].mxu0
      %v3451 = vpop.f32.mrb[0].mxu0
      %v3452 = vadd.f32 0.0, %v3451
      %v3453 = vpop.f32.mrb[0].mxu0
      %3454 = vmatprep.mubr.bf16.mxu0 0
      %3455 = vmatmul.mubr.bf16.gmra.mrb[0].mxu0 %v3391
      %v3456 = vpop.f32.mrb[0].mxu0
      %v3457 = vadd.f32 0.0, %v3456
      %v3458 = vpop.f32.mrb[0].mxu0
      %v3459 = vpop.f32.mrb[0].mxu0
      %v3460 = vadd.f32 0.0, %v3459
      %v3461 = vpop.f32.mrb[0].mxu0
      %3462 = vmatprep.mubr.bf16.mxu0 0
      %3463 = vmatmul.mubr.bf16.gmra.mrb[0].mxu0 %v3394
      %v3464 = vpop.f32.mrb[0].mxu0
      %v3465 = vadd.f32 0.0, %v3464
      %v3466 = vpop.f32.mrb[0].mxu0
      %v3467 = vpop.f32.mrb[0].mxu0
      %v3468 = vadd.f32 0.0, %v3467
      %v3469 = vpop.f32.mrb[0].mxu0
      %3470 = vmatprep.mubr.bf16.mxu0 0
      %3471 = vmatmul.mubr.bf16.gmra.mrb[0].mxu0 %v3397
      %v3472 = vpop.f32.mrb[0].mxu0
      %v3473 = vadd.f32 0.0, %v3472
      %v3474 = vpop.f32.mrb[0].mxu0
      %v3475 = vpop.f32.mrb[0].mxu0
      %v3476 = vadd.f32 0.0, %v3475
      %v3477 = vpop.f32.mrb[0].mxu0
      %3478 = vmatprep.mubr.bf16.mxu0 0
      %3479 = vmatmul.mubr.bf16.gmra.mrb[0].mxu0 %v3400
      %v3480 = vpop.f32.mrb[0].mxu0
      %v3481 = vadd.f32 0.0, %v3480
      %v3482 = vpop.f32.mrb[0].mxu0
      %v3483 = vpop.f32.mrb[0].mxu0
      %v3484 = vadd.f32 0.0, %v3483
      %v3485 = vpop.f32.mrb[0].mxu0
      %3486 = vmatprep.mubr.bf16.mxu0 0
      %3487 = vmatmul.mubr.bf16.gmra.mrb[0].mxu0 %v3403
      %v3488 = vpop.f32.mrb[0].mxu0
      %v3489 = vadd.f32 0.0, %v3488
      %v3490 = vpop.f32.mrb[0].mxu0
      %v3491 = vpop.f32.mrb[0].mxu0
      %v3492 = vadd.f32 0.0, %v3491
      %v3493 = vpop.f32.mrb[0].mxu0
      %3494 = vmatprep.mubr.bf16.mxu0 0
      %3495 = vmatmul.mubr.bf16.gmra.mrb[0].mxu0 %v3406
      %v3496 = vpop.f32.mrb[0].mxu0
      %v3497 = vadd.f32 0.0, %v3496
      %v3498 = vpop.f32.mrb[0].mxu0
      %v3499 = vpop.f32.mrb[0].mxu0
      %v3500 = vadd.f32 0.0, %v3499
      %v3501 = vpop.f32.mrb[0].mxu0
      %3502 = vmatprep.mubr.bf16.mxu0 0
      %3503 = vmatmul.mubr.bf16.gmra.mrb[0].mxu0 %v3409
      %v3504 = vpop.f32.mrb[0].mxu0
      %v3505 = vadd.f32 0.0, %v3504
      %v3506 = vpop.f32.mrb[0].mxu0
      %v3507 = vpop.f32.mrb[0].mxu0
      %v3508 = vadd.f32 0.0, %v3507
      %v3509 = vpop.f32.mrb[0].mxu0
      %3510 = vdwg.mxu0
      %v3511 = vadd.f32 %v3129, %v3449
      %v3512 = vadd.f32 %v3130, %v3452
      %v3513 = vadd.f32 %v3131, %v3457
      %v3514 = vadd.f32 %v3132, %v3460
      %v3515 = vadd.f32 %v3133, %v3465
      %v3516 = vadd.f32 %v3134, %v3468
      %v3517 = vadd.f32 %v3135, %v3473
      %v3518 = vadd.f32 %v3136, %v3476
      %v3519 = vadd.f32 %v3137, %v3481
      %v3520 = vadd.f32 %v3138, %v3484
      %v3521 = vadd.f32 %v3139, %v3489
      %v3522 = vadd.f32 %v3140, %v3492
      %v3523 = vadd.f32 %v3141, %v3497
      %v3524 = vadd.f32 %v3142, %v3500
      %v3525 = vadd.f32 %v3143, %v3505
      %v3526 = vadd.f32 %v3144, %v3508
      %v3527 = vld [vmem:[%s4] sm:$0x1]
      %v3529 = vlaneseq
      %v3530 = vshrl.u32 %v3529, 7
      %v3531 = vsub.s32 0, %v3530
      %v3532 = vrot.slane %v3527, %v3531
      %v3534 = vadd.f32 %v3511, %v3532
      %v3535 = vadd.f32 %v3512, %v3532
      %v3536 = vadd.f32 %v3513, %v3532
      %v3537 = vadd.f32 %v3514, %v3532
      %v3538 = vadd.f32 %v3515, %v3532
      %v3539 = vadd.f32 %v3516, %v3532
      %v3540 = vadd.f32 %v3517, %v3532
      %v3541 = vadd.f32 %v3518, %v3532
      %v3542 = vadd.f32 %v3519, %v3532
      %v3543 = vadd.f32 %v3520, %v3532
      %v3544 = vadd.f32 %v3521, %v3532
      %v3545 = vadd.f32 %v3522, %v3532
      %v3546 = vadd.f32 %v3523, %v3532
      %v3547 = vadd.f32 %v3524, %v3532
      %v3548 = vadd.f32 %v3525, %v3532
      %v3549 = vadd.f32 %v3526, %v3532
      %v3550 = vmax.f32 %v3534, 0.0
      %v3551 = vmax.f32 %v3535, 0.0
      %v3552 = vmax.f32 %v3536, 0.0
      %v3553 = vmax.f32 %v3537, 0.0
      %v3554 = vmax.f32 %v3538, 0.0
      %v3555 = vmax.f32 %v3539, 0.0
      %v3556 = vmax.f32 %v3540, 0.0
      %v3557 = vmax.f32 %v3541, 0.0
      %v3558 = vmax.f32 %v3542, 0.0
      %v3559 = vmax.f32 %v3543, 0.0
      %v3560 = vmax.f32 %v3544, 0.0
      %v3561 = vmax.f32 %v3545, 0.0
      %v3562 = vmax.f32 %v3546, 0.0
      %v3563 = vmax.f32 %v3547, 0.0
      %v3564 = vmax.f32 %v3548, 0.0
      %v3565 = vmax.f32 %v3549, 0.0
      %v3566 = vpack.c.bf16 %v3551, %v3550
      %v3567 = vpack.c.bf16 %v3553, %v3552
      %v3568 = vpack.c.bf16 %v3555, %v3554
      %v3569 = vpack.c.bf16 %v3557, %v3556
      %v3570 = vpack.c.bf16 %v3559, %v3558
      %v3571 = vpack.c.bf16 %v3561, %v3560
      %v3572 = vpack.c.bf16 %v3563, %v3562
      %v3573 = vpack.c.bf16 %v3565, %v3564
      %s3574 = smul.u32 %s24, 8
      %s3575 = sadd.s32 %s3574, 1
      %s3576 = smul.u32 %s3575, 16
      %s3577 = sshra.s32 %s3576, 3
      %s3578 = sand.u32 %s3576, 7
      %s3579 = smul.addr %s3577, 4
      %s3580 = scalar_lea.vmem %s318, %s3579
      %v3581 = vld [vmem:[%s3580] sm:$0xf]
      %v3582 = vld [vmem:[%s3580 + $0x4] sm:$0xf]
      %v3583 = vld [vmem:[%s3580 + $0x8] sm:$0xf]
      %v3584 = vld [vmem:[%s3580 + $0xc] sm:$0xf]
      %v3585 = vld [vmem:[%s3580 + $0x10] sm:$0xf]
      %v3586 = vld [vmem:[%s3580 + $0x14] sm:$0xf]
      %v3587 = vld [vmem:[%s3580 + $0x18] sm:$0xf]
      %v3588 = vld [vmem:[%s3580 + $0x1c] sm:$0xf]
      %v3589 = vld [vmem:[%s3580 + $0x20] sm:$0xf]
      %v3590 = vld [vmem:[%s3580 + $0x24] sm:$0xf]
      %v3591 = vld [vmem:[%s3580 + $0x28] sm:$0xf]
      %v3592 = vld [vmem:[%s3580 + $0x2c] sm:$0xf]
      %v3593 = vld [vmem:[%s3580 + $0x30] sm:$0xf]
      %v3594 = vld [vmem:[%s3580 + $0x34] sm:$0xf]
      %v3595 = vld [vmem:[%s3580 + $0x38] sm:$0xf]
      %v3596 = vld [vmem:[%s3580 + $0x3c] sm:$0xf]
      %v3597 = vld [vmem:[%s5] sm:$0x3]
      %v3598 = vld [vmem:[%s6] sm:$0xf]
      %v3615 = vunpack.c.l.b16 %v3581
      %v3616 = vunpack.c.l.b16 %v3582
      %v3617 = vunpack.c.l.b16 %v3583
      %v3618 = vunpack.c.l.b16 %v3584
      %v3619 = vunpack.c.l.b16 %v3585
      %v3620 = vunpack.c.l.b16 %v3586
      %v3621 = vunpack.c.l.b16 %v3587
      %v3622 = vunpack.c.l.b16 %v3588
      %v3623 = vunpack.c.l.b16 %v3589
      %v3624 = vunpack.c.l.b16 %v3590
      %v3625 = vunpack.c.l.b16 %v3591
      %v3626 = vunpack.c.l.b16 %v3592
      %v3627 = vunpack.c.l.b16 %v3593
      %v3628 = vunpack.c.l.b16 %v3594
      %v3629 = vunpack.c.l.b16 %v3595
      %v3630 = vunpack.c.l.b16 %v3596
      %v3631 = vpack.c.b16 %v3616, %v3615
      %v3632 = vpack.c.b16 %v3618, %v3617
      %v3633 = vpack.c.b16 %v3620, %v3619
      %v3634 = vpack.c.b16 %v3622, %v3621
      %v3635 = vpack.c.b16 %v3624, %v3623
      %v3636 = vpack.c.b16 %v3626, %v3625
      %v3637 = vpack.c.b16 %v3628, %v3627
      %v3638 = vpack.c.b16 %v3630, %v3629
      %v3640 = vsel %vm413, %v3631, 0
      %v3643 = vsel %vm413, %v3632, 0
      %v3646 = vsel %vm413, %v3633, 0
      %v3649 = vsel %vm413, %v3634, 0
      %v3652 = vsel %vm413, %v3635, 0
      %v3655 = vsel %vm413, %v3636, 0
      %v3658 = vsel %vm413, %v3637, 0
      %v3661 = vsel %vm413, %v3638, 0
      %v3664 = vsel %vm444, %v3598, 0
      %3666 = vmatprep.subr.bf16.mxu0 0
      %3667 = vmatpush1.bf16.msra.mxu0 %v3664
      %3668 = vmatprep.subr.bf16.mxu0 0
      %3669 = vmatpush1.bf16.msra.mxu0 0
      %3670 = vmatprep.subr.bf16.mxu0 0
      %3671 = vmatpush1.bf16.msra.mxu0 0
      %3672 = vmatprep.subr.bf16.mxu0 0
      %3673 = vmatpush1.bf16.msra.mxu0 0
      %3674 = vmatprep.subr.bf16.mxu0 0
      %3675 = vmatpush1.bf16.msra.mxu0 0
      %3676 = vmatprep.subr.bf16.mxu0 0
      %3677 = vmatpush1.bf16.msra.mxu0 0
      %3678 = vmatprep.subr.bf16.mxu0 0
      %3679 = vmatpush1.bf16.msra.mxu0 0
      %3680 = vmatprep.subr.bf16.mxu0 0
      %3681 = vmatpush1.bf16.msra.mxu0 0
      %3682 = vmatprep.subr.bf16.mxu0 0
      %3683 = vmatpush1.bf16.msra.mxu0 0
      %3684 = vmatprep.subr.bf16.mxu0 0
      %3685 = vmatpush1.bf16.msra.mxu0 0
      %3686 = vmatprep.subr.bf16.mxu0 0
      %3687 = vmatpush1.bf16.msra.mxu0 0
      %3688 = vmatprep.subr.bf16.mxu0 0
      %3689 = vmatpush1.bf16.msra.mxu0 0
      %3690 = vmatprep.subr.bf16.mxu0 0
      %3691 = vmatpush1.bf16.msra.mxu0 0
      %3692 = vmatprep.subr.bf16.mxu0 0
      %3693 = vmatpush1.bf16.msra.mxu0 0
      %3694 = vmatprep.subr.bf16.mxu0 0
      %3695 = vmatpush1.bf16.msra.mxu0 0
      %3696 = vmatprep.subr.bf16.mxu0 0
      %3697 = vmatpush1.bf16.msra.mxu0 0
      %3698 = vmatprep.mubr.bf16.mxu0 0
      %3699 = vmatmul.mubr.bf16.gmra.mrb[0].mxu0 %v3640
      %v3700 = vpop.f32.mrb[0].mxu0
      %v3701 = vadd.f32 0.0, %v3700
      %v3702 = vpop.f32.mrb[0].mxu0
      %v3703 = vpop.f32.mrb[0].mxu0
      %v3704 = vadd.f32 0.0, %v3703
      %v3705 = vpop.f32.mrb[0].mxu0
      %3706 = vmatprep.mubr.bf16.mxu0 0
      %3707 = vmatmul.mubr.bf16.gmra.mrb[0].mxu0 %v3643
      %v3708 = vpop.f32.mrb[0].mxu0
      %v3709 = vadd.f32 0.0, %v3708
      %v3710 = vpop.f32.mrb[0].mxu0
      %v3711 = vpop.f32.mrb[0].mxu0
      %v3712 = vadd.f32 0.0, %v3711
      %v3713 = vpop.f32.mrb[0].mxu0
      %3714 = vmatprep.mubr.bf16.mxu0 0
      %3715 = vmatmul.mubr.bf16.gmra.mrb[0].mxu0 %v3646
      %v3716 = vpop.f32.mrb[0].mxu0
      %v3717 = vadd.f32 0.0, %v3716
      %v3718 = vpop.f32.mrb[0].mxu0
      %v3719 = vpop.f32.mrb[0].mxu0
      %v3720 = vadd.f32 0.0, %v3719
      %v3721 = vpop.f32.mrb[0].mxu0
      %3722 = vmatprep.mubr.bf16.mxu0 0
      %3723 = vmatmul.mubr.bf16.gmra.mrb[0].mxu0 %v3649
      %v3724 = vpop.f32.mrb[0].mxu0
      %v3725 = vadd.f32 0.0, %v3724
      %v3726 = vpop.f32.mrb[0].mxu0
      %v3727 = vpop.f32.mrb[0].mxu0
      %v3728 = vadd.f32 0.0, %v3727
      %v3729 = vpop.f32.mrb[0].mxu0
      %3730 = vmatprep.mubr.bf16.mxu0 0
      %3731 = vmatmul.mubr.bf16.gmra.mrb[0].mxu0 %v3652
      %v3732 = vpop.f32.mrb[0].mxu0
      %v3733 = vadd.f32 0.0, %v3732
      %v3734 = vpop.f32.mrb[0].mxu0
      %v3735 = vpop.f32.mrb[0].mxu0
      %v3736 = vadd.f32 0.0, %v3735
      %v3737 = vpop.f32.mrb[0].mxu0
      %3738 = vmatprep.mubr.bf16.mxu0 0
      %3739 = vmatmul.mubr.bf16.gmra.mrb[0].mxu0 %v3655
      %v3740 = vpop.f32.mrb[0].mxu0
      %v3741 = vadd.f32 0.0, %v3740
      %v3742 = vpop.f32.mrb[0].mxu0
      %v3743 = vpop.f32.mrb[0].mxu0
      %v3744 = vadd.f32 0.0, %v3743
      %v3745 = vpop.f32.mrb[0].mxu0
      %3746 = vmatprep.mubr.bf16.mxu0 0
      %3747 = vmatmul.mubr.bf16.gmra.mrb[0].mxu0 %v3658
      %v3748 = vpop.f32.mrb[0].mxu0
      %v3749 = vadd.f32 0.0, %v3748
      %v3750 = vpop.f32.mrb[0].mxu0
      %v3751 = vpop.f32.mrb[0].mxu0
      %v3752 = vadd.f32 0.0, %v3751
      %v3753 = vpop.f32.mrb[0].mxu0
      %3754 = vmatprep.mubr.bf16.mxu0 0
      %3755 = vmatmul.mubr.bf16.gmra.mrb[0].mxu0 %v3661
      %v3756 = vpop.f32.mrb[0].mxu0
      %v3757 = vadd.f32 0.0, %v3756
      %v3758 = vpop.f32.mrb[0].mxu0
      %v3759 = vpop.f32.mrb[0].mxu0
      %v3760 = vadd.f32 0.0, %v3759
      %v3761 = vpop.f32.mrb[0].mxu0
      %3762 = vdwg.mxu0
      %v3764 = vsel %vm1006, %v3566, 0
      %v3767 = vsel %vm1006, %v3567, 0
      %v3770 = vsel %vm1006, %v3568, 0
      %v3773 = vsel %vm1006, %v3569, 0
      %v3776 = vsel %vm1006, %v3570, 0
      %v3779 = vsel %vm1006, %v3571, 0
      %v3782 = vsel %vm1006, %v3572, 0
      %v3785 = vsel %vm1006, %v3573, 0
      %v3788 = vsel %vm1031, %v3597, 0
      %3790 = vmatprep.subr.bf16.mxu0 0
      %3791 = vmatpush1.bf16.msra.mxu0 %v3788
      %3792 = vmatprep.subr.bf16.mxu0 0
      %3793 = vmatpush1.bf16.msra.mxu0 0
      %3794 = vmatprep.subr.bf16.mxu0 0
      %3795 = vmatpush1.bf16.msra.mxu0 0
      %3796 = vmatprep.subr.bf16.mxu0 0
      %3797 = vmatpush1.bf16.msra.mxu0 0
      %3798 = vmatprep.subr.bf16.mxu0 0
      %3799 = vmatpush1.bf16.msra.mxu0 0
      %3800 = vmatprep.subr.bf16.mxu0 0
      %3801 = vmatpush1.bf16.msra.mxu0 0
      %3802 = vmatprep.subr.bf16.mxu0 0
      %3803 = vmatpush1.bf16.msra.mxu0 0
      %3804 = vmatprep.subr.bf16.mxu0 0
      %3805 = vmatpush1.bf16.msra.mxu0 0
      %3806 = vmatprep.subr.bf16.mxu0 0
      %3807 = vmatpush1.bf16.msra.mxu0 0
      %3808 = vmatprep.subr.bf16.mxu0 0
      %3809 = vmatpush1.bf16.msra.mxu0 0
      %3810 = vmatprep.subr.bf16.mxu0 0
      %3811 = vmatpush1.bf16.msra.mxu0 0
      %3812 = vmatprep.subr.bf16.mxu0 0
      %3813 = vmatpush1.bf16.msra.mxu0 0
      %3814 = vmatprep.subr.bf16.mxu0 0
      %3815 = vmatpush1.bf16.msra.mxu0 0
      %3816 = vmatprep.subr.bf16.mxu0 0
      %3817 = vmatpush1.bf16.msra.mxu0 0
      %3818 = vmatprep.subr.bf16.mxu0 0
      %3819 = vmatpush1.bf16.msra.mxu0 0
      %3820 = vmatprep.subr.bf16.mxu0 0
      %3821 = vmatpush1.bf16.msra.mxu0 0
      %3822 = vmatprep.mubr.bf16.mxu0 0
      %3823 = vmatmul.mubr.bf16.gmra.mrb[0].mxu0 %v3764
      %v3824 = vpop.f32.mrb[0].mxu0
      %v3825 = vadd.f32 %v3701, %v3824
      %v3826 = vpop.f32.mrb[0].mxu0
      %v3827 = vpop.f32.mrb[0].mxu0
      %v3828 = vadd.f32 %v3704, %v3827
      %v3829 = vpop.f32.mrb[0].mxu0
      %3830 = vmatprep.mubr.bf16.mxu0 0
      %3831 = vmatmul.mubr.bf16.gmra.mrb[0].mxu0 %v3767
      %v3832 = vpop.f32.mrb[0].mxu0
      %v3833 = vadd.f32 %v3709, %v3832
      %v3834 = vpop.f32.mrb[0].mxu0
      %v3835 = vpop.f32.mrb[0].mxu0
      %v3836 = vadd.f32 %v3712, %v3835
      %v3837 = vpop.f32.mrb[0].mxu0
      %3838 = vmatprep.mubr.bf16.mxu0 0
      %3839 = vmatmul.mubr.bf16.gmra.mrb[0].mxu0 %v3770
      %v3840 = vpop.f32.mrb[0].mxu0
      %v3841 = vadd.f32 %v3717, %v3840
      %v3842 = vpop.f32.mrb[0].mxu0
      %v3843 = vpop.f32.mrb[0].mxu0
      %v3844 = vadd.f32 %v3720, %v3843
      %v3845 = vpop.f32.mrb[0].mxu0
      %3846 = vmatprep.mubr.bf16.mxu0 0
      %3847 = vmatmul.mubr.bf16.gmra.mrb[0].mxu0 %v3773
      %v3848 = vpop.f32.mrb[0].mxu0
      %v3849 = vadd.f32 %v3725, %v3848
      %v3850 = vpop.f32.mrb[0].mxu0
      %v3851 = vpop.f32.mrb[0].mxu0
      %v3852 = vadd.f32 %v3728, %v3851
      %v3853 = vpop.f32.mrb[0].mxu0
      %3854 = vmatprep.mubr.bf16.mxu0 0
      %3855 = vmatmul.mubr.bf16.gmra.mrb[0].mxu0 %v3776
      %v3856 = vpop.f32.mrb[0].mxu0
      %v3857 = vadd.f32 %v3733, %v3856
      %v3858 = vpop.f32.mrb[0].mxu0
      %v3859 = vpop.f32.mrb[0].mxu0
      %v3860 = vadd.f32 %v3736, %v3859
      %v3861 = vpop.f32.mrb[0].mxu0
      %3862 = vmatprep.mubr.bf16.mxu0 0
      %3863 = vmatmul.mubr.bf16.gmra.mrb[0].mxu0 %v3779
      %v3864 = vpop.f32.mrb[0].mxu0
      %v3865 = vadd.f32 %v3741, %v3864
      %v3866 = vpop.f32.mrb[0].mxu0
      %v3867 = vpop.f32.mrb[0].mxu0
      %v3868 = vadd.f32 %v3744, %v3867
      %v3869 = vpop.f32.mrb[0].mxu0
      %3870 = vmatprep.mubr.bf16.mxu0 0
      %3871 = vmatmul.mubr.bf16.gmra.mrb[0].mxu0 %v3782
      %v3872 = vpop.f32.mrb[0].mxu0
      %v3873 = vadd.f32 %v3749, %v3872
      %v3874 = vpop.f32.mrb[0].mxu0
      %v3875 = vpop.f32.mrb[0].mxu0
      %v3876 = vadd.f32 %v3752, %v3875
      %v3877 = vpop.f32.mrb[0].mxu0
      %3878 = vmatprep.mubr.bf16.mxu0 0
      %3879 = vmatmul.mubr.bf16.gmra.mrb[0].mxu0 %v3785
      %v3880 = vpop.f32.mrb[0].mxu0
      %v3881 = vadd.f32 %v3757, %v3880
      %v3882 = vpop.f32.mrb[0].mxu0
      %v3883 = vpop.f32.mrb[0].mxu0
      %v3884 = vadd.f32 %v3760, %v3883
      %v3885 = vpop.f32.mrb[0].mxu0
      %3886 = vdwg.mxu0
      %v3887 = vld [vmem:[%s7] sm:$0x1]
      %v3889 = vlaneseq
      %v3890 = vshrl.u32 %v3889, 7
      %v3891 = vsub.s32 0, %v3890
      %v3892 = vrot.slane %v3887, %v3891
      %v3894 = vadd.f32 %v3825, %v3892
      %v3895 = vadd.f32 %v3828, %v3892
      %v3896 = vadd.f32 %v3833, %v3892
      %v3897 = vadd.f32 %v3836, %v3892
      %v3898 = vadd.f32 %v3841, %v3892
      %v3899 = vadd.f32 %v3844, %v3892
      %v3900 = vadd.f32 %v3849, %v3892
      %v3901 = vadd.f32 %v3852, %v3892
      %v3902 = vadd.f32 %v3857, %v3892
      %v3903 = vadd.f32 %v3860, %v3892
      %v3904 = vadd.f32 %v3865, %v3892
      %v3905 = vadd.f32 %v3868, %v3892
      %v3906 = vadd.f32 %v3873, %v3892
      %v3907 = vadd.f32 %v3876, %v3892
      %v3908 = vadd.f32 %v3881, %v3892
      %v3909 = vadd.f32 %v3884, %v3892
      %v3910 = vmax.f32 %v3894, 0.0
      %v3911 = vmax.f32 %v3895, 0.0
      %v3912 = vmax.f32 %v3896, 0.0
      %v3913 = vmax.f32 %v3897, 0.0
      %v3914 = vmax.f32 %v3898, 0.0
      %v3915 = vmax.f32 %v3899, 0.0
      %v3916 = vmax.f32 %v3900, 0.0
      %v3917 = vmax.f32 %v3901, 0.0
      %v3918 = vmax.f32 %v3902, 0.0
      %v3919 = vmax.f32 %v3903, 0.0
      %v3920 = vmax.f32 %v3904, 0.0
      %v3921 = vmax.f32 %v3905, 0.0
      %v3922 = vmax.f32 %v3906, 0.0
      %v3923 = vmax.f32 %v3907, 0.0
      %v3924 = vmax.f32 %v3908, 0.0
      %v3925 = vmax.f32 %v3909, 0.0
      %vm3926 = vcmask 130048
      %3927 = vst.msk [vmem:[%s327] sm:$0xff] %vm3926, %v3910
      %3928 = vst.msk [vmem:[%s327 + $0x8] sm:$0xff] %vm3926, %v3911
      %3929 = vst.msk [vmem:[%s327 + $0x10] sm:$0xff] %vm3926, %v3912
      %3930 = vst.msk [vmem:[%s327 + $0x18] sm:$0xff] %vm3926, %v3913
      %3931 = vst.msk [vmem:[%s327 + $0x20] sm:$0xff] %vm3926, %v3914
      %3932 = vst.msk [vmem:[%s327 + $0x28] sm:$0xff] %vm3926, %v3915
      %3933 = vst.msk [vmem:[%s327 + $0x30] sm:$0xff] %vm3926, %v3916
      %3934 = vst.msk [vmem:[%s327 + $0x38] sm:$0xff] %vm3926, %v3917
      %3935 = vst.msk [vmem:[%s327 + $0x40] sm:$0xff] %vm3926, %v3918
      %3936 = vst.msk [vmem:[%s327 + $0x48] sm:$0xff] %vm3926, %v3919
      %3937 = vst.msk [vmem:[%s327 + $0x50] sm:$0xff] %vm3926, %v3920
      %3938 = vst.msk [vmem:[%s327 + $0x58] sm:$0xff] %vm3926, %v3921
      %3939 = vst.msk [vmem:[%s327 + $0x60] sm:$0xff] %vm3926, %v3922
      %3940 = vst.msk [vmem:[%s327 + $0x68] sm:$0xff] %vm3926, %v3923
      %3941 = vst.msk [vmem:[%s327 + $0x70] sm:$0xff] %vm3926, %v3924
      %3942 = vst.msk [vmem:[%s327 + $0x78] sm:$0xff] %vm3926, %v3925
      %s3943 = smul.u32 16, %s24
      %p3944 = scmp.lt.s32.totalorder %s23, 1
      %s3945 = scalar_select %p3944, %s23, 1
      %p3946 = scmp.lt.s32.totalorder %s3943, 31
      %s3947 = scalar_select %p3946, %s3943, 31
      %s3948 = smul.addr %s3945, 32
      %s3949 = sadd.s32 %s3947, %s3948
      %s3950 = smul.addr %s3949, 8
      %s3951 = scalar_lea.vmem %s8, %s3950
      // Predicated region
      $region61: #{tpu_custom_call.1} parent=51 // pred_check
        %p3952 = pneg %p224
      $region62: #{tpu_custom_call.1} parent=51 // pred_check_branch
        %3954 = sbr.rel (%p3952) target = $region64
      $region63: #{tpu_custom_call.1} parent=51 // pred_region
        %s3955 = smul.u32 16, %s24
      $region64: #{tpu_custom_call.1} parent=51 // pred_fallthru
        _
    $region52: #{tpu_custom_call.1} parent=5 // pred_fallthru
      _
    %p3956 = scmp.le.s32.totalorder 2, %s14
    // Predicated region
    $region65: #{tpu_custom_call.1} parent=5 // pred_check
      %p3957 = pneg %p3956
    $region66: #{tpu_custom_call.1} parent=5 // pred_check_branch
      %3959 = sbr.rel (%p3957) target = $region68
    $region67: #{tpu_custom_call.1} parent=5 // pred_region
      %s3960 = ssub.s32 %s14, 2
      // Predicated region
      $region69: #{tpu_custom_call.1} parent=67 // pred_check
        %p3961 = pneg %p230
      $region70: #{tpu_custom_call.1} parent=67 // pred_check_branch
        %3963 = sbr.rel (%p3961) target = $region72
      $region71: #{tpu_custom_call.1} parent=67 // pred_region
        %s3964 = smul.u32 16, %s26
        %p3965 = scmp.lt.s32.totalorder %s25, 1
        %s3966 = scalar_select %p3965, %s25, 1
        %p3967 = scmp.lt.s32.totalorder %s3964, 31
        %s3968 = scalar_select %p3967, %s3964, 31
        %s3969 = smul.addr %s3966, 32
        %s3970 = sadd.s32 %s3968, %s3969
        %s3971 = smul.addr %s3970, 8
        %s3972 = scalar_lea.vmem %s8, %s3971
      $region72: #{tpu_custom_call.1} parent=67 // pred_fallthru
        _
    $region68: #{tpu_custom_call.1} parent=5 // pred_fallthru
      _
  $region6: #{tpu_custom_call.1} parent=0 // loop_footer
    %s18 = sadd.s32 1, %s14
  $region7: #{tpu_custom_call.1} parent=0 // loop_footer_branch
    %13 = sbr.rel target = $region3
  $region8: #{tpu_custom_call.1} parent=0 // loop_exit
    _

</llo_original>
